<compile_context>
chip_gen: v5e
topology: v5e:2x2
jax: 0.10.0
libtpu: 0.0.40
codegen_flags: <defaults>
</compile_context>

<pallas_src>
import functools

import jax
import jax.numpy as jnp
from jax.experimental import pallas as pl
from jax.experimental.pallas import tpu as pltpu

EPS = 1e-5                       # BatchNorm1d default eps
_TILE_ROWS = 4096                # rows (N*L positions) per grid step
_VMEM_LIMIT = 32 * 1024 * 1024   # safe on v5e/v6e/v7x; usage is well below


def _round_up(a, b):
    return (a + b - 1) // b * b


# ---------------------------------------------------------------------------
# Kernel 1: exact training-mode BatchNorm statistics (multi-phase, row-tiled),
# kept entirely in f32.  grid = (4 phases, n_tiles); scratch accumulators
# persist across the whole grid.
# vec_ref (128,16) columns: 0=b1, 1=bs1, 2=bs2, 3=pad, 4..7=gammas(1a,1b,2a,2b),
#                           8..11=betas(1a,1b,2a,2b), 12..15=pad.
# ab_ref (128,8) columns:   0..3 = BN scale for (1a,1b,2a,2b), 4..7 = BN shift.
# Accumulator layout per BN layer: columns [sum, sumsq, scale(a), shift(b)].
# ---------------------------------------------------------------------------
def _stats_kernel(n_rows, has_partial, x_ref, w1_ref, wenc1_ref, wr1b_ref,
                  wenc2_ref, wr2b_ref, vec_ref, ab_ref, st1a, st1b, st2a, st2b):
    phase = pl.program_id(0)
    tile = pl.program_id(1)
    n_tiles = pl.num_programs(1)
    tr = x_ref.shape[1]
    inv_n = 1.0 / n_rows

    # -- zero all accumulators at the very first grid point
    @pl.when((phase == 0) & (tile == 0))
    def _():
        st1a[...] = jnp.zeros_like(st1a)
        st1b[...] = jnp.zeros_like(st1b)
        st2a[...] = jnp.zeros_like(st2a)
        st2b[...] = jnp.zeros_like(st2b)

    def finalize(st, gamma, beta):
        mean = st[:, 0:1] * inv_n
        var = jnp.maximum(st[:, 1:2] * inv_n - mean * mean, 0.0)  # one-pass var
        a = gamma * jax.lax.rsqrt(var + EPS)                      # EUP rsqrt
        st[:, 2:3] = a
        st[:, 3:4] = beta - mean * a

    # -- finalize the previous phase's BN before any tile of this phase uses it
    @pl.when((phase == 1) & (tile == 0))
    def _():
        finalize(st1a, vec_ref[0:64, 4:5], vec_ref[0:64, 8:9])

    @pl.when((phase == 2) & (tile == 0))
    def _():
        finalize(st1b, vec_ref[0:32, 5:6], vec_ref[0:32, 9:10])

    @pl.when((phase == 3) & (tile == 0))
    def _():
        finalize(st2a, vec_ref[0:16, 6:7], vec_ref[0:16, 10:11])

    # -- sum / sum-of-squares accumulation; mask only on the final partial tile
    def accum_full(st, act):
        st[:, 0:1] = st[:, 0:1] + jnp.sum(act, axis=1, keepdims=True)
        st[:, 1:2] = st[:, 1:2] + jnp.sum(act * act, axis=1, keepdims=True)

    if has_partial:
        col = jax.lax.broadcasted_iota(jnp.int32, (1, tr), 1) + tile * tr
        mask = (col < n_rows).astype(jnp.float32)

        def accum_masked(st, act):
            am = act * mask
            st[:, 0:1] = st[:, 0:1] + jnp.sum(am, axis=1, keepdims=True)
            st[:, 1:2] = st[:, 1:2] + jnp.sum(am * act, axis=1, keepdims=True)

        def accumulate(st, act):
            is_last = tile == n_tiles - 1

            @pl.when(is_last)
            def _():
                accum_masked(st, act)

            @pl.when(jnp.logical_not(is_last))
            def _():
                accum_full(st, act)
    else:
        accumulate = accum_full

    dot = lambda a, b: jnp.dot(a, b, preferred_element_type=jnp.float32)

    # -- trunk prefix needed by every phase
    x = x_ref[...]
    h1 = jnp.maximum(dot(w1_ref[...], x) + vec_ref[:, 0:1], 0.0)        # (128,tr)
    t1 = dot(wenc1_ref[...], h1)                                        # (96,tr)
    r1a = t1[32:96, :]                                                  # pre-BN1a

    @pl.when(phase == 0)
    def _():
        accumulate(st1a, r1a)

    # -- phases >= 1: extend the trunk only as far as this phase needs
    @pl.when(phase >= 1)
    def _():
        z1 = jnp.maximum(r1a * st1a[:, 2:3] + st1a[:, 3:4], 0.0)
        r1b = dot(wr1b_ref[...], z1)                                    # pre-BN1b

        @pl.when(phase == 1)
        def _():
            accumulate(st1b, r1b)

        @pl.when(phase >= 2)
        def _():
            skip1 = t1[0:32, :] + vec_ref[0:32, 1:2]
            h2 = jnp.maximum(skip1 + r1b * st1b[:, 2:3] + st1b[:, 3:4], 0.0)
            t2 = dot(wenc2_ref[...], h2)                                # (24,tr)
            r2a = t2[8:24, :]                                           # pre-BN2a

            @pl.when(phase == 2)
            def _():
                accumulate(st2a, r2a)

            @pl.when(phase == 3)
            def _():
                z2 = jnp.maximum(r2a * st2a[:, 2:3] + st2a[:, 3:4], 0.0)
                r2b = dot(wr2b_ref[...], z2)                            # pre-BN2b
                accumulate(st2b, r2b)

    # -- last grid point: finalize the last BN and emit all scale/shift pairs
    @pl.when((phase == 3) & (tile == n_tiles - 1))
    def _():
        finalize(st2b, vec_ref[0:8, 7:8], vec_ref[0:8, 11:12])
        ab_ref[...] = jnp.zeros_like(ab_ref)
        ab_ref[0:64, 0:1] = st1a[:, 2:3]
        ab_ref[0:64, 4:5] = st1a[:, 3:4]
        ab_ref[0:32, 1:2] = st1b[:, 2:3]
        ab_ref[0:32, 5:6] = st1b[:, 3:4]
        ab_ref[0:16, 2:3] = st2a[:, 2:3]
        ab_ref[0:16, 6:7] = st2a[:, 3:4]
        ab_ref[0:8, 3:4] = st2b[:, 2:3]
        ab_ref[0:8, 7:8] = st2b[:, 3:4]


# ---------------------------------------------------------------------------
# Kernel 2: forward apply.  BN folded into weights (passed as bf16); matmuls
# run bf16 x bf16 on the MXU with f32 accumulation; bias/ReLU math in f32.
# Output is an (8, TR) lane-dense slab (rows 5..7 are zero padding).
# vec_ref (128,8) columns: 0=b1, 1=[bs1;shift1a](96), 2=shift1b(32),
#                          3=[bs2;shift2a](24), 4=shift2b(8), 5=bh1(12),
#                          6=bh2(8, zero-padded), 7=pad.
# ---------------------------------------------------------------------------
def _apply_kernel(x_ref, w1_ref, wenc1_ref, wr1b_ref, wenc2_ref, wr2b_ref,
                  wh1_ref, wh2_ref, vec_ref, out_ref):
    bf16 = jnp.bfloat16
    dot = lambda w_ref, a: jnp.dot(w_ref[...], a.astype(bf16),
                                   preferred_element_type=jnp.float32)
    x = x_ref[...]
    h1 = jnp.maximum(dot(w1_ref, x) + vec_ref[:, 0:1], 0.0)               # (128,tr)
    t1 = dot(wenc1_ref, h1) + vec_ref[0:96, 1:2]                          # [skip|BN1a]
    r1b = dot(wr1b_ref, jnp.maximum(t1[32:96, :], 0.0)) + vec_ref[0:32, 2:3]
    h2 = jnp.maximum(t1[0:32, :] + r1b, 0.0)                              # (32,tr)
    t2 = dot(wenc2_ref, h2) + vec_ref[0:24, 3:4]                          # [skip|BN2a]
    r2b = dot(wr2b_ref, jnp.maximum(t2[8:24, :], 0.0)) + vec_ref[0:8, 4:5]
    h3 = jnp.maximum(t2[0:8, :] + r2b, 0.0)                               # (8,tr)
    th = jnp.maximum(dot(wh1_ref, h3) + vec_ref[0:12, 5:6], 0.0)          # (12,tr)
    out_ref[...] = dot(wh2_ref, th) + vec_ref[0:8, 6:7]                   # (8,tr)


def _pad_col(v, rows=128):
    """(c,1) -> (rows,1) zero-padded column."""
    return jnp.pad(v, ((0, rows - v.shape[0]), (0, 0)))


@jax.jit
def listnet_forward(x_ncl, params):
    """x_ncl: (N, n_features, L) float32, like the PyTorch module input."""
    (w1, b1,
     ws1, bs1, wr1a, g1a, be1a, wr1b, g1b, be1b,
     ws2, bs2, wr2a, g2a, be2a, wr2b, g2b, be2b,
     w2a, b2a, w2b, b2b,
     w3a, b3a, w3b, b3b,
     w4a, b4a, w4b, b4b) = params

    n, c, l = x_ncl.shape
    r = n * l
    # NCL -> channel-major (C, R): channels on sublanes, positions on lanes.
    # TODO(synk): for very large inputs this wrapper-side transpose could be
    #             avoided by gridding over (N, L-tiles) directly.
    x_cr = jnp.transpose(x_ncl, (1, 0, 2)).reshape(c, r)

    if r >= _TILE_ROWS:
        tr = _TILE_ROWS
        r_pad = _round_up(r, tr)
    else:
        tr = _round_up(r, 128)       # lane-dense tile even for tiny R
        r_pad = tr
    n_tiles = r_pad // tr
    has_partial = (r_pad != r)
    x_pad = jnp.pad(x_cr, ((0, 0), (0, r_pad - r)))

    # ------------------ pack parameters (wrapper-side, tiny) ----------------
    wenc1 = jnp.concatenate([ws1, wr1a], axis=0)      # (96,128) = [skip | residual]
    wenc2 = jnp.concatenate([ws2, wr2a], axis=0)      # (24, 32)
    zero_col = jnp.zeros((128, 1), jnp.float32)
    vec_s = jnp.concatenate(
        [_pad_col(b1), _pad_col(bs1), _pad_col(bs2), zero_col,
         _pad_col(g1a), _pad_col(g1b), _pad_col(g2a), _pad_col(g2b),
         _pad_col(be1a), _pad_col(be1b), _pad_col(be2a), _pad_col(be2b),
         zero_col, zero_col, zero_col, zero_col], axis=1)           # (128,16)

    # per-row trunk flops of each stats phase prefix (for the cost estimate)
    f_h1 = 2 * (128 * c + 96 * 128)
    stats_flops = (4 * f_h1 + 3 * 2 * 32 * 64 + 2 * 2 * 24 * 32 + 1 * 2 * 8 * 16)
    trunk_flops = 2 * (128 * c + 96 * 128 + 32 * 64 + 24 * 32 + 8 * 16)
    param_bytes = 4 * (128 * c + 96 * 128 + 32 * 64 + 24 * 32 + 8 * 16 + 128 * 16)

    # ------------------ pass 1: BatchNorm statistics (f32) ------------------
    ab = pl.pallas_call(
        functools.partial(_stats_kernel, r, has_partial),
        out_shape=jax.ShapeDtypeStruct((128, 8), jnp.float32),
        grid_spec=pltpu.PrefetchScalarGridSpec(
            num_scalar_prefetch=0,
            grid=(4, n_tiles),
            in_specs=[
                pl.BlockSpec((c, tr), lambda p, i: (0, i)),
                pl.BlockSpec((128, c), lambda p, i: (0, 0)),
                pl.BlockSpec((96, 128), lambda p, i: (0, 0)),
                pl.BlockSpec((32, 64), lambda p, i: (0, 0)),
                pl.BlockSpec((24, 32), lambda p, i: (0, 0)),
                pl.BlockSpec((8, 16), lambda p, i: (0, 0)),
                pl.BlockSpec((128, 16), lambda p, i: (0, 0)),
            ],
            out_specs=pl.BlockSpec((128, 8), lambda p, i: (0, 0)),
            scratch_shapes=[pltpu.VMEM((64, 4), jnp.float32),
                            pltpu.VMEM((32, 4), jnp.float32),
                            pltpu.VMEM((16, 4), jnp.float32),
                            pltpu.VMEM((8, 4), jnp.float32)],
        ),
        compiler_params=pltpu.CompilerParams(
            # cross-tile stats accumulators + phase chaining => both sequential
            # TODO(synk): split the tile axis across v7x's two TensorCores.
            dimension_semantics=("arbitrary", "arbitrary"),
            vmem_limit_bytes=_VMEM_LIMIT),
        cost_estimate=pl.CostEstimate(
            flops=stats_flops * r_pad,
            transcendentals=0,
            bytes_accessed=4 * 4 * c * r_pad + param_bytes),
    )(x_pad, w1, wenc1, wr1b, wenc2, wr2b, vec_s)

    # ------------------ fold BN scale/shift into the conv weights -----------
    sc1a, sh1a = ab[0:64, 0:1], ab[0:64, 4:5]
    sc1b, sh1b = ab[0:32, 1:2], ab[0:32, 5:6]
    sc2a, sh2a = ab[0:16, 2:3], ab[0:16, 6:7]
    sc2b, sh2b = ab[0:8, 3:4], ab[0:8, 7:8]

    bf16 = jnp.bfloat16
    w1_b = w1.astype(bf16)
    wenc1_f = jnp.concatenate([ws1, wr1a * sc1a], axis=0).astype(bf16)   # (96,128)
    wr1b_f = (wr1b * sc1b).astype(bf16)                                  # (32, 64)
    wenc2_f = jnp.concatenate([ws2, wr2a * sc2a], axis=0).astype(bf16)   # (24, 32)
    wr2b_f = (wr2b * sc2b).astype(bf16)                                  # (8, 16)

    # fused heads: one (12,8) matmul + one block-diagonal (8,12) matmul
    # (output padded to 8 rows so the store stream is fully unmasked)
    wh1 = jnp.concatenate([w2a, w3a, w4a], axis=0)          # (12, 8)
    bh1 = jnp.concatenate([b2a, b3a, b4a], axis=0)          # (12, 1)
    wh2 = jnp.zeros((8, 12), jnp.float32)
    wh2 = wh2.at[0:1, 0:4].set(w2b)
    wh2 = wh2.at[1:3, 4:8].set(w3b)
    wh2 = wh2.at[3:5, 8:12].set(w4b)
    bh2 = jnp.concatenate([b2b, b3b, b4b], axis=0)          # (5, 1) -> padded col
    wh1_b = wh1.astype(bf16)
    wh2_b = wh2.astype(bf16)

    benc1 = jnp.concatenate([bs1, sh1a], axis=0)            # (96, 1)
    benc2 = jnp.concatenate([bs2, sh2a], axis=0)            # (24, 1)
    vec_a = jnp.concatenate(
        [_pad_col(b1), _pad_col(benc1), _pad_col(sh1b), _pad_col(benc2),
         _pad_col(sh2b), _pad_col(bh1), _pad_col(bh2), zero_col], axis=1)  # (128,8)

    # ------------------ pass 2: forward apply (bf16 MXU, parallel tiles) ----
    y_pad = pl.pallas_call(
        _apply_kernel,
        out_shape=jax.ShapeDtypeStruct((8, r_pad), jnp.float32),
        grid_spec=pltpu.PrefetchScalarGridSpec(
            num_scalar_prefetch=0,
            grid=(n_tiles,),
            in_specs=[
                pl.BlockSpec((c, tr), lambda i: (0, i)),
                pl.BlockSpec((128, c), lambda i: (0, 0)),
                pl.BlockSpec((96, 128), lambda i: (0, 0)),
                pl.BlockSpec((32, 64), lambda i: (0, 0)),
                pl.BlockSpec((24, 32), lambda i: (0, 0)),
                pl.BlockSpec((8, 16), lambda i: (0, 0)),
                pl.BlockSpec((12, 8), lambda i: (0, 0)),
                pl.BlockSpec((8, 12), lambda i: (0, 0)),
                pl.BlockSpec((128, 8), lambda i: (0, 0)),
            ],
            out_specs=pl.BlockSpec((8, tr), lambda i: (0, i)),
        ),
        compiler_params=pltpu.CompilerParams(
            dimension_semantics=("parallel",),   # shards tiles across v7x's 2 TCs
            vmem_limit_bytes=_VMEM_LIMIT),
        cost_estimate=pl.CostEstimate(
            flops=(trunk_flops + 2 * (12 * 8 + 8 * 12)) * r_pad,
            transcendentals=0,
            bytes_accessed=4 * (c + 8) * r_pad + param_bytes),
    )(x_pad, w1_b, wenc1_f, wr1b_f, wenc2_f, wr2b_f, wh1_b, wh2_b, vec_a)

    # ------------------ unpack lane-dense output slab ------------------------
    y_cr = y_pad[0:5, :r]                                            # (5, R)
    y1_ncl = jnp.transpose(y_cr[0:1].reshape(1, n, l), (1, 0, 2))    # (N,1,L)
    y2 = jnp.transpose(y_cr[1:3].reshape(2, n, l), (1, 0, 2))        # (N,2,L)
    y3 = jnp.transpose(y_cr[3:5].reshape(2, n, l), (1, 0, 2))        # (N,2,L)
    # torch's y1.squeeze() removes all singleton dims -> (N, L) for N, L > 1.
    return jnp.squeeze(y1_ncl), y2, y3


# ---------------------------------------------------------------------------
# Synthetic parameters (PyTorch layout: Conv1d weight (out,in), bias (out,1),
# BatchNorm gamma/beta (c,1)) and a pure-JAX reference of the original math.
# ---------------------------------------------------------------------------
def make_params(key, n_features):
    keys = iter(jax.random.split(key, 64))

    def w(shape, scale=0.1):
        return (scale * jax.random.normal(next(keys), shape)).astype(jnp.float32)

    def conv(cin, cout, bias=True):
        W = w((cout, cin))
        b = w((cout, 1), 0.05) if bias else None
        return W, b

    def bn(cc):
        gamma = (1.0 + 0.1 * jax.random.normal(next(keys), (cc, 1))).astype(jnp.float32)
        beta = w((cc, 1), 0.05)
        return gamma, beta

    w1, b1 = conv(n_features, 128)

    ws1, bs1 = conv(128, 32)                    # Encoder(128,32).skip
    wr1a, _ = conv(128, 64, bias=False)
    g1a, be1a = bn(64)
    wr1b, _ = conv(64, 32, bias=False)
    g1b, be1b = bn(32)

    ws2, bs2 = conv(32, 8)                      # Encoder(32,8).skip
    wr2a, _ = conv(32, 16, bias=False)
    g2a, be2a = bn(16)
    wr2b, _ = conv(16, 8, bias=False)
    g2b, be2b = bn(8)

    w2a, b2a = conv(8, 4)
    w2b, b2b = conv(4, 1)                       # fc_2
    w3a, b3a = conv(8, 4)
    w3b, b3b = conv(4, 2)                       # fc_3
    w4a, b4a = conv(8, 4)
    w4b, b4b = conv(4, 2)                       # fc_4

    return (w1, b1,
            ws1, bs1, wr1a, g1a, be1a, wr1b, g1b, be1b,
            ws2, bs2, wr2a, g2a, be2a, wr2b, g2b, be2b,
            w2a, b2a, w2b, b2b,
            w3a, b3a, w3b, b3b,
            w4a, b4a, w4b, b4b)


def reference_forward(x_ncl, params):
    """Pure-JAX reference: unfused original math, two-pass BN, highest precision."""
    (w1, b1,
     ws1, bs1, wr1a, g1a, be1a, wr1b, g1b, be1b,
     ws2, bs2, wr2a, g2a, be2a, wr2b, g2b, be2b,
     w2a, b2a, w2b, b2b,
     w3a, b3a, w3b, b3b,
     w4a, b4a, w4b, b4b) = params
    n, c, l = x_ncl.shape
    x = jnp.transpose(x_ncl, (1, 0, 2)).reshape(c, n * l)
    mm = functools.partial(jnp.dot, precision=jax.lax.Precision.HIGHEST)

    def bn_train(z, g, b):
        mean = jnp.mean(z, axis=1, keepdims=True)
        var = jnp.mean((z - mean) ** 2, axis=1, keepdims=True)
        return (z - mean) * jax.lax.rsqrt(var + EPS) * g + b

    h = jnp.maximum(mm(w1, x) + b1, 0.0)
    skip = mm(ws1, h) + bs1
    res = jnp.maximum(bn_train(mm(wr1a, h), g1a, be1a), 0.0)
    res = bn_train(mm(wr1b, res), g1b, be1b)
    h = jnp.maximum(skip + res, 0.0)
    skip = mm(ws2, h) + bs2
    res = jnp.maximum(bn_train(mm(wr2a, h), g2a, be2a), 0.0)
    res = bn_train(mm(wr2b, res), g2b, be2b)
    h = jnp.maximum(skip + res, 0.0)

    def head(wa, ba, wb, bb):
        t = jnp.maximum(mm(wa, h) + ba, 0.0)
        return mm(wb, t) + bb

    def to_ncl(y):
        return jnp.transpose(y.reshape(y.shape[0], n, l), (1, 0, 2))

    y1 = to_ncl(head(w2a, b2a, w2b, b2b))
    y2 = to_ncl(head(w3a, b3a, w3b, b3b))
    y3 = to_ncl(head(w4a, b4a, w4b, b4b))
    return jnp.squeeze(y1), y2, y3


if __name__ == "__main__":
    key = jax.random.PRNGKey(0)
    k_x, k_p, k_x2 = jax.random.split(key, 3)

    # The apply pass feeds the MXU bf16 operands (f32 accumulation), so the
    # comparison against the f32 "HIGHEST" reference uses a bf16-appropriate
    # tolerance; the BN statistics pass stays fully f32.
    RTOL = ATOL = 5e-2

    # Small shape (single row-tile path), matching the module's expected input.
    n_batch, n_features, length = 2, 16, 8
    x = jax.random.normal(k_x, (n_batch, n_features, length), dtype=jnp.float32)
    params = make_params(k_p, n_features)

    y1, y2, y3 = listnet_forward(x, params)
    jax.block_until_ready((y1, y2, y3))

    r1, r2, r3 = reference_forward(x, params)
    assert y1.shape == (n_batch, length)
    assert y2.shape == (n_batch, 2, length) and y3.shape == (n_batch, 2, length)
    for got, ref in ((y1, r1), (y2, r2), (y3, r3)):
        if not jnp.allclose(got, ref, rtol=RTOL, atol=ATOL):
            raise AssertionError("Pallas kernel output mismatch vs JAX reference")

    # Larger shape: exercises the multi-tile grid, last-tile row masking and
    # the cross-tile BatchNorm statistics accumulators
    # (R = 3*1600 = 4800 -> 2 tiles of 4096 rows, last tile partial).
    n_batch2, length2 = 3, 1600
    x2 = jax.random.normal(k_x2, (n_batch2, n_features, length2), dtype=jnp.float32)
    z1, z2, z3 = listnet_forward(x2, params)
    jax.block_until_ready((z1, z2, z3))
    s1, s2, s3 = reference_forward(x2, params)
    for got, ref in ((z1, s1), (z2, s2), (z3, s3)):
        if not jnp.allclose(got, ref, rtol=RTOL, atol=ATOL):
            raise AssertionError("Pallas kernel output mismatch vs JAX reference (tiled)")

    print("KERNEL_OK")
</pallas_src>

<mosaic_0001>
module attributes {stable_mosaic.version = 11 : i64} {
  func.func @_stats_kernel(%arg0: i32, %arg1: i32, %arg2: memref<16x128xf32, #tpu.memory_space<vmem>>, %arg3: memref<128x16xf32, #tpu.memory_space<vmem>>, %arg4: memref<96x128xf32, #tpu.memory_space<vmem>>, %arg5: memref<32x64xf32, #tpu.memory_space<vmem>>, %arg6: memref<24x32xf32, #tpu.memory_space<vmem>>, %arg7: memref<8x16xf32, #tpu.memory_space<vmem>>, %arg8: memref<128x16xf32, #tpu.memory_space<vmem>>, %arg9: memref<128x8xf32, #tpu.memory_space<vmem>>, %arg10: memref<64x4xf32, #tpu.memory_space<vmem>>, %arg11: memref<32x4xf32, #tpu.memory_space<vmem>>, %arg12: memref<16x4xf32, #tpu.memory_space<vmem>>, %arg13: memref<8x4xf32, #tpu.memory_space<vmem>>) attributes {dimension_semantics = [#tpu.dimension_semantics<arbitrary>, #tpu.dimension_semantics<arbitrary>], iteration_bounds = array<i64: 4, 1>, scalar_prefetch = 0 : i64, scratch_operands = 4 : i64, tpu.core_type = #tpu.core_type<tc>, window_params = [{transform_indices = @transform_0, window_bounds = array<i64: 16, 128>}, {pipeline_mode = #tpu.pipeline_mode<synchronous>, transform_indices = @transform_1, window_bounds = array<i64: 128, 16>}, {pipeline_mode = #tpu.pipeline_mode<synchronous>, transform_indices = @transform_2, window_bounds = array<i64: 96, 128>}, {pipeline_mode = #tpu.pipeline_mode<synchronous>, transform_indices = @transform_3, window_bounds = array<i64: 32, 64>}, {pipeline_mode = #tpu.pipeline_mode<synchronous>, transform_indices = @transform_4, window_bounds = array<i64: 24, 32>}, {pipeline_mode = #tpu.pipeline_mode<synchronous>, transform_indices = @transform_5, window_bounds = array<i64: 8, 16>}, {pipeline_mode = #tpu.pipeline_mode<synchronous>, transform_indices = @transform_6, window_bounds = array<i64: 128, 16>}, {pipeline_mode = #tpu.pipeline_mode<synchronous>, transform_indices = @transform_7, window_bounds = array<i64: 128, 8>}]} {
    %c0_i32 = arith.constant 0 : i32
    %0 = arith.cmpi eq, %arg0, %c0_i32 : i32
    %c0_i32_0 = arith.constant 0 : i32
    %1 = arith.cmpi eq, %arg1, %c0_i32_0 : i32
    %2 = arith.andi %0, %1 : i1
    %3 = arith.extui %2 : i1 to i32
    %c0_i32_1 = arith.constant 0 : i32
    %4 = arith.cmpi ne, %3, %c0_i32_1 : i32
    scf.if %4 {
      %cst_24 = arith.constant 0.000000e+00 : f32
      %50 = vector.broadcast %cst_24 : f32 to vector<64x4xf32>
      %c0_25 = arith.constant 0 : index
      %c0_26 = arith.constant 0 : index
      %51 = vector.load %arg10[%c0_25, %c0_26] : memref<64x4xf32, #tpu.memory_space<vmem>>, vector<64x4xf32>
      tpu.vector_store %arg10[%c0_25, %c0_26], %50 {strides = array<i32>} : memref<64x4xf32, #tpu.memory_space<vmem>>, vector<64x4xf32>,
      %cst_27 = arith.constant 0.000000e+00 : f32
      %52 = vector.broadcast %cst_27 : f32 to vector<32x4xf32>
      %c0_28 = arith.constant 0 : index
      %c0_29 = arith.constant 0 : index
      %53 = vector.load %arg11[%c0_28, %c0_29] : memref<32x4xf32, #tpu.memory_space<vmem>>, vector<32x4xf32>
      tpu.vector_store %arg11[%c0_28, %c0_29], %52 {strides = array<i32>} : memref<32x4xf32, #tpu.memory_space<vmem>>, vector<32x4xf32>,
      %cst_30 = arith.constant 0.000000e+00 : f32
      %54 = vector.broadcast %cst_30 : f32 to vector<16x4xf32>
      %c0_31 = arith.constant 0 : index
      %c0_32 = arith.constant 0 : index
      %55 = vector.load %arg12[%c0_31, %c0_32] : memref<16x4xf32, #tpu.memory_space<vmem>>, vector<16x4xf32>
      tpu.vector_store %arg12[%c0_31, %c0_32], %54 {strides = array<i32>} : memref<16x4xf32, #tpu.memory_space<vmem>>, vector<16x4xf32>,
      %cst_33 = arith.constant 0.000000e+00 : f32
      %56 = vector.broadcast %cst_33 : f32 to vector<8x4xf32>
      %c0_34 = arith.constant 0 : index
      %c0_35 = arith.constant 0 : index
      %57 = vector.load %arg13[%c0_34, %c0_35] : memref<8x4xf32, #tpu.memory_space<vmem>>, vector<8x4xf32>
      tpu.vector_store %arg13[%c0_34, %c0_35], %56 {strides = array<i32>} : memref<8x4xf32, #tpu.memory_space<vmem>>, vector<8x4xf32>,
    } else {
    }
    %c1_i32 = arith.constant 1 : i32
    %5 = arith.cmpi eq, %arg0, %c1_i32 : i32
    %c0_i32_2 = arith.constant 0 : i32
    %6 = arith.cmpi eq, %arg1, %c0_i32_2 : i32
    %7 = arith.andi %5, %6 : i1
    %8 = arith.extui %7 : i1 to i32
    %c0_i32_3 = arith.constant 0 : i32
    %9 = arith.cmpi ne, %8, %c0_i32_3 : i32
    scf.if %9 {
      %c0_24 = arith.constant 0 : index
      %c4 = arith.constant 4 : index
      %50 = vector.load %arg8[%c0_24, %c4] : memref<128x16xf32, #tpu.memory_space<vmem>>, vector<64x1xf32>
      %c0_25 = arith.constant 0 : index
      %c8 = arith.constant 8 : index
      %51 = vector.load %arg8[%c0_25, %c8] : memref<128x16xf32, #tpu.memory_space<vmem>>, vector<64x1xf32>
      %c0_26 = arith.constant 0 : index
      %c0_27 = arith.constant 0 : index
      %52 = vector.load %arg10[%c0_26, %c0_27] : memref<64x4xf32, #tpu.memory_space<vmem>>, vector<64x1xf32>
      %cst_28 = arith.constant 6.250000e-02 : f32
      %53 = vector.broadcast %cst_28 : f32 to vector<64x1xf32>
      %54 = arith.mulf %52, %53 : vector<64x1xf32>
      %c0_29 = arith.constant 0 : index
      %c1 = arith.constant 1 : index
      %55 = vector.load %arg10[%c0_29, %c1] : memref<64x4xf32, #tpu.memory_space<vmem>>, vector<64x1xf32>
      %cst_30 = arith.constant 6.250000e-02 : f32
      %56 = vector.broadcast %cst_30 : f32 to vector<64x1xf32>
      %57 = arith.mulf %55, %56 : vector<64x1xf32>
      %58 = arith.mulf %54, %54 : vector<64x1xf32>
      %59 = arith.subf %57, %58 : vector<64x1xf32>
      %cst_31 = arith.constant 0.000000e+00 : f32
      %60 = vector.broadcast %cst_31 : f32 to vector<64x1xf32>
      %61 = arith.maximumf %59, %60 : vector<64x1xf32>
      %cst_32 = arith.constant 9.99999974E-6 : f32
      %62 = vector.broadcast %cst_32 : f32 to vector<64x1xf32>
      %63 = arith.addf %61, %62 : vector<64x1xf32>
      %64 = math.rsqrt %63 : vector<64x1xf32>
      %65 = arith.mulf %50, %64 : vector<64x1xf32>
      %c0_33 = arith.constant 0 : index
      %c2 = arith.constant 2 : index
      %66 = vector.load %arg10[%c0_33, %c2] : memref<64x4xf32, #tpu.memory_space<vmem>>, vector<64x1xf32>
      tpu.vector_store %arg10[%c0_33, %c2], %65 {strides = array<i32>} : memref<64x4xf32, #tpu.memory_space<vmem>>, vector<64x1xf32>,
      %67 = arith.mulf %54, %65 : vector<64x1xf32>
      %68 = arith.subf %51, %67 : vector<64x1xf32>
      %c0_34 = arith.constant 0 : index
      %c3 = arith.constant 3 : index
      %69 = vector.load %arg10[%c0_34, %c3] : memref<64x4xf32, #tpu.memory_space<vmem>>, vector<64x1xf32>
      tpu.vector_store %arg10[%c0_34, %c3], %68 {strides = array<i32>} : memref<64x4xf32, #tpu.memory_space<vmem>>, vector<64x1xf32>,
    } else {
    }
    %c2_i32 = arith.constant 2 : i32
    %10 = arith.cmpi eq, %arg0, %c2_i32 : i32
    %c0_i32_4 = arith.constant 0 : i32
    %11 = arith.cmpi eq, %arg1, %c0_i32_4 : i32
    %12 = arith.andi %10, %11 : i1
    %13 = arith.extui %12 : i1 to i32
    %c0_i32_5 = arith.constant 0 : i32
    %14 = arith.cmpi ne, %13, %c0_i32_5 : i32
    scf.if %14 {
      %c0_24 = arith.constant 0 : index
      %c5 = arith.constant 5 : index
      %50 = vector.load %arg8[%c0_24, %c5] : memref<128x16xf32, #tpu.memory_space<vmem>>, vector<32x1xf32>
      %c0_25 = arith.constant 0 : index
      %c9 = arith.constant 9 : index
      %51 = vector.load %arg8[%c0_25, %c9] : memref<128x16xf32, #tpu.memory_space<vmem>>, vector<32x1xf32>
      %c0_26 = arith.constant 0 : index
      %c0_27 = arith.constant 0 : index
      %52 = vector.load %arg11[%c0_26, %c0_27] : memref<32x4xf32, #tpu.memory_space<vmem>>, vector<32x1xf32>
      %cst_28 = arith.constant 6.250000e-02 : f32
      %53 = vector.broadcast %cst_28 : f32 to vector<32x1xf32>
      %54 = arith.mulf %52, %53 : vector<32x1xf32>
      %c0_29 = arith.constant 0 : index
      %c1 = arith.constant 1 : index
      %55 = vector.load %arg11[%c0_29, %c1] : memref<32x4xf32, #tpu.memory_space<vmem>>, vector<32x1xf32>
      %cst_30 = arith.constant 6.250000e-02 : f32
      %56 = vector.broadcast %cst_30 : f32 to vector<32x1xf32>
      %57 = arith.mulf %55, %56 : vector<32x1xf32>
      %58 = arith.mulf %54, %54 : vector<32x1xf32>
      %59 = arith.subf %57, %58 : vector<32x1xf32>
      %cst_31 = arith.constant 0.000000e+00 : f32
      %60 = vector.broadcast %cst_31 : f32 to vector<32x1xf32>
      %61 = arith.maximumf %59, %60 : vector<32x1xf32>
      %cst_32 = arith.constant 9.99999974E-6 : f32
      %62 = vector.broadcast %cst_32 : f32 to vector<32x1xf32>
      %63 = arith.addf %61, %62 : vector<32x1xf32>
      %64 = math.rsqrt %63 : vector<32x1xf32>
      %65 = arith.mulf %50, %64 : vector<32x1xf32>
      %c0_33 = arith.constant 0 : index
      %c2 = arith.constant 2 : index
      %66 = vector.load %arg11[%c0_33, %c2] : memref<32x4xf32, #tpu.memory_space<vmem>>, vector<32x1xf32>
      tpu.vector_store %arg11[%c0_33, %c2], %65 {strides = array<i32>} : memref<32x4xf32, #tpu.memory_space<vmem>>, vector<32x1xf32>,
      %67 = arith.mulf %54, %65 : vector<32x1xf32>
      %68 = arith.subf %51, %67 : vector<32x1xf32>
      %c0_34 = arith.constant 0 : index
      %c3 = arith.constant 3 : index
      %69 = vector.load %arg11[%c0_34, %c3] : memref<32x4xf32, #tpu.memory_space<vmem>>, vector<32x1xf32>
      tpu.vector_store %arg11[%c0_34, %c3], %68 {strides = array<i32>} : memref<32x4xf32, #tpu.memory_space<vmem>>, vector<32x1xf32>,
    } else {
    }
    %c3_i32 = arith.constant 3 : i32
    %15 = arith.cmpi eq, %arg0, %c3_i32 : i32
    %c0_i32_6 = arith.constant 0 : i32
    %16 = arith.cmpi eq, %arg1, %c0_i32_6 : i32
    %17 = arith.andi %15, %16 : i1
    %18 = arith.extui %17 : i1 to i32
    %c0_i32_7 = arith.constant 0 : i32
    %19 = arith.cmpi ne, %18, %c0_i32_7 : i32
    scf.if %19 {
      %c0_24 = arith.constant 0 : index
      %c6 = arith.constant 6 : index
      %50 = vector.load %arg8[%c0_24, %c6] : memref<128x16xf32, #tpu.memory_space<vmem>>, vector<16x1xf32>
      %c0_25 = arith.constant 0 : index
      %c10 = arith.constant 10 : index
      %51 = vector.load %arg8[%c0_25, %c10] : memref<128x16xf32, #tpu.memory_space<vmem>>, vector<16x1xf32>
      %c0_26 = arith.constant 0 : index
      %c0_27 = arith.constant 0 : index
      %52 = vector.load %arg12[%c0_26, %c0_27] : memref<16x4xf32, #tpu.memory_space<vmem>>, vector<16x1xf32>
      %cst_28 = arith.constant 6.250000e-02 : f32
      %53 = vector.broadcast %cst_28 : f32 to vector<16x1xf32>
      %54 = arith.mulf %52, %53 : vector<16x1xf32>
      %c0_29 = arith.constant 0 : index
      %c1 = arith.constant 1 : index
      %55 = vector.load %arg12[%c0_29, %c1] : memref<16x4xf32, #tpu.memory_space<vmem>>, vector<16x1xf32>
      %cst_30 = arith.constant 6.250000e-02 : f32
      %56 = vector.broadcast %cst_30 : f32 to vector<16x1xf32>
      %57 = arith.mulf %55, %56 : vector<16x1xf32>
      %58 = arith.mulf %54, %54 : vector<16x1xf32>
      %59 = arith.subf %57, %58 : vector<16x1xf32>
      %cst_31 = arith.constant 0.000000e+00 : f32
      %60 = vector.broadcast %cst_31 : f32 to vector<16x1xf32>
      %61 = arith.maximumf %59, %60 : vector<16x1xf32>
      %cst_32 = arith.constant 9.99999974E-6 : f32
      %62 = vector.broadcast %cst_32 : f32 to vector<16x1xf32>
      %63 = arith.addf %61, %62 : vector<16x1xf32>
      %64 = math.rsqrt %63 : vector<16x1xf32>
      %65 = arith.mulf %50, %64 : vector<16x1xf32>
      %c0_33 = arith.constant 0 : index
      %c2 = arith.constant 2 : index
      %66 = vector.load %arg12[%c0_33, %c2] : memref<16x4xf32, #tpu.memory_space<vmem>>, vector<16x1xf32>
      tpu.vector_store %arg12[%c0_33, %c2], %65 {strides = array<i32>} : memref<16x4xf32, #tpu.memory_space<vmem>>, vector<16x1xf32>,
      %67 = arith.mulf %54, %65 : vector<16x1xf32>
      %68 = arith.subf %51, %67 : vector<16x1xf32>
      %c0_34 = arith.constant 0 : index
      %c3 = arith.constant 3 : index
      %69 = vector.load %arg12[%c0_34, %c3] : memref<16x4xf32, #tpu.memory_space<vmem>>, vector<16x1xf32>
      tpu.vector_store %arg12[%c0_34, %c3], %68 {strides = array<i32>} : memref<16x4xf32, #tpu.memory_space<vmem>>, vector<16x1xf32>,
    } else {
    }
    %20 = tpu.iota {dimensions = array<i32: 1>} : vector<1x128xi32>
    %c128_i32 = arith.constant 128 : i32
    %21 = arith.muli %arg1, %c128_i32 : i32
    %22 = vector.broadcast %21 : i32 to vector<1x128xi32>
    %23 = arith.addi %20, %22 : vector<1x128xi32>
    %c16_i32 = arith.constant 16 : i32
    %24 = vector.broadcast %c16_i32 : i32 to vector<1x128xi32>
    %25 = arith.cmpi slt, %23, %24 : vector<1x128xi32>
    %26 = arith.extui %25 : vector<1x128xi1> to vector<1x128xi32>
    %27 = arith.sitofp %26 : vector<1x128xi32> to vector<1x128xf32>
    %c0 = arith.constant 0 : index
    %c0_8 = arith.constant 0 : index
    %28 = vector.load %arg2[%c0, %c0_8] : memref<16x128xf32, #tpu.memory_space<vmem>>, vector<16x128xf32>
    %c0_9 = arith.constant 0 : index
    %c0_10 = arith.constant 0 : index
    %29 = vector.load %arg3[%c0_9, %c0_10] : memref<128x16xf32, #tpu.memory_space<vmem>>, vector<128x16xf32>
    %cst = arith.constant dense<0.000000e+00> : vector<128x128xf32>
    %30 = tpu.matmul %29, %28, %cst {dimension_numbers = #tpu.dot_dimension_numbers<[1], [0], [0], [1], [0, 0, 1, 1], [], []>} : vector<128x16xf32>, vector<16x128xf32>, vector<128x128xf32> -> vector<128x128xf32>
    %c0_11 = arith.constant 0 : index
    %c0_12 = arith.constant 0 : index
    %31 = vector.load %arg8[%c0_11, %c0_12] : memref<128x16xf32, #tpu.memory_space<vmem>>, vector<128x1xf32>
    %32 = vector.broadcast %31 : vector<128x1xf32> to vector<128x128xf32>
    %33 = arith.addf %30, %32 : vector<128x128xf32>
    %cst_13 = arith.constant 0.000000e+00 : f32
    %34 = vector.broadcast %cst_13 : f32 to vector<128x128xf32>
    %35 = arith.maximumf %33, %34 : vector<128x128xf32>
    %c0_14 = arith.constant 0 : index
    %c0_15 = arith.constant 0 : index
    %36 = vector.load %arg4[%c0_14, %c0_15] : memref<96x128xf32, #tpu.memory_space<vmem>>, vector<96x128xf32>
    %cst_16 = arith.constant dense<0.000000e+00> : vector<96x128xf32>
    %37 = tpu.matmul %36, %35, %cst_16 {dimension_numbers = #tpu.dot_dimension_numbers<[1], [0], [0], [1], [0, 0, 1, 1], [], []>} : vector<96x128xf32>, vector<128x128xf32>, vector<96x128xf32> -> vector<96x128xf32>
    %38 = vector.extract_strided_slice %37 {offsets = [32, 0], sizes = [64, 128], strides = [1, 1]} : vector<96x128xf32> to vector<64x128xf32>
    %c0_i32_17 = arith.constant 0 : i32
    %39 = arith.cmpi eq, %arg0, %c0_i32_17 : i32
    %40 = arith.extui %39 : i1 to i32
    %c0_i32_18 = arith.constant 0 : i32
    %41 = arith.cmpi ne, %40, %c0_i32_18 : i32
    scf.if %41 {
      %c0_i32_24 = arith.constant 0 : i32
      %50 = arith.cmpi eq, %arg1, %c0_i32_24 : i32
      %51 = arith.extui %50 : i1 to i32
      %c0_i32_25 = arith.constant 0 : i32
      %52 = arith.cmpi ne, %51, %c0_i32_25 : i32
      scf.if %52 {
        %56 = vector.broadcast %27 : vector<1x128xf32> to vector<64x128xf32>
        %57 = arith.mulf %38, %56 : vector<64x128xf32>
        %c0_27 = arith.constant 0 : index
        %c0_28 = arith.constant 0 : index
        %58 = vector.load %arg10[%c0_27, %c0_28] : memref<64x4xf32, #tpu.memory_space<vmem>>, vector<64x1xf32>
        %cst_29 = arith.constant dense<0.000000e+00> : vector<64xf32>
        %59 = vector.multi_reduction <add>, %57, %cst_29 [1] : vector<64x128xf32> to vector<64xf32>
        %60 = vector.shape_cast %59 : vector<64xf32> to vector<64x1xf32>
        %61 = arith.addf %58, %60 : vector<64x1xf32>
        %c0_30 = arith.constant 0 : index
        %c0_31 = arith.constant 0 : index
        %62 = vector.load %arg10[%c0_30, %c0_31] : memref<64x4xf32, #tpu.memory_space<vmem>>, vector<64x1xf32>
        tpu.vector_store %arg10[%c0_30, %c0_31], %61 {strides = array<i32>} : memref<64x4xf32, #tpu.memory_space<vmem>>, vector<64x1xf32>,
        %c0_32 = arith.constant 0 : index
        %c1 = arith.constant 1 : index
        %63 = vector.load %arg10[%c0_32, %c1] : memref<64x4xf32, #tpu.memory_space<vmem>>, vector<64x1xf32>
        %64 = arith.mulf %57, %38 : vector<64x128xf32>
        %cst_33 = arith.constant dense<0.000000e+00> : vector<64xf32>
        %65 = vector.multi_reduction <add>, %64, %cst_33 [1] : vector<64x128xf32> to vector<64xf32>
        %66 = vector.shape_cast %65 : vector<64xf32> to vector<64x1xf32>
        %67 = arith.addf %63, %66 : vector<64x1xf32>
        %c0_34 = arith.constant 0 : index
        %c1_35 = arith.constant 1 : index
        %68 = vector.load %arg10[%c0_34, %c1_35] : memref<64x4xf32, #tpu.memory_space<vmem>>, vector<64x1xf32>
        tpu.vector_store %arg10[%c0_34, %c1_35], %67 {strides = array<i32>} : memref<64x4xf32, #tpu.memory_space<vmem>>, vector<64x1xf32>,
      } else {
      }
      %true = arith.constant true
      %53 = arith.xori %50, %true : i1
      %54 = arith.extui %53 : i1 to i32
      %c0_i32_26 = arith.constant 0 : i32
      %55 = arith.cmpi ne, %54, %c0_i32_26 : i32
      scf.if %55 {
        %c0_27 = arith.constant 0 : index
        %c0_28 = arith.constant 0 : index
        %56 = vector.load %arg10[%c0_27, %c0_28] : memref<64x4xf32, #tpu.memory_space<vmem>>, vector<64x1xf32>
        %cst_29 = arith.constant dense<0.000000e+00> : vector<64xf32>
        %57 = vector.multi_reduction <add>, %38, %cst_29 [1] : vector<64x128xf32> to vector<64xf32>
        %58 = vector.shape_cast %57 : vector<64xf32> to vector<64x1xf32>
        %59 = arith.addf %56, %58 : vector<64x1xf32>
        %c0_30 = arith.constant 0 : index
        %c0_31 = arith.constant 0 : index
        %60 = vector.load %arg10[%c0_30, %c0_31] : memref<64x4xf32, #tpu.memory_space<vmem>>, vector<64x1xf32>
        tpu.vector_store %arg10[%c0_30, %c0_31], %59 {strides = array<i32>} : memref<64x4xf32, #tpu.memory_space<vmem>>, vector<64x1xf32>,
        %c0_32 = arith.constant 0 : index
        %c1 = arith.constant 1 : index
        %61 = vector.load %arg10[%c0_32, %c1] : memref<64x4xf32, #tpu.memory_space<vmem>>, vector<64x1xf32>
        %62 = arith.mulf %38, %38 : vector<64x128xf32>
        %cst_33 = arith.constant dense<0.000000e+00> : vector<64xf32>
        %63 = vector.multi_reduction <add>, %62, %cst_33 [1] : vector<64x128xf32> to vector<64xf32>
        %64 = vector.shape_cast %63 : vector<64xf32> to vector<64x1xf32>
        %65 = arith.addf %61, %64 : vector<64x1xf32>
        %c0_34 = arith.constant 0 : index
        %c1_35 = arith.constant 1 : index
        %66 = vector.load %arg10[%c0_34, %c1_35] : memref<64x4xf32, #tpu.memory_space<vmem>>, vector<64x1xf32>
        tpu.vector_store %arg10[%c0_34, %c1_35], %65 {strides = array<i32>} : memref<64x4xf32, #tpu.memory_space<vmem>>, vector<64x1xf32>,
      } else {
      }
    } else {
    }
    %c1_i32_19 = arith.constant 1 : i32
    %42 = arith.cmpi sge, %arg0, %c1_i32_19 : i32
    %43 = arith.extui %42 : i1 to i32
    %c0_i32_20 = arith.constant 0 : i32
    %44 = arith.cmpi ne, %43, %c0_i32_20 : i32
    scf.if %44 {
      %c0_24 = arith.constant 0 : index
      %c2 = arith.constant 2 : index
      %50 = vector.load %arg10[%c0_24, %c2] : memref<64x4xf32, #tpu.memory_space<vmem>>, vector<64x1xf32>
      %51 = vector.broadcast %50 : vector<64x1xf32> to vector<64x128xf32>
      %52 = arith.mulf %38, %51 : vector<64x128xf32>
      %c0_25 = arith.constant 0 : index
      %c3 = arith.constant 3 : index
      %53 = vector.load %arg10[%c0_25, %c3] : memref<64x4xf32, #tpu.memory_space<vmem>>, vector<64x1xf32>
      %54 = vector.broadcast %53 : vector<64x1xf32> to vector<64x128xf32>
      %55 = arith.addf %52, %54 : vector<64x128xf32>
      %cst_26 = arith.constant 0.000000e+00 : f32
      %56 = vector.broadcast %cst_26 : f32 to vector<64x128xf32>
      %57 = arith.maximumf %55, %56 : vector<64x128xf32>
      %c0_27 = arith.constant 0 : index
      %c0_28 = arith.constant 0 : index
      %58 = vector.load %arg5[%c0_27, %c0_28] : memref<32x64xf32, #tpu.memory_space<vmem>>, vector<32x64xf32>
      %cst_29 = arith.constant dense<0.000000e+00> : vector<32x128xf32>
      %59 = tpu.matmul %58, %57, %cst_29 {dimension_numbers = #tpu.dot_dimension_numbers<[1], [0], [0], [1], [0, 0, 1, 1], [], []>} : vector<32x64xf32>, vector<64x128xf32>, vector<32x128xf32> -> vector<32x128xf32>
      %c1_i32_30 = arith.constant 1 : i32
      %60 = arith.cmpi eq, %arg0, %c1_i32_30 : i32
      %61 = arith.extui %60 : i1 to i32
      %c0_i32_31 = arith.constant 0 : i32
      %62 = arith.cmpi ne, %61, %c0_i32_31 : i32
      scf.if %62 {
        %c0_i32_34 = arith.constant 0 : i32
        %66 = arith.cmpi eq, %arg1, %c0_i32_34 : i32
        %67 = arith.extui %66 : i1 to i32
        %c0_i32_35 = arith.constant 0 : i32
        %68 = arith.cmpi ne, %67, %c0_i32_35 : i32
        scf.if %68 {
          %72 = vector.broadcast %27 : vector<1x128xf32> to vector<32x128xf32>
          %73 = arith.mulf %59, %72 : vector<32x128xf32>
          %c0_37 = arith.constant 0 : index
          %c0_38 = arith.constant 0 : index
          %74 = vector.load %arg11[%c0_37, %c0_38] : memref<32x4xf32, #tpu.memory_space<vmem>>, vector<32x1xf32>
          %cst_39 = arith.constant dense<0.000000e+00> : vector<32xf32>
          %75 = vector.multi_reduction <add>, %73, %cst_39 [1] : vector<32x128xf32> to vector<32xf32>
          %76 = vector.shape_cast %75 : vector<32xf32> to vector<32x1xf32>
          %77 = arith.addf %74, %76 : vector<32x1xf32>
          %c0_40 = arith.constant 0 : index
          %c0_41 = arith.constant 0 : index
          %78 = vector.load %arg11[%c0_40, %c0_41] : memref<32x4xf32, #tpu.memory_space<vmem>>, vector<32x1xf32>
          tpu.vector_store %arg11[%c0_40, %c0_41], %77 {strides = array<i32>} : memref<32x4xf32, #tpu.memory_space<vmem>>, vector<32x1xf32>,
          %c0_42 = arith.constant 0 : index
          %c1 = arith.constant 1 : index
          %79 = vector.load %arg11[%c0_42, %c1] : memref<32x4xf32, #tpu.memory_space<vmem>>, vector<32x1xf32>
          %80 = arith.mulf %73, %59 : vector<32x128xf32>
          %cst_43 = arith.constant dense<0.000000e+00> : vector<32xf32>
          %81 = vector.multi_reduction <add>, %80, %cst_43 [1] : vector<32x128xf32> to vector<32xf32>
          %82 = vector.shape_cast %81 : vector<32xf32> to vector<32x1xf32>
          %83 = arith.addf %79, %82 : vector<32x1xf32>
          %c0_44 = arith.constant 0 : index
          %c1_45 = arith.constant 1 : index
          %84 = vector.load %arg11[%c0_44, %c1_45] : memref<32x4xf32, #tpu.memory_space<vmem>>, vector<32x1xf32>
          tpu.vector_store %arg11[%c0_44, %c1_45], %83 {strides = array<i32>} : memref<32x4xf32, #tpu.memory_space<vmem>>, vector<32x1xf32>,
        } else {
        }
        %true = arith.constant true
        %69 = arith.xori %66, %true : i1
        %70 = arith.extui %69 : i1 to i32
        %c0_i32_36 = arith.constant 0 : i32
        %71 = arith.cmpi ne, %70, %c0_i32_36 : i32
        scf.if %71 {
          %c0_37 = arith.constant 0 : index
          %c0_38 = arith.constant 0 : index
          %72 = vector.load %arg11[%c0_37, %c0_38] : memref<32x4xf32, #tpu.memory_space<vmem>>, vector<32x1xf32>
          %cst_39 = arith.constant dense<0.000000e+00> : vector<32xf32>
          %73 = vector.multi_reduction <add>, %59, %cst_39 [1] : vector<32x128xf32> to vector<32xf32>
          %74 = vector.shape_cast %73 : vector<32xf32> to vector<32x1xf32>
          %75 = arith.addf %72, %74 : vector<32x1xf32>
          %c0_40 = arith.constant 0 : index
          %c0_41 = arith.constant 0 : index
          %76 = vector.load %arg11[%c0_40, %c0_41] : memref<32x4xf32, #tpu.memory_space<vmem>>, vector<32x1xf32>
          tpu.vector_store %arg11[%c0_40, %c0_41], %75 {strides = array<i32>} : memref<32x4xf32, #tpu.memory_space<vmem>>, vector<32x1xf32>,
          %c0_42 = arith.constant 0 : index
          %c1 = arith.constant 1 : index
          %77 = vector.load %arg11[%c0_42, %c1] : memref<32x4xf32, #tpu.memory_space<vmem>>, vector<32x1xf32>
          %78 = arith.mulf %59, %59 : vector<32x128xf32>
          %cst_43 = arith.constant dense<0.000000e+00> : vector<32xf32>
          %79 = vector.multi_reduction <add>, %78, %cst_43 [1] : vector<32x128xf32> to vector<32xf32>
          %80 = vector.shape_cast %79 : vector<32xf32> to vector<32x1xf32>
          %81 = arith.addf %77, %80 : vector<32x1xf32>
          %c0_44 = arith.constant 0 : index
          %c1_45 = arith.constant 1 : index
          %82 = vector.load %arg11[%c0_44, %c1_45] : memref<32x4xf32, #tpu.memory_space<vmem>>, vector<32x1xf32>
          tpu.vector_store %arg11[%c0_44, %c1_45], %81 {strides = array<i32>} : memref<32x4xf32, #tpu.memory_space<vmem>>, vector<32x1xf32>,
        } else {
        }
      } else {
      }
      %c2_i32_32 = arith.constant 2 : i32
      %63 = arith.cmpi sge, %arg0, %c2_i32_32 : i32
      %64 = arith.extui %63 : i1 to i32
      %c0_i32_33 = arith.constant 0 : i32
      %65 = arith.cmpi ne, %64, %c0_i32_33 : i32
      scf.if %65 {
        %66 = vector.extract_strided_slice %37 {offsets = [0, 0], sizes = [32, 128], strides = [1, 1]} : vector<96x128xf32> to vector<32x128xf32>
        %c0_34 = arith.constant 0 : index
        %c1 = arith.constant 1 : index
        %67 = vector.load %arg8[%c0_34, %c1] : memref<128x16xf32, #tpu.memory_space<vmem>>, vector<32x1xf32>
        %68 = vector.broadcast %67 : vector<32x1xf32> to vector<32x128xf32>
        %69 = arith.addf %66, %68 : vector<32x128xf32>
        %c0_35 = arith.constant 0 : index
        %c2_36 = arith.constant 2 : index
        %70 = vector.load %arg11[%c0_35, %c2_36] : memref<32x4xf32, #tpu.memory_space<vmem>>, vector<32x1xf32>
        %71 = vector.broadcast %70 : vector<32x1xf32> to vector<32x128xf32>
        %72 = arith.mulf %59, %71 : vector<32x128xf32>
        %73 = arith.addf %69, %72 : vector<32x128xf32>
        %c0_37 = arith.constant 0 : index
        %c3_38 = arith.constant 3 : index
        %74 = vector.load %arg11[%c0_37, %c3_38] : memref<32x4xf32, #tpu.memory_space<vmem>>, vector<32x1xf32>
        %75 = vector.broadcast %74 : vector<32x1xf32> to vector<32x128xf32>
        %76 = arith.addf %73, %75 : vector<32x128xf32>
        %cst_39 = arith.constant 0.000000e+00 : f32
        %77 = vector.broadcast %cst_39 : f32 to vector<32x128xf32>
        %78 = arith.maximumf %76, %77 : vector<32x128xf32>
        %c0_40 = arith.constant 0 : index
        %c0_41 = arith.constant 0 : index
        %79 = vector.load %arg6[%c0_40, %c0_41] : memref<24x32xf32, #tpu.memory_space<vmem>>, vector<24x32xf32>
        %cst_42 = arith.constant dense<0.000000e+00> : vector<24x128xf32>
        %80 = tpu.matmul %79, %78, %cst_42 {dimension_numbers = #tpu.dot_dimension_numbers<[1], [0], [0], [1], [0, 0, 1, 1], [], []>} : vector<24x32xf32>, vector<32x128xf32>, vector<24x128xf32> -> vector<24x128xf32>
        %81 = vector.extract_strided_slice %80 {offsets = [8, 0], sizes = [16, 128], strides = [1, 1]} : vector<24x128xf32> to vector<16x128xf32>
        %c2_i32_43 = arith.constant 2 : i32
        %82 = arith.cmpi eq, %arg0, %c2_i32_43 : i32
        %83 = arith.extui %82 : i1 to i32
        %c0_i32_44 = arith.constant 0 : i32
        %84 = arith.cmpi ne, %83, %c0_i32_44 : i32
        scf.if %84 {
          %c0_i32_47 = arith.constant 0 : i32
          %88 = arith.cmpi eq, %arg1, %c0_i32_47 : i32
          %89 = arith.extui %88 : i1 to i32
          %c0_i32_48 = arith.constant 0 : i32
          %90 = arith.cmpi ne, %89, %c0_i32_48 : i32
          scf.if %90 {
            %94 = vector.broadcast %27 : vector<1x128xf32> to vector<16x128xf32>
            %95 = arith.mulf %81, %94 : vector<16x128xf32>
            %c0_50 = arith.constant 0 : index
            %c0_51 = arith.constant 0 : index
            %96 = vector.load %arg12[%c0_50, %c0_51] : memref<16x4xf32, #tpu.memory_space<vmem>>, vector<16x1xf32>
            %cst_52 = arith.constant dense<0.000000e+00> : vector<16xf32>
            %97 = vector.multi_reduction <add>, %95, %cst_52 [1] : vector<16x128xf32> to vector<16xf32>
            %98 = vector.shape_cast %97 : vector<16xf32> to vector<16x1xf32>
            %99 = arith.addf %96, %98 : vector<16x1xf32>
            %c0_53 = arith.constant 0 : index
            %c0_54 = arith.constant 0 : index
            %100 = vector.load %arg12[%c0_53, %c0_54] : memref<16x4xf32, #tpu.memory_space<vmem>>, vector<16x1xf32>
            tpu.vector_store %arg12[%c0_53, %c0_54], %99 {strides = array<i32>} : memref<16x4xf32, #tpu.memory_space<vmem>>, vector<16x1xf32>,
            %c0_55 = arith.constant 0 : index
            %c1_56 = arith.constant 1 : index
            %101 = vector.load %arg12[%c0_55, %c1_56] : memref<16x4xf32, #tpu.memory_space<vmem>>, vector<16x1xf32>
            %102 = arith.mulf %95, %81 : vector<16x128xf32>
            %cst_57 = arith.constant dense<0.000000e+00> : vector<16xf32>
            %103 = vector.multi_reduction <add>, %102, %cst_57 [1] : vector<16x128xf32> to vector<16xf32>
            %104 = vector.shape_cast %103 : vector<16xf32> to vector<16x1xf32>
            %105 = arith.addf %101, %104 : vector<16x1xf32>
            %c0_58 = arith.constant 0 : index
            %c1_59 = arith.constant 1 : index
            %106 = vector.load %arg12[%c0_58, %c1_59] : memref<16x4xf32, #tpu.memory_space<vmem>>, vector<16x1xf32>
            tpu.vector_store %arg12[%c0_58, %c1_59], %105 {strides = array<i32>} : memref<16x4xf32, #tpu.memory_space<vmem>>, vector<16x1xf32>,
          } else {
          }
          %true = arith.constant true
          %91 = arith.xori %88, %true : i1
          %92 = arith.extui %91 : i1 to i32
          %c0_i32_49 = arith.constant 0 : i32
          %93 = arith.cmpi ne, %92, %c0_i32_49 : i32
          scf.if %93 {
            %c0_50 = arith.constant 0 : index
            %c0_51 = arith.constant 0 : index
            %94 = vector.load %arg12[%c0_50, %c0_51] : memref<16x4xf32, #tpu.memory_space<vmem>>, vector<16x1xf32>
            %cst_52 = arith.constant dense<0.000000e+00> : vector<16xf32>
            %95 = vector.multi_reduction <add>, %81, %cst_52 [1] : vector<16x128xf32> to vector<16xf32>
            %96 = vector.shape_cast %95 : vector<16xf32> to vector<16x1xf32>
            %97 = arith.addf %94, %96 : vector<16x1xf32>
            %c0_53 = arith.constant 0 : index
            %c0_54 = arith.constant 0 : index
            %98 = vector.load %arg12[%c0_53, %c0_54] : memref<16x4xf32, #tpu.memory_space<vmem>>, vector<16x1xf32>
            tpu.vector_store %arg12[%c0_53, %c0_54], %97 {strides = array<i32>} : memref<16x4xf32, #tpu.memory_space<vmem>>, vector<16x1xf32>,
            %c0_55 = arith.constant 0 : index
            %c1_56 = arith.constant 1 : index
            %99 = vector.load %arg12[%c0_55, %c1_56] : memref<16x4xf32, #tpu.memory_space<vmem>>, vector<16x1xf32>
            %100 = arith.mulf %81, %81 : vector<16x128xf32>
            %cst_57 = arith.constant dense<0.000000e+00> : vector<16xf32>
            %101 = vector.multi_reduction <add>, %100, %cst_57 [1] : vector<16x128xf32> to vector<16xf32>
            %102 = vector.shape_cast %101 : vector<16xf32> to vector<16x1xf32>
            %103 = arith.addf %99, %102 : vector<16x1xf32>
            %c0_58 = arith.constant 0 : index
            %c1_59 = arith.constant 1 : index
            %104 = vector.load %arg12[%c0_58, %c1_59] : memref<16x4xf32, #tpu.memory_space<vmem>>, vector<16x1xf32>
            tpu.vector_store %arg12[%c0_58, %c1_59], %103 {strides = array<i32>} : memref<16x4xf32, #tpu.memory_space<vmem>>, vector<16x1xf32>,
          } else {
          }
        } else {
        }
        %c3_i32_45 = arith.constant 3 : i32
        %85 = arith.cmpi eq, %arg0, %c3_i32_45 : i32
        %86 = arith.extui %85 : i1 to i32
        %c0_i32_46 = arith.constant 0 : i32
        %87 = arith.cmpi ne, %86, %c0_i32_46 : i32
        scf.if %87 {
          %c0_47 = arith.constant 0 : index
          %c2_48 = arith.constant 2 : index
          %88 = vector.load %arg12[%c0_47, %c2_48] : memref<16x4xf32, #tpu.memory_space<vmem>>, vector<16x1xf32>
          %89 = vector.broadcast %88 : vector<16x1xf32> to vector<16x128xf32>
          %90 = arith.mulf %81, %89 : vector<16x128xf32>
          %c0_49 = arith.constant 0 : index
          %c3_50 = arith.constant 3 : index
          %91 = vector.load %arg12[%c0_49, %c3_50] : memref<16x4xf32, #tpu.memory_space<vmem>>, vector<16x1xf32>
          %92 = vector.broadcast %91 : vector<16x1xf32> to vector<16x128xf32>
          %93 = arith.addf %90, %92 : vector<16x128xf32>
          %cst_51 = arith.constant 0.000000e+00 : f32
          %94 = vector.broadcast %cst_51 : f32 to vector<16x128xf32>
          %95 = arith.maximumf %93, %94 : vector<16x128xf32>
          %c0_52 = arith.constant 0 : index
          %c0_53 = arith.constant 0 : index
          %96 = vector.load %arg7[%c0_52, %c0_53] : memref<8x16xf32, #tpu.memory_space<vmem>>, vector<8x16xf32>
          %cst_54 = arith.constant dense<0.000000e+00> : vector<8x128xf32>
          %97 = tpu.matmul %96, %95, %cst_54 {dimension_numbers = #tpu.dot_dimension_numbers<[1], [0], [0], [1], [0, 0, 1, 1], [], []>} : vector<8x16xf32>, vector<16x128xf32>, vector<8x128xf32> -> vector<8x128xf32>
          %c0_i32_55 = arith.constant 0 : i32
          %98 = arith.cmpi eq, %arg1, %c0_i32_55 : i32
          %99 = arith.extui %98 : i1 to i32
          %c0_i32_56 = arith.constant 0 : i32
          %100 = arith.cmpi ne, %99, %c0_i32_56 : i32
          scf.if %100 {
            %104 = vector.broadcast %27 : vector<1x128xf32> to vector<8x128xf32>
            %105 = arith.mulf %97, %104 : vector<8x128xf32>
            %c0_58 = arith.constant 0 : index
            %c0_59 = arith.constant 0 : index
            %106 = vector.load %arg13[%c0_58, %c0_59] : memref<8x4xf32, #tpu.memory_space<vmem>>, vector<8x1xf32>
            %cst_60 = arith.constant dense<0.000000e+00> : vector<8xf32>
            %107 = vector.multi_reduction <add>, %105, %cst_60 [1] : vector<8x128xf32> to vector<8xf32>
            %108 = vector.shape_cast %107 : vector<8xf32> to vector<8x1xf32>
            %109 = arith.addf %106, %108 : vector<8x1xf32>
            %c0_61 = arith.constant 0 : index
            %c0_62 = arith.constant 0 : index
            %110 = vector.load %arg13[%c0_61, %c0_62] : memref<8x4xf32, #tpu.memory_space<vmem>>, vector<8x1xf32>
            tpu.vector_store %arg13[%c0_61, %c0_62], %109 {strides = array<i32>} : memref<8x4xf32, #tpu.memory_space<vmem>>, vector<8x1xf32>,
            %c0_63 = arith.constant 0 : index
            %c1_64 = arith.constant 1 : index
            %111 = vector.load %arg13[%c0_63, %c1_64] : memref<8x4xf32, #tpu.memory_space<vmem>>, vector<8x1xf32>
            %112 = arith.mulf %105, %97 : vector<8x128xf32>
            %cst_65 = arith.constant dense<0.000000e+00> : vector<8xf32>
            %113 = vector.multi_reduction <add>, %112, %cst_65 [1] : vector<8x128xf32> to vector<8xf32>
            %114 = vector.shape_cast %113 : vector<8xf32> to vector<8x1xf32>
            %115 = arith.addf %111, %114 : vector<8x1xf32>
            %c0_66 = arith.constant 0 : index
            %c1_67 = arith.constant 1 : index
            %116 = vector.load %arg13[%c0_66, %c1_67] : memref<8x4xf32, #tpu.memory_space<vmem>>, vector<8x1xf32>
            tpu.vector_store %arg13[%c0_66, %c1_67], %115 {strides = array<i32>} : memref<8x4xf32, #tpu.memory_space<vmem>>, vector<8x1xf32>,
          } else {
          }
          %true = arith.constant true
          %101 = arith.xori %98, %true : i1
          %102 = arith.extui %101 : i1 to i32
          %c0_i32_57 = arith.constant 0 : i32
          %103 = arith.cmpi ne, %102, %c0_i32_57 : i32
          scf.if %103 {
            %c0_58 = arith.constant 0 : index
            %c0_59 = arith.constant 0 : index
            %104 = vector.load %arg13[%c0_58, %c0_59] : memref<8x4xf32, #tpu.memory_space<vmem>>, vector<8x1xf32>
            %cst_60 = arith.constant dense<0.000000e+00> : vector<8xf32>
            %105 = vector.multi_reduction <add>, %97, %cst_60 [1] : vector<8x128xf32> to vector<8xf32>
            %106 = vector.shape_cast %105 : vector<8xf32> to vector<8x1xf32>
            %107 = arith.addf %104, %106 : vector<8x1xf32>
            %c0_61 = arith.constant 0 : index
            %c0_62 = arith.constant 0 : index
            %108 = vector.load %arg13[%c0_61, %c0_62] : memref<8x4xf32, #tpu.memory_space<vmem>>, vector<8x1xf32>
            tpu.vector_store %arg13[%c0_61, %c0_62], %107 {strides = array<i32>} : memref<8x4xf32, #tpu.memory_space<vmem>>, vector<8x1xf32>,
            %c0_63 = arith.constant 0 : index
            %c1_64 = arith.constant 1 : index
            %109 = vector.load %arg13[%c0_63, %c1_64] : memref<8x4xf32, #tpu.memory_space<vmem>>, vector<8x1xf32>
            %110 = arith.mulf %97, %97 : vector<8x128xf32>
            %cst_65 = arith.constant dense<0.000000e+00> : vector<8xf32>
            %111 = vector.multi_reduction <add>, %110, %cst_65 [1] : vector<8x128xf32> to vector<8xf32>
            %112 = vector.shape_cast %111 : vector<8xf32> to vector<8x1xf32>
            %113 = arith.addf %109, %112 : vector<8x1xf32>
            %c0_66 = arith.constant 0 : index
            %c1_67 = arith.constant 1 : index
            %114 = vector.load %arg13[%c0_66, %c1_67] : memref<8x4xf32, #tpu.memory_space<vmem>>, vector<8x1xf32>
            tpu.vector_store %arg13[%c0_66, %c1_67], %113 {strides = array<i32>} : memref<8x4xf32, #tpu.memory_space<vmem>>, vector<8x1xf32>,
          } else {
          }
        } else {
        }
      } else {
      }
    } else {
    }
    %c3_i32_21 = arith.constant 3 : i32
    %45 = arith.cmpi eq, %arg0, %c3_i32_21 : i32
    %c0_i32_22 = arith.constant 0 : i32
    %46 = arith.cmpi eq, %arg1, %c0_i32_22 : i32
    %47 = arith.andi %45, %46 : i1
    %48 = arith.extui %47 : i1 to i32
    %c0_i32_23 = arith.constant 0 : i32
    %49 = arith.cmpi ne, %48, %c0_i32_23 : i32
    scf.if %49 {
      %c0_24 = arith.constant 0 : index
      %c7 = arith.constant 7 : index
      %50 = vector.load %arg8[%c0_24, %c7] : memref<128x16xf32, #tpu.memory_space<vmem>>, vector<8x1xf32>
      %c0_25 = arith.constant 0 : index
      %c11 = arith.constant 11 : index
      %51 = vector.load %arg8[%c0_25, %c11] : memref<128x16xf32, #tpu.memory_space<vmem>>, vector<8x1xf32>
      %c0_26 = arith.constant 0 : index
      %c0_27 = arith.constant 0 : index
      %52 = vector.load %arg13[%c0_26, %c0_27] : memref<8x4xf32, #tpu.memory_space<vmem>>, vector<8x1xf32>
      %cst_28 = arith.constant 6.250000e-02 : f32
      %53 = vector.broadcast %cst_28 : f32 to vector<8x1xf32>
      %54 = arith.mulf %52, %53 : vector<8x1xf32>
      %c0_29 = arith.constant 0 : index
      %c1 = arith.constant 1 : index
      %55 = vector.load %arg13[%c0_29, %c1] : memref<8x4xf32, #tpu.memory_space<vmem>>, vector<8x1xf32>
      %cst_30 = arith.constant 6.250000e-02 : f32
      %56 = vector.broadcast %cst_30 : f32 to vector<8x1xf32>
      %57 = arith.mulf %55, %56 : vector<8x1xf32>
      %58 = arith.mulf %54, %54 : vector<8x1xf32>
      %59 = arith.subf %57, %58 : vector<8x1xf32>
      %cst_31 = arith.constant 0.000000e+00 : f32
      %60 = vector.broadcast %cst_31 : f32 to vector<8x1xf32>
      %61 = arith.maximumf %59, %60 : vector<8x1xf32>
      %cst_32 = arith.constant 9.99999974E-6 : f32
      %62 = vector.broadcast %cst_32 : f32 to vector<8x1xf32>
      %63 = arith.addf %61, %62 : vector<8x1xf32>
      %64 = math.rsqrt %63 : vector<8x1xf32>
      %65 = arith.mulf %50, %64 : vector<8x1xf32>
      %c0_33 = arith.constant 0 : index
      %c2 = arith.constant 2 : index
      %66 = vector.load %arg13[%c0_33, %c2] : memref<8x4xf32, #tpu.memory_space<vmem>>, vector<8x1xf32>
      tpu.vector_store %arg13[%c0_33, %c2], %65 {strides = array<i32>} : memref<8x4xf32, #tpu.memory_space<vmem>>, vector<8x1xf32>,
      %67 = arith.mulf %54, %65 : vector<8x1xf32>
      %68 = arith.subf %51, %67 : vector<8x1xf32>
      %c0_34 = arith.constant 0 : index
      %c3 = arith.constant 3 : index
      %69 = vector.load %arg13[%c0_34, %c3] : memref<8x4xf32, #tpu.memory_space<vmem>>, vector<8x1xf32>
      tpu.vector_store %arg13[%c0_34, %c3], %68 {strides = array<i32>} : memref<8x4xf32, #tpu.memory_space<vmem>>, vector<8x1xf32>,
      %cst_35 = arith.constant 0.000000e+00 : f32
      %70 = vector.broadcast %cst_35 : f32 to vector<128x8xf32>
      %c0_36 = arith.constant 0 : index
      %c0_37 = arith.constant 0 : index
      %71 = vector.load %arg9[%c0_36, %c0_37] : memref<128x8xf32, #tpu.memory_space<vmem>>, vector<128x8xf32>
      tpu.vector_store %arg9[%c0_36, %c0_37], %70 {strides = array<i32>} : memref<128x8xf32, #tpu.memory_space<vmem>>, vector<128x8xf32>,
      %c0_38 = arith.constant 0 : index
      %c2_39 = arith.constant 2 : index
      %72 = vector.load %arg10[%c0_38, %c2_39] : memref<64x4xf32, #tpu.memory_space<vmem>>, vector<64x1xf32>
      %c0_40 = arith.constant 0 : index
      %c0_41 = arith.constant 0 : index
      %73 = vector.load %arg9[%c0_40, %c0_41] : memref<128x8xf32, #tpu.memory_space<vmem>>, vector<64x1xf32>
      tpu.vector_store %arg9[%c0_40, %c0_41], %72 {strides = array<i32>} : memref<128x8xf32, #tpu.memory_space<vmem>>, vector<64x1xf32>,
      %c0_42 = arith.constant 0 : index
      %c3_43 = arith.constant 3 : index
      %74 = vector.load %arg10[%c0_42, %c3_43] : memref<64x4xf32, #tpu.memory_space<vmem>>, vector<64x1xf32>
      %c0_44 = arith.constant 0 : index
      %c4 = arith.constant 4 : index
      %75 = vector.load %arg9[%c0_44, %c4] : memref<128x8xf32, #tpu.memory_space<vmem>>, vector<64x1xf32>
      tpu.vector_store %arg9[%c0_44, %c4], %74 {strides = array<i32>} : memref<128x8xf32, #tpu.memory_space<vmem>>, vector<64x1xf32>,
      %c0_45 = arith.constant 0 : index
      %c2_46 = arith.constant 2 : index
      %76 = vector.load %arg11[%c0_45, %c2_46] : memref<32x4xf32, #tpu.memory_space<vmem>>, vector<32x1xf32>
      %c0_47 = arith.constant 0 : index
      %c1_48 = arith.constant 1 : index
      %77 = vector.load %arg9[%c0_47, %c1_48] : memref<128x8xf32, #tpu.memory_space<vmem>>, vector<32x1xf32>
      tpu.vector_store %arg9[%c0_47, %c1_48], %76 {strides = array<i32>} : memref<128x8xf32, #tpu.memory_space<vmem>>, vector<32x1xf32>,
      %c0_49 = arith.constant 0 : index
      %c3_50 = arith.constant 3 : index
      %78 = vector.load %arg11[%c0_49, %c3_50] : memref<32x4xf32, #tpu.memory_space<vmem>>, vector<32x1xf32>
      %c0_51 = arith.constant 0 : index
      %c5 = arith.constant 5 : index
      %79 = vector.load %arg9[%c0_51, %c5] : memref<128x8xf32, #tpu.memory_space<vmem>>, vector<32x1xf32>
      tpu.vector_store %arg9[%c0_51, %c5], %78 {strides = array<i32>} : memref<128x8xf32, #tpu.memory_space<vmem>>, vector<32x1xf32>,
      %c0_52 = arith.constant 0 : index
      %c2_53 = arith.constant 2 : index
      %80 = vector.load %arg12[%c0_52, %c2_53] : memref<16x4xf32, #tpu.memory_space<vmem>>, vector<16x1xf32>
      %c0_54 = arith.constant 0 : index
      %c2_55 = arith.constant 2 : index
      %81 = vector.load %arg9[%c0_54, %c2_55] : memref<128x8xf32, #tpu.memory_space<vmem>>, vector<16x1xf32>
      tpu.vector_store %arg9[%c0_54, %c2_55], %80 {strides = array<i32>} : memref<128x8xf32, #tpu.memory_space<vmem>>, vector<16x1xf32>,
      %c0_56 = arith.constant 0 : index
      %c3_57 = arith.constant 3 : index
      %82 = vector.load %arg12[%c0_56, %c3_57] : memref<16x4xf32, #tpu.memory_space<vmem>>, vector<16x1xf32>
      %c0_58 = arith.constant 0 : index
      %c6 = arith.constant 6 : index
      %83 = vector.load %arg9[%c0_58, %c6] : memref<128x8xf32, #tpu.memory_space<vmem>>, vector<16x1xf32>
      tpu.vector_store %arg9[%c0_58, %c6], %82 {strides = array<i32>} : memref<128x8xf32, #tpu.memory_space<vmem>>, vector<16x1xf32>,
      %c0_59 = arith.constant 0 : index
      %c2_60 = arith.constant 2 : index
      %84 = vector.load %arg13[%c0_59, %c2_60] : memref<8x4xf32, #tpu.memory_space<vmem>>, vector<8x1xf32>
      %c0_61 = arith.constant 0 : index
      %c3_62 = arith.constant 3 : index
      %85 = vector.load %arg9[%c0_61, %c3_62] : memref<128x8xf32, #tpu.memory_space<vmem>>, vector<8x1xf32>
      tpu.vector_store %arg9[%c0_61, %c3_62], %84 {strides = array<i32>} : memref<128x8xf32, #tpu.memory_space<vmem>>, vector<8x1xf32>,
      %c0_63 = arith.constant 0 : index
      %c3_64 = arith.constant 3 : index
      %86 = vector.load %arg13[%c0_63, %c3_64] : memref<8x4xf32, #tpu.memory_space<vmem>>, vector<8x1xf32>
      %c0_65 = arith.constant 0 : index
      %c7_66 = arith.constant 7 : index
      %87 = vector.load %arg9[%c0_65, %c7_66] : memref<128x8xf32, #tpu.memory_space<vmem>>, vector<8x1xf32>
      tpu.vector_store %arg9[%c0_65, %c7_66], %86 {strides = array<i32>} : memref<128x8xf32, #tpu.memory_space<vmem>>, vector<8x1xf32>,
    } else {
    }
    return
  }
  func.func @transform_0(%arg0: i32, %arg1: i32) -> (i32, i32) {
    %c0_i32 = arith.constant 0 : i32
    %c0_i32_0 = arith.constant 0 : i32
    return %c0_i32, %arg1 : i32, i32
  }
  func.func @transform_1(%arg0: i32, %arg1: i32) -> (i32, i32) {
    %c0_i32 = arith.constant 0 : i32
    %c0_i32_0 = arith.constant 0 : i32
    %c0_i32_1 = arith.constant 0 : i32
    return %c0_i32, %c0_i32_0 : i32, i32
  }
  func.func @transform_2(%arg0: i32, %arg1: i32) -> (i32, i32) {
    %c0_i32 = arith.constant 0 : i32
    %c0_i32_0 = arith.constant 0 : i32
    %c0_i32_1 = arith.constant 0 : i32
    return %c0_i32, %c0_i32_0 : i32, i32
  }
  func.func @transform_3(%arg0: i32, %arg1: i32) -> (i32, i32) {
    %c0_i32 = arith.constant 0 : i32
    %c0_i32_0 = arith.constant 0 : i32
    %c0_i32_1 = arith.constant 0 : i32
    return %c0_i32, %c0_i32_0 : i32, i32
  }
  func.func @transform_4(%arg0: i32, %arg1: i32) -> (i32, i32) {
    %c0_i32 = arith.constant 0 : i32
    %c0_i32_0 = arith.constant 0 : i32
    %c0_i32_1 = arith.constant 0 : i32
    return %c0_i32, %c0_i32_0 : i32, i32
  }
  func.func @transform_5(%arg0: i32, %arg1: i32) -> (i32, i32) {
    %c0_i32 = arith.constant 0 : i32
    %c0_i32_0 = arith.constant 0 : i32
    %c0_i32_1 = arith.constant 0 : i32
    return %c0_i32, %c0_i32_0 : i32, i32
  }
  func.func @transform_6(%arg0: i32, %arg1: i32) -> (i32, i32) {
    %c0_i32 = arith.constant 0 : i32
    %c0_i32_0 = arith.constant 0 : i32
    %c0_i32_1 = arith.constant 0 : i32
    return %c0_i32, %c0_i32_0 : i32, i32
  }
  func.func @transform_7(%arg0: i32, %arg1: i32) -> (i32, i32) {
    %c0_i32 = arith.constant 0 : i32
    %c0_i32_0 = arith.constant 0 : i32
    %c0_i32_1 = arith.constant 0 : i32
    return %c0_i32, %c0_i32_0 : i32, i32
  }
}

module attributes {stable_mosaic.version = 11 : i64} {
  func.func @_apply_kernel(%arg0: i32, %arg1: memref<16x128xf32, #tpu.memory_space<vmem>>, %arg2: memref<128x16xbf16, #tpu.memory_space<vmem>>, %arg3: memref<96x128xbf16, #tpu.memory_space<vmem>>, %arg4: memref<32x64xbf16, #tpu.memory_space<vmem>>, %arg5: memref<24x32xbf16, #tpu.memory_space<vmem>>, %arg6: memref<8x16xbf16, #tpu.memory_space<vmem>>, %arg7: memref<12x8xbf16, #tpu.memory_space<vmem>>, %arg8: memref<8x12xbf16, #tpu.memory_space<vmem>>, %arg9: memref<128x8xf32, #tpu.memory_space<vmem>>, %arg10: memref<8x128xf32, #tpu.memory_space<vmem>>) attributes {dimension_semantics = [#tpu.dimension_semantics<parallel>], iteration_bounds = array<i64: 1>, scalar_prefetch = 0 : i64, scratch_operands = 0 : i64, tpu.core_type = #tpu.core_type<tc>, window_params = [{transform_indices = @transform_0, window_bounds = array<i64: 16, 128>}, {pipeline_mode = #tpu.pipeline_mode<synchronous>, transform_indices = @transform_1, window_bounds = array<i64: 128, 16>}, {pipeline_mode = #tpu.pipeline_mode<synchronous>, transform_indices = @transform_2, window_bounds = array<i64: 96, 128>}, {pipeline_mode = #tpu.pipeline_mode<synchronous>, transform_indices = @transform_3, window_bounds = array<i64: 32, 64>}, {pipeline_mode = #tpu.pipeline_mode<synchronous>, transform_indices = @transform_4, window_bounds = array<i64: 24, 32>}, {pipeline_mode = #tpu.pipeline_mode<synchronous>, transform_indices = @transform_5, window_bounds = array<i64: 8, 16>}, {pipeline_mode = #tpu.pipeline_mode<synchronous>, transform_indices = @transform_6, window_bounds = array<i64: 12, 8>}, {pipeline_mode = #tpu.pipeline_mode<synchronous>, transform_indices = @transform_7, window_bounds = array<i64: 8, 12>}, {pipeline_mode = #tpu.pipeline_mode<synchronous>, transform_indices = @transform_8, window_bounds = array<i64: 128, 8>}, {transform_indices = @transform_9, window_bounds = array<i64: 8, 128>}]} {
    %c0 = arith.constant 0 : index
    %c0_0 = arith.constant 0 : index
    %0 = vector.load %arg1[%c0, %c0_0] : memref<16x128xf32, #tpu.memory_space<vmem>>, vector<16x128xf32>
    %c0_1 = arith.constant 0 : index
    %c0_2 = arith.constant 0 : index
    %1 = vector.load %arg2[%c0_1, %c0_2] : memref<128x16xbf16, #tpu.memory_space<vmem>>, vector<128x16xbf16>
    %2 = arith.truncf %0 : vector<16x128xf32> to vector<16x128xbf16>
    %cst = arith.constant dense<0.000000e+00> : vector<128x128xf32>
    %3 = tpu.matmul %1, %2, %cst {dimension_numbers = #tpu.dot_dimension_numbers<[1], [0], [0], [1], [0, 0, 1, 1], [], []>} : vector<128x16xbf16>, vector<16x128xbf16>, vector<128x128xf32> -> vector<128x128xf32>
    %c0_3 = arith.constant 0 : index
    %c0_4 = arith.constant 0 : index
    %4 = vector.load %arg9[%c0_3, %c0_4] : memref<128x8xf32, #tpu.memory_space<vmem>>, vector<128x1xf32>
    %5 = vector.broadcast %4 : vector<128x1xf32> to vector<128x128xf32>
    %6 = arith.addf %3, %5 : vector<128x128xf32>
    %cst_5 = arith.constant 0.000000e+00 : f32
    %7 = vector.broadcast %cst_5 : f32 to vector<128x128xf32>
    %8 = arith.maximumf %6, %7 : vector<128x128xf32>
    %c0_6 = arith.constant 0 : index
    %c0_7 = arith.constant 0 : index
    %9 = vector.load %arg3[%c0_6, %c0_7] : memref<96x128xbf16, #tpu.memory_space<vmem>>, vector<96x128xbf16>
    %10 = arith.truncf %8 : vector<128x128xf32> to vector<128x128xbf16>
    %cst_8 = arith.constant dense<0.000000e+00> : vector<96x128xf32>
    %11 = tpu.matmul %9, %10, %cst_8 {dimension_numbers = #tpu.dot_dimension_numbers<[1], [0], [0], [1], [0, 0, 1, 1], [], []>} : vector<96x128xbf16>, vector<128x128xbf16>, vector<96x128xf32> -> vector<96x128xf32>
    %c0_9 = arith.constant 0 : index
    %c1 = arith.constant 1 : index
    %12 = vector.load %arg9[%c0_9, %c1] : memref<128x8xf32, #tpu.memory_space<vmem>>, vector<96x1xf32>
    %13 = vector.broadcast %12 : vector<96x1xf32> to vector<96x128xf32>
    %14 = arith.addf %11, %13 : vector<96x128xf32>
    %15 = vector.extract_strided_slice %14 {offsets = [32, 0], sizes = [64, 128], strides = [1, 1]} : vector<96x128xf32> to vector<64x128xf32>
    %cst_10 = arith.constant 0.000000e+00 : f32
    %16 = vector.broadcast %cst_10 : f32 to vector<64x128xf32>
    %17 = arith.maximumf %15, %16 : vector<64x128xf32>
    %c0_11 = arith.constant 0 : index
    %c0_12 = arith.constant 0 : index
    %18 = vector.load %arg4[%c0_11, %c0_12] : memref<32x64xbf16, #tpu.memory_space<vmem>>, vector<32x64xbf16>
    %19 = arith.truncf %17 : vector<64x128xf32> to vector<64x128xbf16>
    %cst_13 = arith.constant dense<0.000000e+00> : vector<32x128xf32>
    %20 = tpu.matmul %18, %19, %cst_13 {dimension_numbers = #tpu.dot_dimension_numbers<[1], [0], [0], [1], [0, 0, 1, 1], [], []>} : vector<32x64xbf16>, vector<64x128xbf16>, vector<32x128xf32> -> vector<32x128xf32>
    %c0_14 = arith.constant 0 : index
    %c2 = arith.constant 2 : index
    %21 = vector.load %arg9[%c0_14, %c2] : memref<128x8xf32, #tpu.memory_space<vmem>>, vector<32x1xf32>
    %22 = vector.broadcast %21 : vector<32x1xf32> to vector<32x128xf32>
    %23 = arith.addf %20, %22 : vector<32x128xf32>
    %24 = vector.extract_strided_slice %14 {offsets = [0, 0], sizes = [32, 128], strides = [1, 1]} : vector<96x128xf32> to vector<32x128xf32>
    %25 = arith.addf %24, %23 : vector<32x128xf32>
    %cst_15 = arith.constant 0.000000e+00 : f32
    %26 = vector.broadcast %cst_15 : f32 to vector<32x128xf32>
    %27 = arith.maximumf %25, %26 : vector<32x128xf32>
    %c0_16 = arith.constant 0 : index
    %c0_17 = arith.constant 0 : index
    %28 = vector.load %arg5[%c0_16, %c0_17] : memref<24x32xbf16, #tpu.memory_space<vmem>>, vector<24x32xbf16>
    %29 = arith.truncf %27 : vector<32x128xf32> to vector<32x128xbf16>
    %cst_18 = arith.constant dense<0.000000e+00> : vector<24x128xf32>
    %30 = tpu.matmul %28, %29, %cst_18 {dimension_numbers = #tpu.dot_dimension_numbers<[1], [0], [0], [1], [0, 0, 1, 1], [], []>} : vector<24x32xbf16>, vector<32x128xbf16>, vector<24x128xf32> -> vector<24x128xf32>
    %c0_19 = arith.constant 0 : index
    %c3 = arith.constant 3 : index
    %31 = vector.load %arg9[%c0_19, %c3] : memref<128x8xf32, #tpu.memory_space<vmem>>, vector<24x1xf32>
    %32 = vector.broadcast %31 : vector<24x1xf32> to vector<24x128xf32>
    %33 = arith.addf %30, %32 : vector<24x128xf32>
    %34 = vector.extract_strided_slice %33 {offsets = [8, 0], sizes = [16, 128], strides = [1, 1]} : vector<24x128xf32> to vector<16x128xf32>
    %cst_20 = arith.constant 0.000000e+00 : f32
    %35 = vector.broadcast %cst_20 : f32 to vector<16x128xf32>
    %36 = arith.maximumf %34, %35 : vector<16x128xf32>
    %c0_21 = arith.constant 0 : index
    %c0_22 = arith.constant 0 : index
    %37 = vector.load %arg6[%c0_21, %c0_22] : memref<8x16xbf16, #tpu.memory_space<vmem>>, vector<8x16xbf16>
    %38 = arith.truncf %36 : vector<16x128xf32> to vector<16x128xbf16>
    %cst_23 = arith.constant dense<0.000000e+00> : vector<8x128xf32>
    %39 = tpu.matmul %37, %38, %cst_23 {dimension_numbers = #tpu.dot_dimension_numbers<[1], [0], [0], [1], [0, 0, 1, 1], [], []>} : vector<8x16xbf16>, vector<16x128xbf16>, vector<8x128xf32> -> vector<8x128xf32>
    %c0_24 = arith.constant 0 : index
    %c4 = arith.constant 4 : index
    %40 = vector.load %arg9[%c0_24, %c4] : memref<128x8xf32, #tpu.memory_space<vmem>>, vector<8x1xf32>
    %41 = vector.broadcast %40 : vector<8x1xf32> to vector<8x128xf32>
    %42 = arith.addf %39, %41 : vector<8x128xf32>
    %43 = vector.extract_strided_slice %33 {offsets = [0, 0], sizes = [8, 128], strides = [1, 1]} : vector<24x128xf32> to vector<8x128xf32>
    %44 = arith.addf %43, %42 : vector<8x128xf32>
    %cst_25 = arith.constant 0.000000e+00 : f32
    %45 = vector.broadcast %cst_25 : f32 to vector<8x128xf32>
    %46 = arith.maximumf %44, %45 : vector<8x128xf32>
    %c0_26 = arith.constant 0 : index
    %c0_27 = arith.constant 0 : index
    %47 = vector.load %arg7[%c0_26, %c0_27] : memref<12x8xbf16, #tpu.memory_space<vmem>>, vector<12x8xbf16>
    %48 = arith.truncf %46 : vector<8x128xf32> to vector<8x128xbf16>
    %cst_28 = arith.constant dense<0.000000e+00> : vector<12x128xf32>
    %49 = tpu.matmul %47, %48, %cst_28 {dimension_numbers = #tpu.dot_dimension_numbers<[1], [0], [0], [1], [0, 0, 1, 1], [], []>} : vector<12x8xbf16>, vector<8x128xbf16>, vector<12x128xf32> -> vector<12x128xf32>
    %c0_29 = arith.constant 0 : index
    %c5 = arith.constant 5 : index
    %50 = vector.load %arg9[%c0_29, %c5] : memref<128x8xf32, #tpu.memory_space<vmem>>, vector<12x1xf32>
    %51 = vector.broadcast %50 : vector<12x1xf32> to vector<12x128xf32>
    %52 = arith.addf %49, %51 : vector<12x128xf32>
    %cst_30 = arith.constant 0.000000e+00 : f32
    %53 = vector.broadcast %cst_30 : f32 to vector<12x128xf32>
    %54 = arith.maximumf %52, %53 : vector<12x128xf32>
    %c0_31 = arith.constant 0 : index
    %c0_32 = arith.constant 0 : index
    %55 = vector.load %arg8[%c0_31, %c0_32] : memref<8x12xbf16, #tpu.memory_space<vmem>>, vector<8x12xbf16>
    %56 = arith.truncf %54 : vector<12x128xf32> to vector<12x128xbf16>
    %cst_33 = arith.constant dense<0.000000e+00> : vector<8x128xf32>
    %57 = tpu.matmul %55, %56, %cst_33 {dimension_numbers = #tpu.dot_dimension_numbers<[1], [0], [0], [1], [0, 0, 1, 1], [], []>} : vector<8x12xbf16>, vector<12x128xbf16>, vector<8x128xf32> -> vector<8x128xf32>
    %c0_34 = arith.constant 0 : index
    %c6 = arith.constant 6 : index
    %58 = vector.load %arg9[%c0_34, %c6] : memref<128x8xf32, #tpu.memory_space<vmem>>, vector<8x1xf32>
    %59 = vector.broadcast %58 : vector<8x1xf32> to vector<8x128xf32>
    %60 = arith.addf %57, %59 : vector<8x128xf32>
    %c0_35 = arith.constant 0 : index
    %c0_36 = arith.constant 0 : index
    %61 = vector.load %arg10[%c0_35, %c0_36] : memref<8x128xf32, #tpu.memory_space<vmem>>, vector<8x128xf32>
    tpu.vector_store %arg10[%c0_35, %c0_36], %60 {strides = array<i32>} : memref<8x128xf32, #tpu.memory_space<vmem>>, vector<8x128xf32>,
    return
  }
  func.func @transform_0(%arg0: i32) -> (i32, i32) {
    %c0_i32 = arith.constant 0 : i32
    %c0_i32_0 = arith.constant 0 : i32
    return %c0_i32, %arg0 : i32, i32
  }
  func.func @transform_1(%arg0: i32) -> (i32, i32) {
    %c0_i32 = arith.constant 0 : i32
    %c0_i32_0 = arith.constant 0 : i32
    %c0_i32_1 = arith.constant 0 : i32
    return %c0_i32, %c0_i32_0 : i32, i32
  }
  func.func @transform_2(%arg0: i32) -> (i32, i32) {
    %c0_i32 = arith.constant 0 : i32
    %c0_i32_0 = arith.constant 0 : i32
    %c0_i32_1 = arith.constant 0 : i32
    return %c0_i32, %c0_i32_0 : i32, i32
  }
  func.func @transform_3(%arg0: i32) -> (i32, i32) {
    %c0_i32 = arith.constant 0 : i32
    %c0_i32_0 = arith.constant 0 : i32
    %c0_i32_1 = arith.constant 0 : i32
    return %c0_i32, %c0_i32_0 : i32, i32
  }
  func.func @transform_4(%arg0: i32) -> (i32, i32) {
    %c0_i32 = arith.constant 0 : i32
    %c0_i32_0 = arith.constant 0 : i32
    %c0_i32_1 = arith.constant 0 : i32
    return %c0_i32, %c0_i32_0 : i32, i32
  }
  func.func @transform_5(%arg0: i32) -> (i32, i32) {
    %c0_i32 = arith.constant 0 : i32
    %c0_i32_0 = arith.constant 0 : i32
    %c0_i32_1 = arith.constant 0 : i32
    return %c0_i32, %c0_i32_0 : i32, i32
  }
  func.func @transform_6(%arg0: i32) -> (i32, i32) {
    %c0_i32 = arith.constant 0 : i32
    %c0_i32_0 = arith.constant 0 : i32
    %c0_i32_1 = arith.constant 0 : i32
    return %c0_i32, %c0_i32_0 : i32, i32
  }
  func.func @transform_7(%arg0: i32) -> (i32, i32) {
    %c0_i32 = arith.constant 0 : i32
    %c0_i32_0 = arith.constant 0 : i32
    %c0_i32_1 = arith.constant 0 : i32
    return %c0_i32, %c0_i32_0 : i32, i32
  }
  func.func @transform_8(%arg0: i32) -> (i32, i32) {
    %c0_i32 = arith.constant 0 : i32
    %c0_i32_0 = arith.constant 0 : i32
    %c0_i32_1 = arith.constant 0 : i32
    return %c0_i32, %c0_i32_0 : i32, i32
  }
  func.func @transform_9(%arg0: i32) -> (i32, i32) {
    %c0_i32 = arith.constant 0 : i32
    %c0_i32_0 = arith.constant 0 : i32
    return %c0_i32, %arg0 : i32, i32
  }
}

</mosaic_0001>

<llo_original>
// kernel: listnet_forward.3
$region0: #{listnet_forward.3}
  #allocation0 [shape = 'u32[]', space=smem, size = 0x4, offset = 0x4, fixed_abs, tag = 'smem constant byte address 0x4 - core index']
  #allocation1 [shape = 'u32[72,128]{1,0:T(1,128)}', space=vmem, size = 0x9000, scoped, tag = 'internal scratch']
  %s0 = inlined_call_operand.vmem [shape: f32[16,128], index: 0, kind: input, shape index: {}]
  %s1 = inlined_call_operand.vmem [shape: bf16[128,16], index: 1, kind: input, shape index: {}]
  %s2 = inlined_call_operand.vmem [shape: bf16[96,128], index: 2, kind: input, shape index: {}]
  %s3 = inlined_call_operand.vmem [shape: bf16[32,64], index: 3, kind: input, shape index: {}]
  %s4 = inlined_call_operand.vmem [shape: bf16[24,32], index: 4, kind: input, shape index: {}]
  %s5 = inlined_call_operand.vmem [shape: bf16[8,16], index: 5, kind: input, shape index: {}]
  %s6 = inlined_call_operand.vmem [shape: bf16[12,8], index: 6, kind: input, shape index: {}]
  %s7 = inlined_call_operand.vmem [shape: bf16[8,12], index: 7, kind: input, shape index: {}]
  %s8 = inlined_call_operand.vmem [shape: f32[128,8], index: 8, kind: input, shape index: {}]
  %s9 = inlined_call_operand.vmem [shape: f32[8,128], index: 9, kind: output, shape index: {}]
  %s10 = sld [smem:[#allocation0]]
  $region46: #{listnet_forward.3} parent=0
    _
  %s12 = ssub.s32 1, %s10
  %s13 = scalar_select 0, %s12, %s10
  // Predicated region
  $region2: #{listnet_forward.3} parent=0 // pred_check
    _
  $region3: #{listnet_forward.3} parent=0 // pred_check_branch
    %15 = sbr.rel (0) target = $region5
  $region4: #{listnet_forward.3} parent=0 // pred_region
    _
  $region5: #{listnet_forward.3} parent=0 // pred_fallthru
    _
  // Predicated region
  $region6: #{listnet_forward.3} parent=0 // pred_check
    _
  $region7: #{listnet_forward.3} parent=0 // pred_check_branch
    %17 = sbr.rel (0) target = $region9
  $region8: #{listnet_forward.3} parent=0 // pred_region
    _
  $region9: #{listnet_forward.3} parent=0 // pred_fallthru
    _
  // Predicated region
  $region10: #{listnet_forward.3} parent=0 // pred_check
    _
  $region11: #{listnet_forward.3} parent=0 // pred_check_branch
    %19 = sbr.rel (0) target = $region13
  $region12: #{listnet_forward.3} parent=0 // pred_region
    _
  $region13: #{listnet_forward.3} parent=0 // pred_fallthru
    _
  // Predicated region
  $region14: #{listnet_forward.3} parent=0 // pred_check
    _
  $region15: #{listnet_forward.3} parent=0 // pred_check_branch
    %21 = sbr.rel (0) target = $region17
  $region16: #{listnet_forward.3} parent=0 // pred_region
    _
  $region17: #{listnet_forward.3} parent=0 // pred_fallthru
    _
  // Predicated region
  $region18: #{listnet_forward.3} parent=0 // pred_check
    _
  $region19: #{listnet_forward.3} parent=0 // pred_check_branch
    %23 = sbr.rel (0) target = $region21
  $region20: #{listnet_forward.3} parent=0 // pred_region
    _
  $region21: #{listnet_forward.3} parent=0 // pred_fallthru
    _
  // Predicated region
  $region22: #{listnet_forward.3} parent=0 // pred_check
    _
  $region23: #{listnet_forward.3} parent=0 // pred_check_branch
    %25 = sbr.rel (0) target = $region25
  $region24: #{listnet_forward.3} parent=0 // pred_region
    _
  $region25: #{listnet_forward.3} parent=0 // pred_fallthru
    _
  // Predicated region
  $region26: #{listnet_forward.3} parent=0 // pred_check
    _
  $region27: #{listnet_forward.3} parent=0 // pred_check_branch
    %27 = sbr.rel (0) target = $region29
  $region28: #{listnet_forward.3} parent=0 // pred_region
    _
  $region29: #{listnet_forward.3} parent=0 // pred_fallthru
    _
  // Predicated region
  $region30: #{listnet_forward.3} parent=0 // pred_check
    _
  $region31: #{listnet_forward.3} parent=0 // pred_check_branch
    %29 = sbr.rel (0) target = $region33
  $region32: #{listnet_forward.3} parent=0 // pred_region
    _
  $region33: #{listnet_forward.3} parent=0 // pred_fallthru
    _
  // Predicated region
  $region34: #{listnet_forward.3} parent=0 // pred_check
    _
  $region35: #{listnet_forward.3} parent=0 // pred_check_branch
    %31 = sbr.rel (0) target = $region37
  $region36: #{listnet_forward.3} parent=0 // pred_region
    _
  $region37: #{listnet_forward.3} parent=0 // pred_fallthru
    _
  %v33 = vld [vmem:[%s0] sm:$0xff]
  %v34 = vld [vmem:[%s0 + $0x8] sm:$0xff]
  %v35 = vld [vmem:[%s1] sm:$0xf]
  %v36 = vld [vmem:[%s1 + $0x4] sm:$0xf]
  %v37 = vld [vmem:[%s1 + $0x8] sm:$0xf]
  %v38 = vld [vmem:[%s1 + $0xc] sm:$0xf]
  %v39 = vld [vmem:[%s1 + $0x10] sm:$0xf]
  %v40 = vld [vmem:[%s1 + $0x14] sm:$0xf]
  %v41 = vld [vmem:[%s1 + $0x18] sm:$0xf]
  %v42 = vld [vmem:[%s1 + $0x1c] sm:$0xf]
  %v43 = vld [vmem:[%s1 + $0x20] sm:$0xf]
  %v44 = vld [vmem:[%s1 + $0x24] sm:$0xf]
  %v45 = vld [vmem:[%s1 + $0x28] sm:$0xf]
  %v46 = vld [vmem:[%s1 + $0x2c] sm:$0xf]
  %v47 = vld [vmem:[%s1 + $0x30] sm:$0xf]
  %v48 = vld [vmem:[%s1 + $0x34] sm:$0xf]
  %v49 = vld [vmem:[%s1 + $0x38] sm:$0xf]
  %v50 = vld [vmem:[%s1 + $0x3c] sm:$0xf]
  %v51 = vpack.c.bf16 %v34, %v33
  %v52 = vld [vmem:[%s8] sm:$0xff]
  %v53 = vld [vmem:[%s8 + $0x8] sm:$0xff]
  %v54 = vld [vmem:[%s8 + $0x10] sm:$0xff]
  %v55 = vld [vmem:[%s8 + $0x18] sm:$0xff]
  %v56 = vld [vmem:[%s8 + $0x20] sm:$0xff]
  %v57 = vld [vmem:[%s8 + $0x28] sm:$0xff]
  %v58 = vld [vmem:[%s8 + $0x30] sm:$0xff]
  %v59 = vld [vmem:[%s8 + $0x38] sm:$0xff]
  %v60 = vld [vmem:[%s8 + $0x40] sm:$0xff]
  %v61 = vld [vmem:[%s8 + $0x48] sm:$0xff]
  %v62 = vld [vmem:[%s8 + $0x50] sm:$0xff]
  %v63 = vld [vmem:[%s8 + $0x58] sm:$0xff]
  %v64 = vld [vmem:[%s8 + $0x60] sm:$0xff]
  %v65 = vld [vmem:[%s8 + $0x68] sm:$0xff]
  %v66 = vld [vmem:[%s8 + $0x70] sm:$0xff]
  %v67 = vld [vmem:[%s8 + $0x78] sm:$0xff]
  %69 = vset.pattern.permute.xlu0 0
  %70 = vperm.xlu0 %69, %v52
  %v71 = vpop.permute.xlu0 %70
  %74 = vset.pattern.permute.xlu0 0
  %75 = vperm.xlu0 %74, %v53
  %v76 = vpop.permute.xlu0 %75
  %79 = vset.pattern.permute.xlu0 0
  %80 = vperm.xlu0 %79, %v54
  %v81 = vpop.permute.xlu0 %80
  %84 = vset.pattern.permute.xlu0 0
  %85 = vperm.xlu0 %84, %v55
  %v86 = vpop.permute.xlu0 %85
  %89 = vset.pattern.permute.xlu0 0
  %90 = vperm.xlu0 %89, %v56
  %v91 = vpop.permute.xlu0 %90
  %94 = vset.pattern.permute.xlu0 0
  %95 = vperm.xlu0 %94, %v57
  %v96 = vpop.permute.xlu0 %95
  %99 = vset.pattern.permute.xlu0 0
  %100 = vperm.xlu0 %99, %v58
  %v101 = vpop.permute.xlu0 %100
  %104 = vset.pattern.permute.xlu0 0
  %105 = vperm.xlu0 %104, %v59
  %v106 = vpop.permute.xlu0 %105
  %109 = vset.pattern.permute.xlu0 0
  %110 = vperm.xlu0 %109, %v60
  %v111 = vpop.permute.xlu0 %110
  %114 = vset.pattern.permute.xlu0 0
  %115 = vperm.xlu0 %114, %v61
  %v116 = vpop.permute.xlu0 %115
  %119 = vset.pattern.permute.xlu0 0
  %120 = vperm.xlu0 %119, %v62
  %v121 = vpop.permute.xlu0 %120
  %124 = vset.pattern.permute.xlu0 0
  %125 = vperm.xlu0 %124, %v63
  %v126 = vpop.permute.xlu0 %125
  %129 = vset.pattern.permute.xlu0 0
  %130 = vperm.xlu0 %129, %v64
  %v131 = vpop.permute.xlu0 %130
  %134 = vset.pattern.permute.xlu0 0
  %135 = vperm.xlu0 %134, %v65
  %v136 = vpop.permute.xlu0 %135
  %139 = vset.pattern.permute.xlu0 0
  %140 = vperm.xlu0 %139, %v66
  %v141 = vpop.permute.xlu0 %140
  %144 = vset.pattern.permute.xlu0 0
  %145 = vperm.xlu0 %144, %v67
  %v146 = vpop.permute.xlu0 %145
  %v164 = vunpack.c.l.b16 %v35
  %v165 = vunpack.c.l.b16 %v36
  %v166 = vunpack.c.l.b16 %v37
  %v167 = vunpack.c.l.b16 %v38
  %v168 = vunpack.c.l.b16 %v39
  %v169 = vunpack.c.l.b16 %v40
  %v170 = vunpack.c.l.b16 %v41
  %v171 = vunpack.c.l.b16 %v42
  %v172 = vunpack.c.l.b16 %v43
  %v173 = vunpack.c.l.b16 %v44
  %v174 = vunpack.c.l.b16 %v45
  %v175 = vunpack.c.l.b16 %v46
  %v176 = vunpack.c.l.b16 %v47
  %v177 = vunpack.c.l.b16 %v48
  %v178 = vunpack.c.l.b16 %v49
  %v179 = vunpack.c.l.b16 %v50
  %v180 = vpack.c.b16 %v165, %v164
  %v181 = vpack.c.b16 %v167, %v166
  %v182 = vpack.c.b16 %v169, %v168
  %v183 = vpack.c.b16 %v171, %v170
  %v184 = vpack.c.b16 %v173, %v172
  %v185 = vpack.c.b16 %v175, %v174
  %v186 = vpack.c.b16 %v177, %v176
  %v187 = vpack.c.b16 %v179, %v178
  %vm188 = vcmask 130048
  %v190 = vsel %vm188, %v180, 0
  %v193 = vsel %vm188, %v181, 0
  %v196 = vsel %vm188, %v182, 0
  %v199 = vsel %vm188, %v183, 0
  %v202 = vsel %vm188, %v184, 0
  %v205 = vsel %vm188, %v185, 0
  %v208 = vsel %vm188, %v186, 0
  %v211 = vsel %vm188, %v187, 0
  %213 = vmatpush.bf16.msra.mxu0 0
  %214 = vmatpush.bf16.msra.mxu0 0
  %215 = vmatpush.bf16.msra.mxu0 0
  %216 = vmatpush.bf16.msra.mxu0 0
  %217 = vmatpush.bf16.msra.mxu0 0
  %218 = vmatpush.bf16.msra.mxu0 0
  %219 = vmatpush.bf16.msra.mxu0 0
  %220 = vmatpush.bf16.msra.mxu0 %v51
  %221 = vmatmul.bf16.gmra.mxu0 %v190
  %v222 = vpop.f32.mrf.mxu0
  %v223 = vadd.f32 %v71, %v222
  %v224 = vpop.f32.mrf.mxu0
  %v225 = vadd.f32 %v76, %v224
  %226 = vmatmul.bf16.gmra.mxu0 %v193
  %v227 = vpop.f32.mrf.mxu0
  %v228 = vadd.f32 %v81, %v227
  %v229 = vpop.f32.mrf.mxu0
  %v230 = vadd.f32 %v86, %v229
  %231 = vmatmul.bf16.gmra.mxu0 %v196
  %v232 = vpop.f32.mrf.mxu0
  %v233 = vadd.f32 %v91, %v232
  %v234 = vpop.f32.mrf.mxu0
  %v235 = vadd.f32 %v96, %v234
  %236 = vmatmul.bf16.gmra.mxu0 %v199
  %v237 = vpop.f32.mrf.mxu0
  %v238 = vadd.f32 %v101, %v237
  %v239 = vpop.f32.mrf.mxu0
  %v240 = vadd.f32 %v106, %v239
  %241 = vmatmul.bf16.gmra.mxu0 %v202
  %v242 = vpop.f32.mrf.mxu0
  %v243 = vadd.f32 %v111, %v242
  %v244 = vpop.f32.mrf.mxu0
  %v245 = vadd.f32 %v116, %v244
  %246 = vmatmul.bf16.gmra.mxu0 %v205
  %v247 = vpop.f32.mrf.mxu0
  %v248 = vadd.f32 %v121, %v247
  %v249 = vpop.f32.mrf.mxu0
  %v250 = vadd.f32 %v126, %v249
  %251 = vmatmul.bf16.gmra.mxu0 %v208
  %v252 = vpop.f32.mrf.mxu0
  %v253 = vadd.f32 %v131, %v252
  %v254 = vpop.f32.mrf.mxu0
  %v255 = vadd.f32 %v136, %v254
  %256 = vmatmul.bf16.gmra.mxu0 %v211
  %v257 = vpop.f32.mrf.mxu0
  %v258 = vadd.f32 %v141, %v257
  %v259 = vpop.f32.mrf.mxu0
  %v260 = vadd.f32 %v146, %v259
  %261 = vdwg.mxu0
  %v262 = vmax.f32 %v223, 0.0
  %v263 = vmax.f32 %v225, 0.0
  %v264 = vmax.f32 %v228, 0.0
  %v265 = vmax.f32 %v230, 0.0
  %v266 = vmax.f32 %v233, 0.0
  %v267 = vmax.f32 %v235, 0.0
  %v268 = vmax.f32 %v238, 0.0
  %v269 = vmax.f32 %v240, 0.0
  %v270 = vmax.f32 %v243, 0.0
  %v271 = vmax.f32 %v245, 0.0
  %v272 = vmax.f32 %v248, 0.0
  %v273 = vmax.f32 %v250, 0.0
  %v274 = vmax.f32 %v253, 0.0
  %v275 = vmax.f32 %v255, 0.0
  %v276 = vmax.f32 %v258, 0.0
  %v277 = vmax.f32 %v260, 0.0
  %v278 = vld [vmem:[%s2] sm:$0xf]
  %v279 = vld [vmem:[%s2 + $0x4] sm:$0xf]
  %v280 = vld [vmem:[%s2 + $0x8] sm:$0xf]
  %v281 = vld [vmem:[%s2 + $0xc] sm:$0xf]
  %v282 = vld [vmem:[%s2 + $0x10] sm:$0xf]
  %v283 = vld [vmem:[%s2 + $0x14] sm:$0xf]
  %v284 = vld [vmem:[%s2 + $0x18] sm:$0xf]
  %v285 = vld [vmem:[%s2 + $0x1c] sm:$0xf]
  %v286 = vld [vmem:[%s2 + $0x20] sm:$0xf]
  %v287 = vld [vmem:[%s2 + $0x24] sm:$0xf]
  %v288 = vld [vmem:[%s2 + $0x28] sm:$0xf]
  %v289 = vld [vmem:[%s2 + $0x2c] sm:$0xf]
  %v290 = vpack.c.bf16 %v263, %v262
  %v291 = vpack.c.bf16 %v265, %v264
  %v292 = vpack.c.bf16 %v267, %v266
  %v293 = vpack.c.bf16 %v269, %v268
  %v294 = vpack.c.bf16 %v271, %v270
  %v295 = vpack.c.bf16 %v273, %v272
  %v296 = vpack.c.bf16 %v275, %v274
  %v297 = vpack.c.bf16 %v277, %v276
  %v298 = vld [vmem:[%s8] sm:$0xff]
  %v299 = vld [vmem:[%s8 + $0x8] sm:$0xff]
  %v300 = vld [vmem:[%s8 + $0x10] sm:$0xff]
  %v301 = vld [vmem:[%s8 + $0x18] sm:$0xff]
  %v302 = vld [vmem:[%s8 + $0x20] sm:$0xff]
  %v303 = vld [vmem:[%s8 + $0x28] sm:$0xff]
  %v304 = vld [vmem:[%s8 + $0x30] sm:$0xff]
  %v305 = vld [vmem:[%s8 + $0x38] sm:$0xff]
  %v306 = vld [vmem:[%s8 + $0x40] sm:$0xff]
  %v307 = vld [vmem:[%s8 + $0x48] sm:$0xff]
  %v308 = vld [vmem:[%s8 + $0x50] sm:$0xff]
  %v309 = vld [vmem:[%s8 + $0x58] sm:$0xff]
  %311 = vset.pattern.permute.xlu0 1
  %312 = vperm.xlu0 %311, %v298
  %v313 = vpop.permute.xlu0 %312
  %316 = vset.pattern.permute.xlu0 1
  %317 = vperm.xlu0 %316, %v299
  %v318 = vpop.permute.xlu0 %317
  %321 = vset.pattern.permute.xlu0 1
  %322 = vperm.xlu0 %321, %v300
  %v323 = vpop.permute.xlu0 %322
  %326 = vset.pattern.permute.xlu0 1
  %327 = vperm.xlu0 %326, %v301
  %v328 = vpop.permute.xlu0 %327
  %331 = vset.pattern.permute.xlu0 1
  %332 = vperm.xlu0 %331, %v302
  %v333 = vpop.permute.xlu0 %332
  %336 = vset.pattern.permute.xlu0 1
  %337 = vperm.xlu0 %336, %v303
  %v338 = vpop.permute.xlu0 %337
  %341 = vset.pattern.permute.xlu0 1
  %342 = vperm.xlu0 %341, %v304
  %v343 = vpop.permute.xlu0 %342
  %346 = vset.pattern.permute.xlu0 1
  %347 = vperm.xlu0 %346, %v305
  %v348 = vpop.permute.xlu0 %347
  %351 = vset.pattern.permute.xlu0 1
  %352 = vperm.xlu0 %351, %v306
  %v353 = vpop.permute.xlu0 %352
  %356 = vset.pattern.permute.xlu0 1
  %357 = vperm.xlu0 %356, %v307
  %v358 = vpop.permute.xlu0 %357
  %361 = vset.pattern.permute.xlu0 1
  %362 = vperm.xlu0 %361, %v308
  %v363 = vpop.permute.xlu0 %362
  %366 = vset.pattern.permute.xlu0 1
  %367 = vperm.xlu0 %366, %v309
  %v368 = vpop.permute.xlu0 %367
  %v382 = vunpack.c.l.b16 %v278
  %v383 = vunpack.c.l.b16 %v279
  %v384 = vunpack.c.l.b16 %v280
  %v385 = vunpack.c.l.b16 %v281
  %v386 = vunpack.c.l.b16 %v282
  %v387 = vunpack.c.l.b16 %v283
  %v388 = vunpack.c.l.b16 %v284
  %v389 = vunpack.c.l.b16 %v285
  %v390 = vunpack.c.l.b16 %v286
  %v391 = vunpack.c.l.b16 %v287
  %v392 = vunpack.c.l.b16 %v288
  %v393 = vunpack.c.l.b16 %v289
  %v394 = vpack.c.b16 %v383, %v382
  %v395 = vpack.c.b16 %v385, %v384
  %v396 = vpack.c.b16 %v387, %v386
  %v397 = vpack.c.b16 %v389, %v388
  %v398 = vpack.c.b16 %v391, %v390
  %v399 = vpack.c.b16 %v393, %v392
  %406 = vmatpush.bf16.msra.mxu0 %v297
  %407 = vmatpush.bf16.msra.mxu0 %v296
  %408 = vmatpush.bf16.msra.mxu0 %v295
  %409 = vmatpush.bf16.msra.mxu0 %v294
  %410 = vmatpush.bf16.msra.mxu0 %v293
  %411 = vmatpush.bf16.msra.mxu0 %v292
  %412 = vmatpush.bf16.msra.mxu0 %v291
  %413 = vmatpush.bf16.msra.mxu0 %v290
  %414 = vmatmul.bf16.gmra.mxu0 %v394
  %v415 = vpop.f32.mrf.mxu0
  %v416 = vadd.f32 %v313, %v415
  %v417 = vpop.f32.mrf.mxu0
  %v418 = vadd.f32 %v318, %v417
  %419 = vmatmul.bf16.gmra.mxu0 %v395
  %v420 = vpop.f32.mrf.mxu0
  %v421 = vadd.f32 %v323, %v420
  %v422 = vpop.f32.mrf.mxu0
  %v423 = vadd.f32 %v328, %v422
  %424 = vmatmul.bf16.gmra.mxu0 %v396
  %v425 = vpop.f32.mrf.mxu0
  %v426 = vadd.f32 %v333, %v425
  %v427 = vpop.f32.mrf.mxu0
  %v428 = vadd.f32 %v338, %v427
  %429 = vmatmul.bf16.gmra.mxu0 %v397
  %v430 = vpop.f32.mrf.mxu0
  %v431 = vadd.f32 %v343, %v430
  %v432 = vpop.f32.mrf.mxu0
  %v433 = vadd.f32 %v348, %v432
  %434 = vmatmul.bf16.gmra.mxu0 %v398
  %v435 = vpop.f32.mrf.mxu0
  %v436 = vadd.f32 %v353, %v435
  %v437 = vpop.f32.mrf.mxu0
  %v438 = vadd.f32 %v358, %v437
  %439 = vmatmul.bf16.gmra.mxu0 %v399
  %v440 = vpop.f32.mrf.mxu0
  %v441 = vadd.f32 %v363, %v440
  %v442 = vpop.f32.mrf.mxu0
  %v443 = vadd.f32 %v368, %v442
  %444 = vdwg.mxu0
  %v445 = vmax.f32 %v426, 0.0
  %v446 = vmax.f32 %v428, 0.0
  %v447 = vmax.f32 %v431, 0.0
  %v448 = vmax.f32 %v433, 0.0
  %v449 = vmax.f32 %v436, 0.0
  %v450 = vmax.f32 %v438, 0.0
  %v451 = vmax.f32 %v441, 0.0
  %v452 = vmax.f32 %v443, 0.0
  %v453 = vld [vmem:[%s3] sm:$0xf]
  %v454 = vld [vmem:[%s3 + $0x4] sm:$0xf]
  %v455 = vld [vmem:[%s3 + $0x8] sm:$0xf]
  %v456 = vld [vmem:[%s3 + $0xc] sm:$0xf]
  %v457 = vpack.c.bf16 %v446, %v445
  %v458 = vpack.c.bf16 %v448, %v447
  %v459 = vpack.c.bf16 %v450, %v449
  %v460 = vpack.c.bf16 %v452, %v451
  %v461 = vld [vmem:[%s8] sm:$0xff]
  %v462 = vld [vmem:[%s8 + $0x8] sm:$0xff]
  %v463 = vld [vmem:[%s8 + $0x10] sm:$0xff]
  %v464 = vld [vmem:[%s8 + $0x18] sm:$0xff]
  %466 = vset.pattern.permute.xlu0 2
  %467 = vperm.xlu0 %466, %v461
  %v468 = vpop.permute.xlu0 %467
  %471 = vset.pattern.permute.xlu0 2
  %472 = vperm.xlu0 %471, %v462
  %v473 = vpop.permute.xlu0 %472
  %476 = vset.pattern.permute.xlu0 2
  %477 = vperm.xlu0 %476, %v463
  %v478 = vpop.permute.xlu0 %477
  %481 = vset.pattern.permute.xlu0 2
  %482 = vperm.xlu0 %481, %v464
  %v483 = vpop.permute.xlu0 %482
  %v489 = vunpack.c.l.b16 %v453
  %v490 = vunpack.c.l.b16 %v454
  %v491 = vunpack.c.l.b16 %v455
  %v492 = vunpack.c.l.b16 %v456
  %v493 = vpack.c.b16 %v490, %v489
  %v494 = vpack.c.b16 %v492, %v491
  %vm495 = vcmask 523264
  %v497 = vsel %vm495, %v493, 0
  %v500 = vsel %vm495, %v494, 0
  %502 = vmatpush.bf16.msra.mxu0 0
  %503 = vmatpush.bf16.msra.mxu0 0
  %504 = vmatpush.bf16.msra.mxu0 0
  %505 = vmatpush.bf16.msra.mxu0 0
  %506 = vmatpush.bf16.msra.mxu0 %v460
  %507 = vmatpush.bf16.msra.mxu0 %v459
  %508 = vmatpush.bf16.msra.mxu0 %v458
  %509 = vmatpush.bf16.msra.mxu0 %v457
  %510 = vmatmul.bf16.gmra.mxu0 %v497
  %v511 = vpop.f32.mrf.mxu0
  %v512 = vadd.f32 %v468, %v511
  %v513 = vpop.f32.mrf.mxu0
  %v514 = vadd.f32 %v473, %v513
  %515 = vmatmul.bf16.gmra.mxu0 %v500
  %v516 = vpop.f32.mrf.mxu0
  %v517 = vadd.f32 %v478, %v516
  %v518 = vpop.f32.mrf.mxu0
  %v519 = vadd.f32 %v483, %v518
  %520 = vdwg.mxu0
  %v521 = vadd.f32 %v416, %v512
  %v522 = vadd.f32 %v418, %v514
  %v523 = vadd.f32 %v421, %v517
  %v524 = vadd.f32 %v423, %v519
  %v525 = vmax.f32 %v521, 0.0
  %v526 = vmax.f32 %v522, 0.0
  %v527 = vmax.f32 %v523, 0.0
  %v528 = vmax.f32 %v524, 0.0
  %v529 = vld [vmem:[%s4] sm:$0xf]
  %v530 = vld [vmem:[%s4 + $0x4] sm:$0xf]
  %v531 = vld [vmem:[%s4 + $0x8] sm:$0xf]
  %v532 = vpack.c.bf16 %v526, %v525
  %v533 = vpack.c.bf16 %v528, %v527
  %v534 = vld [vmem:[%s8] sm:$0xff]
  %v535 = vld [vmem:[%s8 + $0x8] sm:$0xff]
  %v536 = vld [vmem:[%s8 + $0x10] sm:$0xff]
  %538 = vset.pattern.permute.xlu0 3
  %539 = vperm.xlu0 %538, %v534
  %v540 = vpop.permute.xlu0 %539
  %543 = vset.pattern.permute.xlu0 3
  %544 = vperm.xlu0 %543, %v535
  %v545 = vpop.permute.xlu0 %544
  %548 = vset.pattern.permute.xlu0 3
  %549 = vperm.xlu0 %548, %v536
  %v550 = vpop.permute.xlu0 %549
  %v555 = vunpack.c.l.b16 %v529
  %v556 = vunpack.c.l.b16 %v530
  %v557 = vunpack.c.l.b16 %v531
  %v558 = vpack.c.b16 %v556, %v555
  %v559 = vpack.c.b16 %v557, %v557
  %vm560 = vcmask 261120
  %v562 = vsel %vm560, %v558, 0
  %v565 = vsel %vm560, %v559, 0
  %567 = vmatpush.bf16.msra.mxu0 0
  %568 = vmatpush.bf16.msra.mxu0 0
  %569 = vmatpush.bf16.msra.mxu0 0
  %570 = vmatpush.bf16.msra.mxu0 0
  %571 = vmatpush.bf16.msra.mxu0 0
  %572 = vmatpush.bf16.msra.mxu0 0
  %573 = vmatpush.bf16.msra.mxu0 %v533
  %574 = vmatpush.bf16.msra.mxu0 %v532
  %575 = vmatmul.bf16.gmra.mxu0 %v562
  %v576 = vpop.f32.mrf.mxu0
  %v577 = vadd.f32 %v540, %v576
  %v578 = vpop.f32.mrf.mxu0
  %v579 = vadd.f32 %v545, %v578
  %580 = vmatmul.bf16.gmra.mxu0 %v565
  %v581 = vpop.f32.mrf.mxu0
  %v582 = vadd.f32 %v550, %v581
  %v583 = vpop.f32.mrf.mxu0
  %584 = vdwg.mxu0
  %v585 = vmax.f32 %v579, 0.0
  %v586 = vmax.f32 %v582, 0.0
  %v587 = vld [vmem:[%s5] sm:$0xf]
  %v588 = vpack.c.bf16 %v586, %v585
  %v589 = vld [vmem:[%s8] sm:$0xff]
  %591 = vset.pattern.permute.xlu0 4
  %592 = vperm.xlu0 %591, %v589
  %v593 = vpop.permute.xlu0 %592
  %v596 = vsel %vm188, %v587, 0
  %598 = vmatpush.bf16.msra.mxu0 0
  %599 = vmatpush.bf16.msra.mxu0 0
  %600 = vmatpush.bf16.msra.mxu0 0
  %601 = vmatpush.bf16.msra.mxu0 0
  %602 = vmatpush.bf16.msra.mxu0 0
  %603 = vmatpush.bf16.msra.mxu0 0
  %604 = vmatpush.bf16.msra.mxu0 0
  %605 = vmatpush.bf16.msra.mxu0 %v588
  %606 = vmatmul.bf16.gmra.mxu0 %v596
  %v607 = vpop.f32.mrf.mxu0
  %v608 = vadd.f32 %v593, %v607
  %v609 = vpop.f32.mrf.mxu0
  %610 = vdwg.mxu0
  %v611 = vadd.f32 %v577, %v608
  %v612 = vmax.f32 %v611, 0.0
  %v613 = vld [vmem:[%s6] sm:$0xf]
  %v614 = vld [vmem:[%s6 + $0x4] sm:$0x3]
  %v615 = vpack.c.bf16 %v612, %v612
  %v616 = vld [vmem:[%s8] sm:$0xff]
  %v617 = vld [vmem:[%s8 + $0x8] sm:$0xf]
  %619 = vset.pattern.permute.xlu0 5
  %620 = vperm.xlu0 %619, %v616
  %v621 = vpop.permute.xlu0 %620
  %624 = vset.pattern.permute.xlu0 5
  %625 = vperm.xlu0 %624, %v617
  %v626 = vpop.permute.xlu0 %625
  %v630 = vunpack.c.l.b16 %v613
  %v631 = vunpack.c.l.b16 %v614
  %v632 = vpack.c.b16 %v631, %v630
  %vm633 = vcmask 64512
  %v635 = vsel %vm633, %v632, 0
  %vm637 = vcmask 1043456
  %v639 = vsel %vm637, %v615, 0
  %641 = vmatpush.bf16.msra.mxu0 0
  %642 = vmatpush.bf16.msra.mxu0 0
  %643 = vmatpush.bf16.msra.mxu0 0
  %644 = vmatpush.bf16.msra.mxu0 0
  %645 = vmatpush.bf16.msra.mxu0 0
  %646 = vmatpush.bf16.msra.mxu0 0
  %647 = vmatpush.bf16.msra.mxu0 0
  %648 = vmatpush.bf16.msra.mxu0 %v639
  %649 = vmatmul.bf16.gmra.mxu0 %v635
  %v650 = vpop.f32.mrf.mxu0
  %v651 = vadd.f32 %v621, %v650
  %v652 = vpop.f32.mrf.mxu0
  %v653 = vadd.f32 %v626, %v652
  %654 = vdwg.mxu0
  %v655 = vmax.f32 %v651, 0.0
  %v656 = vmax.f32 %v653, 0.0
  %v657 = vld [vmem:[%s7] sm:$0xf]
  %v658 = vpack.c.bf16 %v656, %v655
  %659 = vset.pattern.permute.xlu0 6
  %660 = vperm.xlu0 %659, %v589
  %v661 = vpop.permute.xlu0 %660
  %vm663 = vcmask 97280
  %v665 = vsel %vm663, %v657, 0
  %vm667 = vcmask 1045504
  %v669 = vsel %vm667, %v658, 0
  %671 = vmatpush.bf16.msra.mxu0 0
  %672 = vmatpush.bf16.msra.mxu0 0
  %673 = vmatpush.bf16.msra.mxu0 0
  %674 = vmatpush.bf16.msra.mxu0 0
  %675 = vmatpush.bf16.msra.mxu0 0
  %676 = vmatpush.bf16.msra.mxu0 0
  %677 = vmatpush.bf16.msra.mxu0 0
  %678 = vmatpush.bf16.msra.mxu0 %v669
  %679 = vmatmul.bf16.gmra.mxu0 %v665
  %v680 = vpop.f32.mrf.mxu0
  %v681 = vadd.f32 %v661, %v680
  %v682 = vpop.f32.mrf.mxu0
  %683 = vdwg.mxu0
  %684 = vst [vmem:[%s9] sm:$0xff] %v681
  // Predicated region
  $region38: #{listnet_forward.3} parent=0 // pred_check
    _
  $region39: #{listnet_forward.3} parent=0 // pred_check_branch
    %686 = sbr.rel (0) target = $region41
  $region40: #{listnet_forward.3} parent=0 // pred_region
    _
  $region41: #{listnet_forward.3} parent=0 // pred_fallthru
    _
  // Predicated region
  $region42: #{listnet_forward.3} parent=0 // pred_check
    _
  $region43: #{listnet_forward.3} parent=0 // pred_check_branch
    %688 = sbr.rel (0) target = $region45
  $region44: #{listnet_forward.3} parent=0 // pred_region
    _
  $region45: #{listnet_forward.3} parent=0 // pred_fallthru
    _

// kernel: listnet_forward.2
$region0: #{listnet_forward.2}
  #allocation0 [shape = 'u32[]', space=smem, size = 0x4, offset = 0x4, fixed_abs, tag = 'smem constant byte address 0x4 - core index']
  #allocation1 [shape = 'u32[72,128]{1,0:T(1,128)}', space=vmem, size = 0x9000, scoped, tag = 'internal scratch']
  #allocation2 [shape = 'f32[64,4]{1,0:T(8,128)}', space=vmem, size = 0x8000, scoped, tag = 'scratch operand']
  #allocation3 [shape = 'f32[32,4]{1,0:T(8,128)}', space=vmem, size = 0x4000, scoped, tag = 'scratch operand']
  #allocation4 [shape = 'f32[16,4]{1,0:T(8,128)}', space=vmem, size = 0x2000, scoped, tag = 'scratch operand']
  #allocation5 [shape = 'f32[8,4]{1,0:T(8,128)}', space=vmem, size = 0x1000, scoped, tag = 'scratch operand']
  %s0 = inlined_call_operand.vmem [shape: f32[16,128], index: 0, kind: input, shape index: {}]
  %s1 = inlined_call_operand.vmem [shape: f32[128,16], index: 1, kind: input, shape index: {}]
  %s2 = inlined_call_operand.vmem [shape: f32[96,128], index: 2, kind: input, shape index: {}]
  %s3 = inlined_call_operand.vmem [shape: f32[32,64], index: 3, kind: input, shape index: {}]
  %s4 = inlined_call_operand.vmem [shape: f32[24,32], index: 4, kind: input, shape index: {}]
  %s5 = inlined_call_operand.vmem [shape: f32[8,16], index: 5, kind: input, shape index: {}]
  %s6 = inlined_call_operand.vmem [shape: f32[128,16], index: 6, kind: input, shape index: {}]
  %s7 = inlined_call_operand.vmem [shape: f32[128,8], index: 7, kind: output, shape index: {}]
  %s8 = sld [smem:[#allocation0]]
  $region137: #{listnet_forward.2} parent=0
    _
  %s10 = ssub.s32 1, %s8
  %s11 = scalar_select 0, %s10, %s8
  loop: start=0, step=1, limit=6
  $region2: #{listnet_forward.2} parent=0 // loop_pre_header
    _
  $region3: #{listnet_forward.2} parent=0 // loop_header
    %s13 = sphi 0, %s17
    %p14 = scmp.ge.s32.totalorder %s13, 6
    %s20 = sphi 0, %s32
    %s21 = sphi 0, %s28
    %s22 = sphi 0, %s20
    %s23 = sphi 0, %s21
    %s24 = sphi 0, %s22
    %s25 = sphi 0, %s23
    %s35 = sphi 0, %s37
    %s38 = sphi 0, %s35
    %s39 = sphi 0, %s38
    %s55 = sphi 0, %s39
    %s59 = sphi 0, %s59
    %s61 = sphi 0, %s59
    %s62 = sphi 0, %s61
    %s76 = sphi 0, %s62
    %s80 = sphi 0, %s80
    %s82 = sphi 0, %s80
    %s83 = sphi 0, %s82
    %s97 = sphi 0, %s83
    %s101 = sphi 0, %s101
    %s103 = sphi 0, %s101
    %s104 = sphi 0, %s103
    %s118 = sphi 0, %s104
    %s122 = sphi 0, %s122
    %s124 = sphi 0, %s122
    %s125 = sphi 0, %s124
    %s139 = sphi 0, %s125
    %s143 = sphi 0, %s143
    %s145 = sphi 0, %s143
    %s146 = sphi 0, %s145
    %s160 = sphi 0, %s146
    %s164 = sphi 0, %s164
    %s166 = sphi 0, %s164
    %s167 = sphi 0, %s166
    %s181 = sphi 0, %s167
    %s185 = sphi 0, %s185
    %s187 = sphi 0, %s185
    %s188 = sphi 0, %s187
    %s202 = sphi 0, %s188
  $region4: #{listnet_forward.2} parent=0 // loop_header_branch
    %16 = sbr.rel (%p14) target = $region8
  $region5: #{listnet_forward.2} parent=0 // loop_body
    %s18 = ssub.s32 %s13, 1
    %s19 = ssub.s32 %s13, 2
    %s26 = sadd.s32 1, %s21
    %p27 = scmp.ge.s32.totalorder %s26, 1
    %s28 = scalar_select %p27, 0, %s26
    %s29 = sadd.s32 1, %s20
    %s30 = scalar_select %p27, %s29, %s20
    %p31 = scmp.ge.s32.totalorder %s30, 4
    %s32 = scalar_select %p31, 0, %s30
    %s33 = ssub.s32 %s21, %s28
    %p34 = scmp.eq.s32.totalorder %s33, 0
    %s36 = sadd.s32 %s35, 1
    %s37 = scalar_select %p34, %s35, %s36
    %p40 = pneg %p34
    %p41 = scmp.eq.s32.totalorder %s13, 3
    %p42 = por %p40, %p41
    %p43 = scmp.ne.s32.totalorder %s35, %s38
    %p44 = scmp.eq.s32.totalorder %s13, 0
    %p45 = por %p43, %p44
    %p46 = scmp.ne.s32.totalorder %s35, %s38
    %p47 = scmp.eq.s32.totalorder %s18, 3
    %p48 = por %p46, %p47
    %p49 = scmp.ne.s32.totalorder %s38, %s39
    %p50 = scmp.eq.s32.totalorder %s18, 0
    %p51 = por %p49, %p50
    %p52 = scmp.ne.s32.totalorder %s38, %s39
    %p53 = scmp.eq.s32.totalorder %s19, 3
    %p54 = por %p52, %p53
    %p56 = scmp.ne.s32.totalorder %s39, %s55
    %p57 = scmp.eq.s32.totalorder %s19, 0
    %p58 = por %p56, %p57
    %s60 = sadd.s32 %s59, 1
    %p63 = scmp.eq.s32.totalorder %s13, 3
    %p64 = scmp.ne.s32.totalorder %s59, %s61
    %p65 = scmp.eq.s32.totalorder %s13, 0
    %p66 = por %p64, %p65
    %p67 = scmp.ne.s32.totalorder %s59, %s61
    %p68 = scmp.eq.s32.totalorder %s18, 3
    %p69 = por %p67, %p68
    %p70 = scmp.ne.s32.totalorder %s61, %s62
    %p71 = scmp.eq.s32.totalorder %s18, 0
    %p72 = por %p70, %p71
    %p73 = scmp.ne.s32.totalorder %s61, %s62
    %p74 = scmp.eq.s32.totalorder %s19, 3
    %p75 = por %p73, %p74
    %p77 = scmp.ne.s32.totalorder %s62, %s76
    %p78 = scmp.eq.s32.totalorder %s19, 0
    %p79 = por %p77, %p78
    %s81 = sadd.s32 %s80, 1
    %p84 = scmp.eq.s32.totalorder %s13, 3
    %p85 = scmp.ne.s32.totalorder %s80, %s82
    %p86 = scmp.eq.s32.totalorder %s13, 0
    %p87 = por %p85, %p86
    %p88 = scmp.ne.s32.totalorder %s80, %s82
    %p89 = scmp.eq.s32.totalorder %s18, 3
    %p90 = por %p88, %p89
    %p91 = scmp.ne.s32.totalorder %s82, %s83
    %p92 = scmp.eq.s32.totalorder %s18, 0
    %p93 = por %p91, %p92
    %p94 = scmp.ne.s32.totalorder %s82, %s83
    %p95 = scmp.eq.s32.totalorder %s19, 3
    %p96 = por %p94, %p95
    %p98 = scmp.ne.s32.totalorder %s83, %s97
    %p99 = scmp.eq.s32.totalorder %s19, 0
    %p100 = por %p98, %p99
    %s102 = sadd.s32 %s101, 1
    %p105 = scmp.eq.s32.totalorder %s13, 3
    %p106 = scmp.ne.s32.totalorder %s101, %s103
    %p107 = scmp.eq.s32.totalorder %s13, 0
    %p108 = por %p106, %p107
    %p109 = scmp.ne.s32.totalorder %s101, %s103
    %p110 = scmp.eq.s32.totalorder %s18, 3
    %p111 = por %p109, %p110
    %p112 = scmp.ne.s32.totalorder %s103, %s104
    %p113 = scmp.eq.s32.totalorder %s18, 0
    %p114 = por %p112, %p113
    %p115 = scmp.ne.s32.totalorder %s103, %s104
    %p116 = scmp.eq.s32.totalorder %s19, 3
    %p117 = por %p115, %p116
    %p119 = scmp.ne.s32.totalorder %s104, %s118
    %p120 = scmp.eq.s32.totalorder %s19, 0
    %p121 = por %p119, %p120
    %s123 = sadd.s32 %s122, 1
    %p126 = scmp.eq.s32.totalorder %s13, 3
    %p127 = scmp.ne.s32.totalorder %s122, %s124
    %p128 = scmp.eq.s32.totalorder %s13, 0
    %p129 = por %p127, %p128
    %p130 = scmp.ne.s32.totalorder %s122, %s124
    %p131 = scmp.eq.s32.totalorder %s18, 3
    %p132 = por %p130, %p131
    %p133 = scmp.ne.s32.totalorder %s124, %s125
    %p134 = scmp.eq.s32.totalorder %s18, 0
    %p135 = por %p133, %p134
    %p136 = scmp.ne.s32.totalorder %s124, %s125
    %p137 = scmp.eq.s32.totalorder %s19, 3
    %p138 = por %p136, %p137
    %p140 = scmp.ne.s32.totalorder %s125, %s139
    %p141 = scmp.eq.s32.totalorder %s19, 0
    %p142 = por %p140, %p141
    %s144 = sadd.s32 %s143, 1
    %p147 = scmp.eq.s32.totalorder %s13, 3
    %p148 = scmp.ne.s32.totalorder %s143, %s145
    %p149 = scmp.eq.s32.totalorder %s13, 0
    %p150 = por %p148, %p149
    %p151 = scmp.ne.s32.totalorder %s143, %s145
    %p152 = scmp.eq.s32.totalorder %s18, 3
    %p153 = por %p151, %p152
    %p154 = scmp.ne.s32.totalorder %s145, %s146
    %p155 = scmp.eq.s32.totalorder %s18, 0
    %p156 = por %p154, %p155
    %p157 = scmp.ne.s32.totalorder %s145, %s146
    %p158 = scmp.eq.s32.totalorder %s19, 3
    %p159 = por %p157, %p158
    %p161 = scmp.ne.s32.totalorder %s146, %s160
    %p162 = scmp.eq.s32.totalorder %s19, 0
    %p163 = por %p161, %p162
    %s165 = sadd.s32 %s164, 1
    %p168 = scmp.eq.s32.totalorder %s13, 3
    %p169 = scmp.ne.s32.totalorder %s164, %s166
    %p170 = scmp.eq.s32.totalorder %s13, 0
    %p171 = por %p169, %p170
    %p172 = scmp.ne.s32.totalorder %s164, %s166
    %p173 = scmp.eq.s32.totalorder %s18, 3
    %p174 = por %p172, %p173
    %p175 = scmp.ne.s32.totalorder %s166, %s167
    %p176 = scmp.eq.s32.totalorder %s18, 0
    %p177 = por %p175, %p176
    %p178 = scmp.ne.s32.totalorder %s166, %s167
    %p179 = scmp.eq.s32.totalorder %s19, 3
    %p180 = por %p178, %p179
    %p182 = scmp.ne.s32.totalorder %s167, %s181
    %p183 = scmp.eq.s32.totalorder %s19, 0
    %p184 = por %p182, %p183
    %s186 = sadd.s32 %s185, 1
    %p189 = scmp.eq.s32.totalorder %s13, 3
    %p190 = scmp.ne.s32.totalorder %s185, %s187
    %p191 = scmp.eq.s32.totalorder %s13, 0
    %p192 = por %p190, %p191
    %p193 = scmp.ne.s32.totalorder %s185, %s187
    %p194 = scmp.eq.s32.totalorder %s18, 3
    %p195 = por %p193, %p194
    %p196 = scmp.ne.s32.totalorder %s187, %s188
    %p197 = scmp.eq.s32.totalorder %s18, 0
    %p198 = por %p196, %p197
    %p199 = scmp.ne.s32.totalorder %s187, %s188
    %p200 = scmp.eq.s32.totalorder %s19, 3
    %p201 = por %p199, %p200
    %p203 = scmp.ne.s32.totalorder %s188, %s202
    %p204 = scmp.eq.s32.totalorder %s19, 0
    %p205 = por %p203, %p204
    %p206 = scmp.le.s32.totalorder 1, %s13
    %p207 = scmp.lt.s32.totalorder %s13, 5
    %p208 = pnand %p206, %p207
    %p209 = pneg %p208
    // Predicated region
    $region9: #{listnet_forward.2} parent=5 // pred_check
      _
    $region10: #{listnet_forward.2} parent=5 // pred_check_branch
      %211 = sbr.rel (%p208) target = $region12
    $region11: #{listnet_forward.2} parent=5 // pred_region
      %s212 = ssub.s32 %s13, 1
      // Predicated region
      $region13: #{listnet_forward.2} parent=11 // pred_check
        %p213 = pneg %p51
      $region14: #{listnet_forward.2} parent=11 // pred_check_branch
        %215 = sbr.rel (%p213) target = $region16
      $region15: #{listnet_forward.2} parent=11 // pred_region
        %p216 = scmp.lt.s32.totalorder %s23, 0
        %s217 = scalar_select %p216, %s23, 0
        %s218 = smul.addr %s217, 8
        %s219 = scalar_lea.vmem %s0, %s218
      $region16: #{listnet_forward.2} parent=11 // pred_fallthru
        _
      // Predicated region
      $region17: #{listnet_forward.2} parent=11 // pred_check
        %p220 = pneg %p72
      $region18: #{listnet_forward.2} parent=11 // pred_check_branch
        %222 = sbr.rel (%p220) target = $region20
      $region19: #{listnet_forward.2} parent=11 // pred_region
        _
      $region20: #{listnet_forward.2} parent=11 // pred_fallthru
        _
      // Predicated region
      $region21: #{listnet_forward.2} parent=11 // pred_check
        %p223 = pneg %p93
      $region22: #{listnet_forward.2} parent=11 // pred_check_branch
        %225 = sbr.rel (%p223) target = $region24
      $region23: #{listnet_forward.2} parent=11 // pred_region
        _
      $region24: #{listnet_forward.2} parent=11 // pred_fallthru
        _
      // Predicated region
      $region25: #{listnet_forward.2} parent=11 // pred_check
        %p226 = pneg %p114
      $region26: #{listnet_forward.2} parent=11 // pred_check_branch
        %228 = sbr.rel (%p226) target = $region28
      $region27: #{listnet_forward.2} parent=11 // pred_region
        _
      $region28: #{listnet_forward.2} parent=11 // pred_fallthru
        _
      // Predicated region
      $region29: #{listnet_forward.2} parent=11 // pred_check
        %p229 = pneg %p135
      $region30: #{listnet_forward.2} parent=11 // pred_check_branch
        %231 = sbr.rel (%p229) target = $region32
      $region31: #{listnet_forward.2} parent=11 // pred_region
        _
      $region32: #{listnet_forward.2} parent=11 // pred_fallthru
        _
      // Predicated region
      $region33: #{listnet_forward.2} parent=11 // pred_check
        %p232 = pneg %p156
      $region34: #{listnet_forward.2} parent=11 // pred_check_branch
        %234 = sbr.rel (%p232) target = $region36
      $region35: #{listnet_forward.2} parent=11 // pred_region
        _
      $region36: #{listnet_forward.2} parent=11 // pred_fallthru
        _
      // Predicated region
      $region37: #{listnet_forward.2} parent=11 // pred_check
        %p235 = pneg %p177
      $region38: #{listnet_forward.2} parent=11 // pred_check_branch
        %237 = sbr.rel (%p235) target = $region40
      $region39: #{listnet_forward.2} parent=11 // pred_region
        _
      $region40: #{listnet_forward.2} parent=11 // pred_fallthru
        _
    $region12: #{listnet_forward.2} parent=5 // pred_fallthru
      _
    %p238 = scmp.lt.s32.totalorder %s13, 4
    // Predicated region
    $region41: #{listnet_forward.2} parent=5 // pred_check
      %p239 = pneg %p238
    $region42: #{listnet_forward.2} parent=5 // pred_check_branch
      %241 = sbr.rel (%p239) target = $region44
    $region43: #{listnet_forward.2} parent=5 // pred_region
      _
    $region44: #{listnet_forward.2} parent=5 // pred_fallthru
      _
    %p242 = scmp.le.s32.totalorder 1, %s13
    %p243 = scmp.lt.s32.totalorder %s13, 5
    %p244 = pnand %p242, %p243
    %p245 = pneg %p244
    // Predicated region
    $region45: #{listnet_forward.2} parent=5 // pred_check
      _
    $region46: #{listnet_forward.2} parent=5 // pred_check_branch
      %247 = sbr.rel (%p244) target = $region48
    $region47: #{listnet_forward.2} parent=5 // pred_region
      %s248 = ssub.s32 %s13, 1
      %p249 = scmp.lt.s32.totalorder %s23, 0
      %s250 = scalar_select %p249, %s23, 0
      %s251 = smul.addr %s250, 8
      %s252 = scalar_lea.vmem %s0, %s251
      %p253 = pneg %p51
      %p254 = pneg %p48
      %p255 = pneg %p72
      %p256 = pneg %p69
      %p257 = pneg %p93
      %p258 = pneg %p90
      %p259 = pneg %p114
      %p260 = pneg %p111
      %p261 = pneg %p135
      %p262 = pneg %p132
      %p263 = pneg %p156
      %p264 = pneg %p153
      %p265 = pneg %p177
      %p266 = pneg %p174
      %p267 = pneg %p198
      %p268 = pneg %p195
      %p269 = scmp.lt.s32.totalorder %s23, 0
      %s270 = scalar_select %p269, %s23, 0
      %s271 = smul.addr %s270, 8
      %s272 = scalar_lea.vmem %s0, %s271
      %p273 = scmp.eq.s32.totalorder %s22, 0
      %p274 = scmp.eq.s32.totalorder %s23, 0
      %p275 = pnand %p273, %p274
      %p276 = pneg %p275
      // Predicated region
      $region49: #{listnet_forward.2} parent=47 // pred_check
        _
      $region50: #{listnet_forward.2} parent=47 // pred_check_branch
        %278 = sbr.rel (%p275) target = $region52
      $region51: #{listnet_forward.2} parent=47 // pred_region
        %vm279 = vcmask 31744
        %280 = vst.msk [vmem:[#allocation2] sm:$0xff] %vm279, 0.0
        %281 = vst.msk [vmem:[#allocation2 + $0x8] sm:$0xff] %vm279, 0.0
        %282 = vst.msk [vmem:[#allocation2 + $0x10] sm:$0xff] %vm279, 0.0
        %283 = vst.msk [vmem:[#allocation2 + $0x18] sm:$0xff] %vm279, 0.0
        %284 = vst.msk [vmem:[#allocation2 + $0x20] sm:$0xff] %vm279, 0.0
        %285 = vst.msk [vmem:[#allocation2 + $0x28] sm:$0xff] %vm279, 0.0
        %286 = vst.msk [vmem:[#allocation2 + $0x30] sm:$0xff] %vm279, 0.0
        %287 = vst.msk [vmem:[#allocation2 + $0x38] sm:$0xff] %vm279, 0.0
        %288 = vst.msk [vmem:[#allocation3] sm:$0xff] %vm279, 0.0
        %289 = vst.msk [vmem:[#allocation3 + $0x8] sm:$0xff] %vm279, 0.0
        %290 = vst.msk [vmem:[#allocation3 + $0x10] sm:$0xff] %vm279, 0.0
        %291 = vst.msk [vmem:[#allocation3 + $0x18] sm:$0xff] %vm279, 0.0
        %292 = vst.msk [vmem:[#allocation4] sm:$0xff] %vm279, 0.0
        %293 = vst.msk [vmem:[#allocation4 + $0x8] sm:$0xff] %vm279, 0.0
        %294 = vst.msk [vmem:[#allocation5] sm:$0xff] %vm279, 0.0
      $region52: #{listnet_forward.2} parent=47 // pred_fallthru
        _
      %p295 = scmp.eq.s32.totalorder %s22, 1
      %p296 = pnand %p295, %p274
      %p297 = pneg %p296
      // Predicated region
      $region53: #{listnet_forward.2} parent=47 // pred_check
        _
      $region54: #{listnet_forward.2} parent=47 // pred_check_branch
        %299 = sbr.rel (%p296) target = $region56
      $region55: #{listnet_forward.2} parent=47 // pred_region
        %v300 = vld [vmem:[%s6] sm:$0xff]
        %v301 = vld [vmem:[%s6 + $0x8] sm:$0xff]
        %v302 = vld [vmem:[%s6 + $0x10] sm:$0xff]
        %v303 = vld [vmem:[%s6 + $0x18] sm:$0xff]
        %v304 = vld [vmem:[%s6 + $0x20] sm:$0xff]
        %v305 = vld [vmem:[%s6 + $0x28] sm:$0xff]
        %v306 = vld [vmem:[%s6 + $0x30] sm:$0xff]
        %v307 = vld [vmem:[%s6 + $0x38] sm:$0xff]
        %v308 = vld [vmem:[#allocation2] sm:$0xff]
        %v309 = vld [vmem:[#allocation2 + $0x8] sm:$0xff]
        %v310 = vld [vmem:[#allocation2 + $0x10] sm:$0xff]
        %v311 = vld [vmem:[#allocation2 + $0x18] sm:$0xff]
        %v312 = vld [vmem:[#allocation2 + $0x20] sm:$0xff]
        %v313 = vld [vmem:[#allocation2 + $0x28] sm:$0xff]
        %v314 = vld [vmem:[#allocation2 + $0x30] sm:$0xff]
        %v315 = vld [vmem:[#allocation2 + $0x38] sm:$0xff]
        %v316 = vmul.f32 %v308, 0.0625
        %v317 = vmul.f32 %v309, 0.0625
        %v318 = vmul.f32 %v310, 0.0625
        %v319 = vmul.f32 %v311, 0.0625
        %v320 = vmul.f32 %v312, 0.0625
        %v321 = vmul.f32 %v313, 0.0625
        %v322 = vmul.f32 %v314, 0.0625
        %v323 = vmul.f32 %v315, 0.0625
        %v324 = vmul.f32 %v316, %v316
        %v325 = vmul.f32 %v317, %v317
        %v326 = vmul.f32 %v318, %v318
        %v327 = vmul.f32 %v319, %v319
        %v328 = vmul.f32 %v320, %v320
        %v329 = vmul.f32 %v321, %v321
        %v330 = vmul.f32 %v322, %v322
        %v331 = vmul.f32 %v323, %v323
        %340 = vrot.lane.b32.xlu0 %v324, 1
        %v341 = vpop.permute.xlu0 %340
        %342 = vrot.lane.b32.xlu0 %v325, 1
        %v343 = vpop.permute.xlu0 %342
        %344 = vrot.lane.b32.xlu0 %v326, 1
        %v345 = vpop.permute.xlu0 %344
        %346 = vrot.lane.b32.xlu0 %v327, 1
        %v347 = vpop.permute.xlu0 %346
        %348 = vrot.lane.b32.xlu0 %v328, 1
        %v349 = vpop.permute.xlu0 %348
        %350 = vrot.lane.b32.xlu0 %v329, 1
        %v351 = vpop.permute.xlu0 %350
        %352 = vrot.lane.b32.xlu0 %v330, 1
        %v353 = vpop.permute.xlu0 %352
        %354 = vrot.lane.b32.xlu0 %v331, 1
        %v355 = vpop.permute.xlu0 %354
        %v364 = vsub.f32 %v316, %v341
        %v365 = vsub.f32 %v317, %v343
        %v366 = vsub.f32 %v318, %v345
        %v367 = vsub.f32 %v319, %v347
        %v368 = vsub.f32 %v320, %v349
        %v369 = vsub.f32 %v321, %v351
        %v370 = vsub.f32 %v322, %v353
        %v371 = vsub.f32 %v323, %v355
        %v372 = vmax.f32 %v364, 0.0
        %v373 = vmax.f32 %v365, 0.0
        %v374 = vmax.f32 %v366, 0.0
        %v375 = vmax.f32 %v367, 0.0
        %v376 = vmax.f32 %v368, 0.0
        %v377 = vmax.f32 %v369, 0.0
        %v378 = vmax.f32 %v370, 0.0
        %v379 = vmax.f32 %v371, 0.0
        %v380 = vadd.f32 %v372, 1e-05
        %v381 = vadd.f32 %v373, 1e-05
        %v382 = vadd.f32 %v374, 1e-05
        %v383 = vadd.f32 %v375, 1e-05
        %v384 = vadd.f32 %v376, 1e-05
        %v385 = vadd.f32 %v377, 1e-05
        %v386 = vadd.f32 %v378, 1e-05
        %v387 = vadd.f32 %v379, 1e-05
        %v388 = vrsqrt.pop %v380
        %v389 = vmul.f32 %v388, %v380
        %v390 = vmul.f32 %v389, %v388
        %v391 = vmul.f32 0.5, %v390
        %v392 = vsub.f32 1.5, %v391
        %v393 = vmul.f32 %v388, %v392
        %vm394 = vweird.f32 %v380
        %vm395 = vweird.f32 %v388
        %vm396 = vmor %vm394, %vm395
        %v397 = vsel %vm396, %v388, %v393
        %v398 = vrsqrt.pop %v381
        %v399 = vmul.f32 %v398, %v381
        %v400 = vmul.f32 %v399, %v398
        %v401 = vmul.f32 0.5, %v400
        %v402 = vsub.f32 1.5, %v401
        %v403 = vmul.f32 %v398, %v402
        %vm404 = vweird.f32 %v381
        %vm405 = vweird.f32 %v398
        %vm406 = vmor %vm404, %vm405
        %v407 = vsel %vm406, %v398, %v403
        %v408 = vrsqrt.pop %v382
        %v409 = vmul.f32 %v408, %v382
        %v410 = vmul.f32 %v409, %v408
        %v411 = vmul.f32 0.5, %v410
        %v412 = vsub.f32 1.5, %v411
        %v413 = vmul.f32 %v408, %v412
        %vm414 = vweird.f32 %v382
        %vm415 = vweird.f32 %v408
        %vm416 = vmor %vm414, %vm415
        %v417 = vsel %vm416, %v408, %v413
        %v418 = vrsqrt.pop %v383
        %v419 = vmul.f32 %v418, %v383
        %v420 = vmul.f32 %v419, %v418
        %v421 = vmul.f32 0.5, %v420
        %v422 = vsub.f32 1.5, %v421
        %v423 = vmul.f32 %v418, %v422
        %vm424 = vweird.f32 %v383
        %vm425 = vweird.f32 %v418
        %vm426 = vmor %vm424, %vm425
        %v427 = vsel %vm426, %v418, %v423
        %v428 = vrsqrt.pop %v384
        %v429 = vmul.f32 %v428, %v384
        %v430 = vmul.f32 %v429, %v428
        %v431 = vmul.f32 0.5, %v430
        %v432 = vsub.f32 1.5, %v431
        %v433 = vmul.f32 %v428, %v432
        %vm434 = vweird.f32 %v384
        %vm435 = vweird.f32 %v428
        %vm436 = vmor %vm434, %vm435
        %v437 = vsel %vm436, %v428, %v433
        %v438 = vrsqrt.pop %v385
        %v439 = vmul.f32 %v438, %v385
        %v440 = vmul.f32 %v439, %v438
        %v441 = vmul.f32 0.5, %v440
        %v442 = vsub.f32 1.5, %v441
        %v443 = vmul.f32 %v438, %v442
        %vm444 = vweird.f32 %v385
        %vm445 = vweird.f32 %v438
        %vm446 = vmor %vm444, %vm445
        %v447 = vsel %vm446, %v438, %v443
        %v448 = vrsqrt.pop %v386
        %v449 = vmul.f32 %v448, %v386
        %v450 = vmul.f32 %v449, %v448
        %v451 = vmul.f32 0.5, %v450
        %v452 = vsub.f32 1.5, %v451
        %v453 = vmul.f32 %v448, %v452
        %vm454 = vweird.f32 %v386
        %vm455 = vweird.f32 %v448
        %vm456 = vmor %vm454, %vm455
        %v457 = vsel %vm456, %v448, %v453
        %v458 = vrsqrt.pop %v387
        %v459 = vmul.f32 %v458, %v387
        %v460 = vmul.f32 %v459, %v458
        %v461 = vmul.f32 0.5, %v460
        %v462 = vsub.f32 1.5, %v461
        %v463 = vmul.f32 %v458, %v462
        %vm464 = vweird.f32 %v387
        %vm465 = vweird.f32 %v458
        %vm466 = vmor %vm464, %vm465
        %v467 = vsel %vm466, %v458, %v463
        %476 = vrot.lane.b32.xlu0 %v397, 3
        %v477 = vpop.permute.xlu0 %476
        %478 = vrot.lane.b32.xlu0 %v407, 3
        %v479 = vpop.permute.xlu0 %478
        %480 = vrot.lane.b32.xlu0 %v417, 3
        %v481 = vpop.permute.xlu0 %480
        %482 = vrot.lane.b32.xlu0 %v427, 3
        %v483 = vpop.permute.xlu0 %482
        %484 = vrot.lane.b32.xlu0 %v437, 3
        %v485 = vpop.permute.xlu0 %484
        %486 = vrot.lane.b32.xlu0 %v447, 3
        %v487 = vpop.permute.xlu0 %486
        %488 = vrot.lane.b32.xlu0 %v457, 3
        %v489 = vpop.permute.xlu0 %488
        %490 = vrot.lane.b32.xlu0 %v467, 3
        %v491 = vpop.permute.xlu0 %490
        %v500 = vmul.f32 %v300, %v477
        %v501 = vmul.f32 %v301, %v479
        %v502 = vmul.f32 %v302, %v481
        %v503 = vmul.f32 %v303, %v483
        %v504 = vmul.f32 %v304, %v485
        %v505 = vmul.f32 %v305, %v487
        %v506 = vmul.f32 %v306, %v489
        %v507 = vmul.f32 %v307, %v491
        %516 = vrot.lane.b32.xlu0 %v500, 126
        %v517 = vpop.permute.xlu0 %516
        %518 = vrot.lane.b32.xlu0 %v501, 126
        %v519 = vpop.permute.xlu0 %518
        %520 = vrot.lane.b32.xlu0 %v502, 126
        %v521 = vpop.permute.xlu0 %520
        %522 = vrot.lane.b32.xlu0 %v503, 126
        %v523 = vpop.permute.xlu0 %522
        %524 = vrot.lane.b32.xlu0 %v504, 126
        %v525 = vpop.permute.xlu0 %524
        %526 = vrot.lane.b32.xlu0 %v505, 126
        %v527 = vpop.permute.xlu0 %526
        %528 = vrot.lane.b32.xlu0 %v506, 126
        %v529 = vpop.permute.xlu0 %528
        %530 = vrot.lane.b32.xlu0 %v507, 126
        %v531 = vpop.permute.xlu0 %530
        %vm540 = vcmask 23568
        %541 = vst.msk [vmem:[#allocation2] sm:$0xff] %vm540, %v517
        %542 = vst.msk [vmem:[#allocation2 + $0x8] sm:$0xff] %vm540, %v519
        %543 = vst.msk [vmem:[#allocation2 + $0x10] sm:$0xff] %vm540, %v521
        %544 = vst.msk [vmem:[#allocation2 + $0x18] sm:$0xff] %vm540, %v523
        %545 = vst.msk [vmem:[#allocation2 + $0x20] sm:$0xff] %vm540, %v525
        %546 = vst.msk [vmem:[#allocation2 + $0x28] sm:$0xff] %vm540, %v527
        %547 = vst.msk [vmem:[#allocation2 + $0x30] sm:$0xff] %vm540, %v529
        %548 = vst.msk [vmem:[#allocation2 + $0x38] sm:$0xff] %vm540, %v531
        %549 = vrot.lane.b32.xlu0 %v500, 124
        %v550 = vpop.permute.xlu0 %549
        %551 = vrot.lane.b32.xlu0 %v501, 124
        %v552 = vpop.permute.xlu0 %551
        %553 = vrot.lane.b32.xlu0 %v502, 124
        %v554 = vpop.permute.xlu0 %553
        %555 = vrot.lane.b32.xlu0 %v503, 124
        %v556 = vpop.permute.xlu0 %555
        %557 = vrot.lane.b32.xlu0 %v504, 124
        %v558 = vpop.permute.xlu0 %557
        %559 = vrot.lane.b32.xlu0 %v505, 124
        %v560 = vpop.permute.xlu0 %559
        %561 = vrot.lane.b32.xlu0 %v506, 124
        %v562 = vpop.permute.xlu0 %561
        %563 = vrot.lane.b32.xlu0 %v507, 124
        %v564 = vpop.permute.xlu0 %563
        %v573 = vmul.f32 %v316, %v550
        %v574 = vmul.f32 %v317, %v552
        %v575 = vmul.f32 %v318, %v554
        %v576 = vmul.f32 %v319, %v556
        %v577 = vmul.f32 %v320, %v558
        %v578 = vmul.f32 %v321, %v560
        %v579 = vmul.f32 %v322, %v562
        %v580 = vmul.f32 %v323, %v564
        %589 = vrot.lane.b32.xlu0 %v573, 8
        %v590 = vpop.permute.xlu0 %589
        %591 = vrot.lane.b32.xlu0 %v574, 8
        %v592 = vpop.permute.xlu0 %591
        %593 = vrot.lane.b32.xlu0 %v575, 8
        %v594 = vpop.permute.xlu0 %593
        %595 = vrot.lane.b32.xlu0 %v576, 8
        %v596 = vpop.permute.xlu0 %595
        %597 = vrot.lane.b32.xlu0 %v577, 8
        %v598 = vpop.permute.xlu0 %597
        %599 = vrot.lane.b32.xlu0 %v578, 8
        %v600 = vpop.permute.xlu0 %599
        %601 = vrot.lane.b32.xlu0 %v579, 8
        %v602 = vpop.permute.xlu0 %601
        %603 = vrot.lane.b32.xlu0 %v580, 8
        %v604 = vpop.permute.xlu0 %603
        %v613 = vsub.f32 %v300, %v590
        %v614 = vsub.f32 %v301, %v592
        %v615 = vsub.f32 %v302, %v594
        %v616 = vsub.f32 %v303, %v596
        %v617 = vsub.f32 %v304, %v598
        %v618 = vsub.f32 %v305, %v600
        %v619 = vsub.f32 %v306, %v602
        %v620 = vsub.f32 %v307, %v604
        %629 = vrot.lane.b32.xlu0 %v613, 123
        %v630 = vpop.permute.xlu0 %629
        %631 = vrot.lane.b32.xlu0 %v614, 123
        %v632 = vpop.permute.xlu0 %631
        %633 = vrot.lane.b32.xlu0 %v615, 123
        %v634 = vpop.permute.xlu0 %633
        %635 = vrot.lane.b32.xlu0 %v616, 123
        %v636 = vpop.permute.xlu0 %635
        %637 = vrot.lane.b32.xlu0 %v617, 123
        %v638 = vpop.permute.xlu0 %637
        %639 = vrot.lane.b32.xlu0 %v618, 123
        %v640 = vpop.permute.xlu0 %639
        %641 = vrot.lane.b32.xlu0 %v619, 123
        %v642 = vpop.permute.xlu0 %641
        %643 = vrot.lane.b32.xlu0 %v620, 123
        %v644 = vpop.permute.xlu0 %643
        %vm653 = vcmask 31768
        %654 = vst.msk [vmem:[#allocation2] sm:$0xff] %vm653, %v630
        %655 = vst.msk [vmem:[#allocation2 + $0x8] sm:$0xff] %vm653, %v632
        %656 = vst.msk [vmem:[#allocation2 + $0x10] sm:$0xff] %vm653, %v634
        %657 = vst.msk [vmem:[#allocation2 + $0x18] sm:$0xff] %vm653, %v636
        %658 = vst.msk [vmem:[#allocation2 + $0x20] sm:$0xff] %vm653, %v638
        %659 = vst.msk [vmem:[#allocation2 + $0x28] sm:$0xff] %vm653, %v640
        %660 = vst.msk [vmem:[#allocation2 + $0x30] sm:$0xff] %vm653, %v642
        %661 = vst.msk [vmem:[#allocation2 + $0x38] sm:$0xff] %vm653, %v644
      $region56: #{listnet_forward.2} parent=47 // pred_fallthru
        _
      %p662 = scmp.eq.s32.totalorder %s22, 2
      %p663 = pnand %p662, %p274
      %p664 = pneg %p663
      // Predicated region
      $region57: #{listnet_forward.2} parent=47 // pred_check
        _
      $region58: #{listnet_forward.2} parent=47 // pred_check_branch
        %666 = sbr.rel (%p663) target = $region60
      $region59: #{listnet_forward.2} parent=47 // pred_region
        %v667 = vld [vmem:[%s6] sm:$0xff]
        %v668 = vld [vmem:[%s6 + $0x8] sm:$0xff]
        %v669 = vld [vmem:[%s6 + $0x10] sm:$0xff]
        %v670 = vld [vmem:[%s6 + $0x18] sm:$0xff]
        %v671 = vld [vmem:[#allocation3] sm:$0xff]
        %v672 = vld [vmem:[#allocation3 + $0x8] sm:$0xff]
        %v673 = vld [vmem:[#allocation3 + $0x10] sm:$0xff]
        %v674 = vld [vmem:[#allocation3 + $0x18] sm:$0xff]
        %v675 = vmul.f32 %v671, 0.0625
        %v676 = vmul.f32 %v672, 0.0625
        %v677 = vmul.f32 %v673, 0.0625
        %v678 = vmul.f32 %v674, 0.0625
        %v679 = vmul.f32 %v675, %v675
        %v680 = vmul.f32 %v676, %v676
        %v681 = vmul.f32 %v677, %v677
        %v682 = vmul.f32 %v678, %v678
        %687 = vrot.lane.b32.xlu0 %v679, 1
        %v688 = vpop.permute.xlu0 %687
        %689 = vrot.lane.b32.xlu0 %v680, 1
        %v690 = vpop.permute.xlu0 %689
        %691 = vrot.lane.b32.xlu0 %v681, 1
        %v692 = vpop.permute.xlu0 %691
        %693 = vrot.lane.b32.xlu0 %v682, 1
        %v694 = vpop.permute.xlu0 %693
        %v699 = vsub.f32 %v675, %v688
        %v700 = vsub.f32 %v676, %v690
        %v701 = vsub.f32 %v677, %v692
        %v702 = vsub.f32 %v678, %v694
        %v703 = vmax.f32 %v699, 0.0
        %v704 = vmax.f32 %v700, 0.0
        %v705 = vmax.f32 %v701, 0.0
        %v706 = vmax.f32 %v702, 0.0
        %v707 = vadd.f32 %v703, 1e-05
        %v708 = vadd.f32 %v704, 1e-05
        %v709 = vadd.f32 %v705, 1e-05
        %v710 = vadd.f32 %v706, 1e-05
        %v711 = vrsqrt.pop %v707
        %v712 = vmul.f32 %v711, %v707
        %v713 = vmul.f32 %v712, %v711
        %v714 = vmul.f32 0.5, %v713
        %v715 = vsub.f32 1.5, %v714
        %v716 = vmul.f32 %v711, %v715
        %vm717 = vweird.f32 %v707
        %vm718 = vweird.f32 %v711
        %vm719 = vmor %vm717, %vm718
        %v720 = vsel %vm719, %v711, %v716
        %v721 = vrsqrt.pop %v708
        %v722 = vmul.f32 %v721, %v708
        %v723 = vmul.f32 %v722, %v721
        %v724 = vmul.f32 0.5, %v723
        %v725 = vsub.f32 1.5, %v724
        %v726 = vmul.f32 %v721, %v725
        %vm727 = vweird.f32 %v708
        %vm728 = vweird.f32 %v721
        %vm729 = vmor %vm727, %vm728
        %v730 = vsel %vm729, %v721, %v726
        %v731 = vrsqrt.pop %v709
        %v732 = vmul.f32 %v731, %v709
        %v733 = vmul.f32 %v732, %v731
        %v734 = vmul.f32 0.5, %v733
        %v735 = vsub.f32 1.5, %v734
        %v736 = vmul.f32 %v731, %v735
        %vm737 = vweird.f32 %v709
        %vm738 = vweird.f32 %v731
        %vm739 = vmor %vm737, %vm738
        %v740 = vsel %vm739, %v731, %v736
        %v741 = vrsqrt.pop %v710
        %v742 = vmul.f32 %v741, %v710
        %v743 = vmul.f32 %v742, %v741
        %v744 = vmul.f32 0.5, %v743
        %v745 = vsub.f32 1.5, %v744
        %v746 = vmul.f32 %v741, %v745
        %vm747 = vweird.f32 %v710
        %vm748 = vweird.f32 %v741
        %vm749 = vmor %vm747, %vm748
        %v750 = vsel %vm749, %v741, %v746
        %755 = vrot.lane.b32.xlu0 %v720, 4
        %v756 = vpop.permute.xlu0 %755
        %757 = vrot.lane.b32.xlu0 %v730, 4
        %v758 = vpop.permute.xlu0 %757
        %759 = vrot.lane.b32.xlu0 %v740, 4
        %v760 = vpop.permute.xlu0 %759
        %761 = vrot.lane.b32.xlu0 %v750, 4
        %v762 = vpop.permute.xlu0 %761
        %v767 = vmul.f32 %v667, %v756
        %v768 = vmul.f32 %v668, %v758
        %v769 = vmul.f32 %v669, %v760
        %v770 = vmul.f32 %v670, %v762
        %775 = vrot.lane.b32.xlu0 %v767, 125
        %v776 = vpop.permute.xlu0 %775
        %777 = vrot.lane.b32.xlu0 %v768, 125
        %v778 = vpop.permute.xlu0 %777
        %779 = vrot.lane.b32.xlu0 %v769, 125
        %v780 = vpop.permute.xlu0 %779
        %781 = vrot.lane.b32.xlu0 %v770, 125
        %v782 = vpop.permute.xlu0 %781
        %vm787 = vcmask 23568
        %788 = vst.msk [vmem:[#allocation3] sm:$0xff] %vm787, %v776
        %789 = vst.msk [vmem:[#allocation3 + $0x8] sm:$0xff] %vm787, %v778
        %790 = vst.msk [vmem:[#allocation3 + $0x10] sm:$0xff] %vm787, %v780
        %791 = vst.msk [vmem:[#allocation3 + $0x18] sm:$0xff] %vm787, %v782
        %792 = vrot.lane.b32.xlu0 %v767, 123
        %v793 = vpop.permute.xlu0 %792
        %794 = vrot.lane.b32.xlu0 %v768, 123
        %v795 = vpop.permute.xlu0 %794
        %796 = vrot.lane.b32.xlu0 %v769, 123
        %v797 = vpop.permute.xlu0 %796
        %798 = vrot.lane.b32.xlu0 %v770, 123
        %v799 = vpop.permute.xlu0 %798
        %v804 = vmul.f32 %v675, %v793
        %v805 = vmul.f32 %v676, %v795
        %v806 = vmul.f32 %v677, %v797
        %v807 = vmul.f32 %v678, %v799
        %812 = vrot.lane.b32.xlu0 %v804, 9
        %v813 = vpop.permute.xlu0 %812
        %814 = vrot.lane.b32.xlu0 %v805, 9
        %v815 = vpop.permute.xlu0 %814
        %816 = vrot.lane.b32.xlu0 %v806, 9
        %v817 = vpop.permute.xlu0 %816
        %818 = vrot.lane.b32.xlu0 %v807, 9
        %v819 = vpop.permute.xlu0 %818
        %v824 = vsub.f32 %v667, %v813
        %v825 = vsub.f32 %v668, %v815
        %v826 = vsub.f32 %v669, %v817
        %v827 = vsub.f32 %v670, %v819
        %832 = vrot.lane.b32.xlu0 %v824, 122
        %v833 = vpop.permute.xlu0 %832
        %834 = vrot.lane.b32.xlu0 %v825, 122
        %v835 = vpop.permute.xlu0 %834
        %836 = vrot.lane.b32.xlu0 %v826, 122
        %v837 = vpop.permute.xlu0 %836
        %838 = vrot.lane.b32.xlu0 %v827, 122
        %v839 = vpop.permute.xlu0 %838
        %vm844 = vcmask 31768
        %845 = vst.msk [vmem:[#allocation3] sm:$0xff] %vm844, %v833
        %846 = vst.msk [vmem:[#allocation3 + $0x8] sm:$0xff] %vm844, %v835
        %847 = vst.msk [vmem:[#allocation3 + $0x10] sm:$0xff] %vm844, %v837
        %848 = vst.msk [vmem:[#allocation3 + $0x18] sm:$0xff] %vm844, %v839
      $region60: #{listnet_forward.2} parent=47 // pred_fallthru
        _
      %p849 = scmp.eq.s32.totalorder %s22, 3
      %p850 = pnand %p849, %p274
      %p851 = pneg %p850
      // Predicated region
      $region61: #{listnet_forward.2} parent=47 // pred_check
        _
      $region62: #{listnet_forward.2} parent=47 // pred_check_branch
        %853 = sbr.rel (%p850) target = $region64
      $region63: #{listnet_forward.2} parent=47 // pred_region
        %v854 = vld [vmem:[%s6] sm:$0xff]
        %v855 = vld [vmem:[%s6 + $0x8] sm:$0xff]
        %v856 = vld [vmem:[#allocation4] sm:$0xff]
        %v857 = vld [vmem:[#allocation4 + $0x8] sm:$0xff]
        %v858 = vmul.f32 %v856, 0.0625
        %v859 = vmul.f32 %v857, 0.0625
        %v860 = vmul.f32 %v858, %v858
        %v861 = vmul.f32 %v859, %v859
        %864 = vrot.lane.b32.xlu0 %v860, 1
        %v865 = vpop.permute.xlu0 %864
        %866 = vrot.lane.b32.xlu0 %v861, 1
        %v867 = vpop.permute.xlu0 %866
        %v870 = vsub.f32 %v858, %v865
        %v871 = vsub.f32 %v859, %v867
        %v872 = vmax.f32 %v870, 0.0
        %v873 = vmax.f32 %v871, 0.0
        %v874 = vadd.f32 %v872, 1e-05
        %v875 = vadd.f32 %v873, 1e-05
        %v876 = vrsqrt.pop %v874
        %v877 = vmul.f32 %v876, %v874
        %v878 = vmul.f32 %v877, %v876
        %v879 = vmul.f32 0.5, %v878
        %v880 = vsub.f32 1.5, %v879
        %v881 = vmul.f32 %v876, %v880
        %vm882 = vweird.f32 %v874
        %vm883 = vweird.f32 %v876
        %vm884 = vmor %vm882, %vm883
        %v885 = vsel %vm884, %v876, %v881
        %v886 = vrsqrt.pop %v875
        %v887 = vmul.f32 %v886, %v875
        %v888 = vmul.f32 %v887, %v886
        %v889 = vmul.f32 0.5, %v888
        %v890 = vsub.f32 1.5, %v889
        %v891 = vmul.f32 %v886, %v890
        %vm892 = vweird.f32 %v875
        %vm893 = vweird.f32 %v886
        %vm894 = vmor %vm892, %vm893
        %v895 = vsel %vm894, %v886, %v891
        %898 = vrot.lane.b32.xlu0 %v885, 5
        %v899 = vpop.permute.xlu0 %898
        %900 = vrot.lane.b32.xlu0 %v895, 5
        %v901 = vpop.permute.xlu0 %900
        %v904 = vmul.f32 %v854, %v899
        %v905 = vmul.f32 %v855, %v901
        %908 = vrot.lane.b32.xlu0 %v904, 124
        %v909 = vpop.permute.xlu0 %908
        %910 = vrot.lane.b32.xlu0 %v905, 124
        %v911 = vpop.permute.xlu0 %910
        %vm914 = vcmask 23568
        %915 = vst.msk [vmem:[#allocation4] sm:$0xff] %vm914, %v909
        %916 = vst.msk [vmem:[#allocation4 + $0x8] sm:$0xff] %vm914, %v911
        %917 = vrot.lane.b32.xlu0 %v904, 122
        %v918 = vpop.permute.xlu0 %917
        %919 = vrot.lane.b32.xlu0 %v905, 122
        %v920 = vpop.permute.xlu0 %919
        %v923 = vmul.f32 %v858, %v918
        %v924 = vmul.f32 %v859, %v920
        %927 = vrot.lane.b32.xlu0 %v923, 10
        %v928 = vpop.permute.xlu0 %927
        %929 = vrot.lane.b32.xlu0 %v924, 10
        %v930 = vpop.permute.xlu0 %929
        %v933 = vsub.f32 %v854, %v928
        %v934 = vsub.f32 %v855, %v930
        %937 = vrot.lane.b32.xlu0 %v933, 121
        %v938 = vpop.permute.xlu0 %937
        %939 = vrot.lane.b32.xlu0 %v934, 121
        %v940 = vpop.permute.xlu0 %939
        %vm943 = vcmask 31768
        %944 = vst.msk [vmem:[#allocation4] sm:$0xff] %vm943, %v938
        %945 = vst.msk [vmem:[#allocation4 + $0x8] sm:$0xff] %vm943, %v940
      $region64: #{listnet_forward.2} parent=47 // pred_fallthru
        _
      %v946 = vlaneseq
      %v947 = vand.u32 %v946, 127
      %s948 = smul.u32 %s23, 128
      %v949 = vstv %s948
      %v950 = vadd.s32 %v947, %v949
      %vm951 = vcmp.lt.s32.totalorder %v950, 16
      %v952 = vsel %vm951, 1, 0
      %v953 = vcvt.s32.f32 %v952
      %v954 = vld [vmem:[%s272] sm:$0xff]
      %v955 = vld [vmem:[%s272 + $0x8] sm:$0xff]
      %v956 = vld [vmem:[%s1] sm:$0xff]
      %v957 = vld [vmem:[%s1 + $0x8] sm:$0xff]
      %v958 = vld [vmem:[%s1 + $0x10] sm:$0xff]
      %v959 = vld [vmem:[%s1 + $0x18] sm:$0xff]
      %v960 = vld [vmem:[%s1 + $0x20] sm:$0xff]
      %v961 = vld [vmem:[%s1 + $0x28] sm:$0xff]
      %v962 = vld [vmem:[%s1 + $0x30] sm:$0xff]
      %v963 = vld [vmem:[%s1 + $0x38] sm:$0xff]
      %v964 = vld [vmem:[%s1 + $0x40] sm:$0xff]
      %v965 = vld [vmem:[%s1 + $0x48] sm:$0xff]
      %v966 = vld [vmem:[%s1 + $0x50] sm:$0xff]
      %v967 = vld [vmem:[%s1 + $0x58] sm:$0xff]
      %v968 = vld [vmem:[%s1 + $0x60] sm:$0xff]
      %v969 = vld [vmem:[%s1 + $0x68] sm:$0xff]
      %v970 = vld [vmem:[%s1 + $0x70] sm:$0xff]
      %v971 = vld [vmem:[%s1 + $0x78] sm:$0xff]
      %v972 = vld [vmem:[%s6] sm:$0xff]
      %v973 = vld [vmem:[%s6 + $0x8] sm:$0xff]
      %v974 = vld [vmem:[%s6 + $0x10] sm:$0xff]
      %v975 = vld [vmem:[%s6 + $0x18] sm:$0xff]
      %v976 = vld [vmem:[%s6 + $0x20] sm:$0xff]
      %v977 = vld [vmem:[%s6 + $0x28] sm:$0xff]
      %v978 = vld [vmem:[%s6 + $0x30] sm:$0xff]
      %v979 = vld [vmem:[%s6 + $0x38] sm:$0xff]
      %v980 = vld [vmem:[%s6 + $0x40] sm:$0xff]
      %v981 = vld [vmem:[%s6 + $0x48] sm:$0xff]
      %v982 = vld [vmem:[%s6 + $0x50] sm:$0xff]
      %v983 = vld [vmem:[%s6 + $0x58] sm:$0xff]
      %v984 = vld [vmem:[%s6 + $0x60] sm:$0xff]
      %v985 = vld [vmem:[%s6 + $0x68] sm:$0xff]
      %v986 = vld [vmem:[%s6 + $0x70] sm:$0xff]
      %v987 = vld [vmem:[%s6 + $0x78] sm:$0xff]
      %989 = vset.pattern.permute.xlu0 0
      %990 = vperm.xlu0 %989, %v972
      %v991 = vpop.permute.xlu0 %990
      %994 = vset.pattern.permute.xlu0 0
      %995 = vperm.xlu0 %994, %v973
      %v996 = vpop.permute.xlu0 %995
      %999 = vset.pattern.permute.xlu0 0
      %1000 = vperm.xlu0 %999, %v974
      %v1001 = vpop.permute.xlu0 %1000
      %1004 = vset.pattern.permute.xlu0 0
      %1005 = vperm.xlu0 %1004, %v975
      %v1006 = vpop.permute.xlu0 %1005
      %1009 = vset.pattern.permute.xlu0 0
      %1010 = vperm.xlu0 %1009, %v976
      %v1011 = vpop.permute.xlu0 %1010
      %1014 = vset.pattern.permute.xlu0 0
      %1015 = vperm.xlu0 %1014, %v977
      %v1016 = vpop.permute.xlu0 %1015
      %1019 = vset.pattern.permute.xlu0 0
      %1020 = vperm.xlu0 %1019, %v978
      %v1021 = vpop.permute.xlu0 %1020
      %1024 = vset.pattern.permute.xlu0 0
      %1025 = vperm.xlu0 %1024, %v979
      %v1026 = vpop.permute.xlu0 %1025
      %1029 = vset.pattern.permute.xlu0 0
      %1030 = vperm.xlu0 %1029, %v980
      %v1031 = vpop.permute.xlu0 %1030
      %1034 = vset.pattern.permute.xlu0 0
      %1035 = vperm.xlu0 %1034, %v981
      %v1036 = vpop.permute.xlu0 %1035
      %1039 = vset.pattern.permute.xlu0 0
      %1040 = vperm.xlu0 %1039, %v982
      %v1041 = vpop.permute.xlu0 %1040
      %1044 = vset.pattern.permute.xlu0 0
      %1045 = vperm.xlu0 %1044, %v983
      %v1046 = vpop.permute.xlu0 %1045
      %1049 = vset.pattern.permute.xlu0 0
      %1050 = vperm.xlu0 %1049, %v984
      %v1051 = vpop.permute.xlu0 %1050
      %1054 = vset.pattern.permute.xlu0 0
      %1055 = vperm.xlu0 %1054, %v985
      %v1056 = vpop.permute.xlu0 %1055
      %1059 = vset.pattern.permute.xlu0 0
      %1060 = vperm.xlu0 %1059, %v986
      %v1061 = vpop.permute.xlu0 %1060
      %1064 = vset.pattern.permute.xlu0 0
      %1065 = vperm.xlu0 %1064, %v987
      %v1066 = vpop.permute.xlu0 %1065
      %vm1068 = vcmask 130048
      %v1070 = vsel %vm1068, %v956, 0
      %v1073 = vsel %vm1068, %v957, 0
      %v1076 = vsel %vm1068, %v958, 0
      %v1079 = vsel %vm1068, %v959, 0
      %v1082 = vsel %vm1068, %v960, 0
      %v1085 = vsel %vm1068, %v961, 0
      %v1088 = vsel %vm1068, %v962, 0
      %v1091 = vsel %vm1068, %v963, 0
      %v1094 = vsel %vm1068, %v964, 0
      %v1097 = vsel %vm1068, %v965, 0
      %v1100 = vsel %vm1068, %v966, 0
      %v1103 = vsel %vm1068, %v967, 0
      %v1106 = vsel %vm1068, %v968, 0
      %v1109 = vsel %vm1068, %v969, 0
      %v1112 = vsel %vm1068, %v970, 0
      %v1115 = vsel %vm1068, %v971, 0
      %1117 = vmatpush.msra.mxu0 0.0
      %1118 = vmatpush.msra.mxu0 0.0
      %1119 = vmatpush.msra.mxu0 0.0
      %1120 = vmatpush.msra.mxu0 0.0
      %1121 = vmatpush.msra.mxu0 0.0
      %1122 = vmatpush.msra.mxu0 0.0
      %1123 = vmatpush.msra.mxu0 0.0
      %1124 = vmatpush.msra.mxu0 0.0
      %1125 = vmatpush.msra.mxu0 0.0
      %1126 = vmatpush.msra.mxu0 0.0
      %1127 = vmatpush.msra.mxu0 0.0
      %1128 = vmatpush.msra.mxu0 0.0
      %1129 = vmatpush.msra.mxu0 0.0
      %1130 = vmatpush.msra.mxu0 0.0
      %1131 = vmatpush.msra.mxu0 %v955
      %1132 = vmatpush.msra.mxu0 %v954
      %1133 = vmatmul.f32.gmra.mxu0 %v1070
      %v1134 = vpop.f32.mrf.mxu0
      %v1135 = vadd.f32 %v991, %v1134
      %1136 = vmatmul.f32.gmra.mxu0 %v1073
      %v1137 = vpop.f32.mrf.mxu0
      %v1138 = vadd.f32 %v996, %v1137
      %1139 = vmatmul.f32.gmra.mxu0 %v1076
      %v1140 = vpop.f32.mrf.mxu0
      %v1141 = vadd.f32 %v1001, %v1140
      %1142 = vmatmul.f32.gmra.mxu0 %v1079
      %v1143 = vpop.f32.mrf.mxu0
      %v1144 = vadd.f32 %v1006, %v1143
      %1145 = vmatmul.f32.gmra.mxu0 %v1082
      %v1146 = vpop.f32.mrf.mxu0
      %v1147 = vadd.f32 %v1011, %v1146
      %1148 = vmatmul.f32.gmra.mxu0 %v1085
      %v1149 = vpop.f32.mrf.mxu0
      %v1150 = vadd.f32 %v1016, %v1149
      %1151 = vmatmul.f32.gmra.mxu0 %v1088
      %v1152 = vpop.f32.mrf.mxu0
      %v1153 = vadd.f32 %v1021, %v1152
      %1154 = vmatmul.f32.gmra.mxu0 %v1091
      %v1155 = vpop.f32.mrf.mxu0
      %v1156 = vadd.f32 %v1026, %v1155
      %1157 = vmatmul.f32.gmra.mxu0 %v1094
      %v1158 = vpop.f32.mrf.mxu0
      %v1159 = vadd.f32 %v1031, %v1158
      %1160 = vmatmul.f32.gmra.mxu0 %v1097
      %v1161 = vpop.f32.mrf.mxu0
      %v1162 = vadd.f32 %v1036, %v1161
      %1163 = vmatmul.f32.gmra.mxu0 %v1100
      %v1164 = vpop.f32.mrf.mxu0
      %v1165 = vadd.f32 %v1041, %v1164
      %1166 = vmatmul.f32.gmra.mxu0 %v1103
      %v1167 = vpop.f32.mrf.mxu0
      %v1168 = vadd.f32 %v1046, %v1167
      %1169 = vmatmul.f32.gmra.mxu0 %v1106
      %v1170 = vpop.f32.mrf.mxu0
      %v1171 = vadd.f32 %v1051, %v1170
      %1172 = vmatmul.f32.gmra.mxu0 %v1109
      %v1173 = vpop.f32.mrf.mxu0
      %v1174 = vadd.f32 %v1056, %v1173
      %1175 = vmatmul.f32.gmra.mxu0 %v1112
      %v1176 = vpop.f32.mrf.mxu0
      %v1177 = vadd.f32 %v1061, %v1176
      %1178 = vmatmul.f32.gmra.mxu0 %v1115
      %v1179 = vpop.f32.mrf.mxu0
      %v1180 = vadd.f32 %v1066, %v1179
      %1181 = vdwg.mxu0
      %v1182 = vmax.f32 %v1135, 0.0
      %v1183 = vmax.f32 %v1138, 0.0
      %v1184 = vmax.f32 %v1141, 0.0
      %v1185 = vmax.f32 %v1144, 0.0
      %v1186 = vmax.f32 %v1147, 0.0
      %v1187 = vmax.f32 %v1150, 0.0
      %v1188 = vmax.f32 %v1153, 0.0
      %v1189 = vmax.f32 %v1156, 0.0
      %v1190 = vmax.f32 %v1159, 0.0
      %v1191 = vmax.f32 %v1162, 0.0
      %v1192 = vmax.f32 %v1165, 0.0
      %v1193 = vmax.f32 %v1168, 0.0
      %v1194 = vmax.f32 %v1171, 0.0
      %v1195 = vmax.f32 %v1174, 0.0
      %v1196 = vmax.f32 %v1177, 0.0
      %v1197 = vmax.f32 %v1180, 0.0
      %v1198 = vld [vmem:[%s2] sm:$0xff]
      %v1199 = vld [vmem:[%s2 + $0x8] sm:$0xff]
      %v1200 = vld [vmem:[%s2 + $0x10] sm:$0xff]
      %v1201 = vld [vmem:[%s2 + $0x18] sm:$0xff]
      %v1202 = vld [vmem:[%s2 + $0x20] sm:$0xff]
      %v1203 = vld [vmem:[%s2 + $0x28] sm:$0xff]
      %v1204 = vld [vmem:[%s2 + $0x30] sm:$0xff]
      %v1205 = vld [vmem:[%s2 + $0x38] sm:$0xff]
      %v1206 = vld [vmem:[%s2 + $0x40] sm:$0xff]
      %v1207 = vld [vmem:[%s2 + $0x48] sm:$0xff]
      %v1208 = vld [vmem:[%s2 + $0x50] sm:$0xff]
      %v1209 = vld [vmem:[%s2 + $0x58] sm:$0xff]
      %1210 = vmatpush.msra.mxu0 %v1197
      %1211 = vmatpush.msra.mxu0 %v1196
      %1212 = vmatpush.msra.mxu0 %v1195
      %1213 = vmatpush.msra.mxu0 %v1194
      %1214 = vmatpush.msra.mxu0 %v1193
      %1215 = vmatpush.msra.mxu0 %v1192
      %1216 = vmatpush.msra.mxu0 %v1191
      %1217 = vmatpush.msra.mxu0 %v1190
      %1218 = vmatpush.msra.mxu0 %v1189
      %1219 = vmatpush.msra.mxu0 %v1188
      %1220 = vmatpush.msra.mxu0 %v1187
      %1221 = vmatpush.msra.mxu0 %v1186
      %1222 = vmatpush.msra.mxu0 %v1185
      %1223 = vmatpush.msra.mxu0 %v1184
      %1224 = vmatpush.msra.mxu0 %v1183
      %1225 = vmatpush.msra.mxu0 %v1182
      %1226 = vmatmul.f32.gmra.mxu0 %v1198
      %v1227 = vpop.f32.mrf.mxu0
      %v1228 = vadd.f32 0.0, %v1227
      %1229 = vmatmul.f32.gmra.mxu0 %v1199
      %v1230 = vpop.f32.mrf.mxu0
      %v1231 = vadd.f32 0.0, %v1230
      %1232 = vmatmul.f32.gmra.mxu0 %v1200
      %v1233 = vpop.f32.mrf.mxu0
      %v1234 = vadd.f32 0.0, %v1233
      %1235 = vmatmul.f32.gmra.mxu0 %v1201
      %v1236 = vpop.f32.mrf.mxu0
      %v1237 = vadd.f32 0.0, %v1236
      %1238 = vmatmul.f32.gmra.mxu0 %v1202
      %v1239 = vpop.f32.mrf.mxu0
      %v1240 = vadd.f32 0.0, %v1239
      %1241 = vmatmul.f32.gmra.mxu0 %v1203
      %v1242 = vpop.f32.mrf.mxu0
      %v1243 = vadd.f32 0.0, %v1242
      %1244 = vmatmul.f32.gmra.mxu0 %v1204
      %v1245 = vpop.f32.mrf.mxu0
      %v1246 = vadd.f32 0.0, %v1245
      %1247 = vmatmul.f32.gmra.mxu0 %v1205
      %v1248 = vpop.f32.mrf.mxu0
      %v1249 = vadd.f32 0.0, %v1248
      %1250 = vmatmul.f32.gmra.mxu0 %v1206
      %v1251 = vpop.f32.mrf.mxu0
      %v1252 = vadd.f32 0.0, %v1251
      %1253 = vmatmul.f32.gmra.mxu0 %v1207
      %v1254 = vpop.f32.mrf.mxu0
      %v1255 = vadd.f32 0.0, %v1254
      %1256 = vmatmul.f32.gmra.mxu0 %v1208
      %v1257 = vpop.f32.mrf.mxu0
      %v1258 = vadd.f32 0.0, %v1257
      %1259 = vmatmul.f32.gmra.mxu0 %v1209
      %v1260 = vpop.f32.mrf.mxu0
      %v1261 = vadd.f32 0.0, %v1260
      %1262 = vdwg.mxu0
      // Predicated region
      $region65: #{listnet_forward.2} parent=47 // pred_check
        %p1263 = pneg %p273
      $region66: #{listnet_forward.2} parent=47 // pred_check_branch
        %1265 = sbr.rel (%p1263) target = $region68
      $region67: #{listnet_forward.2} parent=47 // pred_region
        // Predicated region
        $region69: #{listnet_forward.2} parent=67 // pred_check
          %p1266 = pneg %p274
        $region70: #{listnet_forward.2} parent=67 // pred_check_branch
          %1268 = sbr.rel (%p1266) target = $region72
        $region71: #{listnet_forward.2} parent=67 // pred_region
          %v1269 = vmul.f32 %v1240, %v953
          %v1270 = vmul.f32 %v1243, %v953
          %v1271 = vmul.f32 %v1246, %v953
          %v1272 = vmul.f32 %v1249, %v953
          %v1273 = vmul.f32 %v1252, %v953
          %v1274 = vmul.f32 %v1255, %v953
          %v1275 = vmul.f32 %v1258, %v953
          %v1276 = vmul.f32 %v1261, %v953
          %v1277 = vld [vmem:[#allocation2] sm:$0xff]
          %v1278 = vld [vmem:[#allocation2 + $0x8] sm:$0xff]
          %v1279 = vld [vmem:[#allocation2 + $0x10] sm:$0xff]
          %v1280 = vld [vmem:[#allocation2 + $0x18] sm:$0xff]
          %v1281 = vld [vmem:[#allocation2 + $0x20] sm:$0xff]
          %v1282 = vld [vmem:[#allocation2 + $0x28] sm:$0xff]
          %v1283 = vld [vmem:[#allocation2 + $0x30] sm:$0xff]
          %v1284 = vld [vmem:[#allocation2 + $0x38] sm:$0xff]
          %1285 = vadd.xlane.f32.xlu0 %v1269
          %v1286 = vpop.xlane.xlu0 %1285
          %1287 = vadd.xlane.f32.xlu0 %v1270
          %v1288 = vpop.xlane.xlu0 %1287
          %1289 = vadd.xlane.f32.xlu0 %v1271
          %v1290 = vpop.xlane.xlu0 %1289
          %1291 = vadd.xlane.f32.xlu0 %v1272
          %v1292 = vpop.xlane.xlu0 %1291
          %1293 = vadd.xlane.f32.xlu0 %v1273
          %v1294 = vpop.xlane.xlu0 %1293
          %1295 = vadd.xlane.f32.xlu0 %v1274
          %v1296 = vpop.xlane.xlu0 %1295
          %1297 = vadd.xlane.f32.xlu0 %v1275
          %v1298 = vpop.xlane.xlu0 %1297
          %1299 = vadd.xlane.f32.xlu0 %v1276
          %v1300 = vpop.xlane.xlu0 %1299
          %v1301 = vadd.f32 %v1277, %v1286
          %v1302 = vadd.f32 %v1278, %v1288
          %v1303 = vadd.f32 %v1279, %v1290
          %v1304 = vadd.f32 %v1280, %v1292
          %v1305 = vadd.f32 %v1281, %v1294
          %v1306 = vadd.f32 %v1282, %v1296
          %v1307 = vadd.f32 %v1283, %v1298
          %v1308 = vadd.f32 %v1284, %v1300
          %vm1309 = vcmask 7168
          %1310 = vst.msk [vmem:[#allocation2] sm:$0xff] %vm1309, %v1301
          %1311 = vst.msk [vmem:[#allocation2 + $0x8] sm:$0xff] %vm1309, %v1302
          %1312 = vst.msk [vmem:[#allocation2 + $0x10] sm:$0xff] %vm1309, %v1303
          %1313 = vst.msk [vmem:[#allocation2 + $0x18] sm:$0xff] %vm1309, %v1304
          %1314 = vst.msk [vmem:[#allocation2 + $0x20] sm:$0xff] %vm1309, %v1305
          %1315 = vst.msk [vmem:[#allocation2 + $0x28] sm:$0xff] %vm1309, %v1306
          %1316 = vst.msk [vmem:[#allocation2 + $0x30] sm:$0xff] %vm1309, %v1307
          %1317 = vst.msk [vmem:[#allocation2 + $0x38] sm:$0xff] %vm1309, %v1308
          %v1318 = vld [vmem:[#allocation2] sm:$0xff]
          %v1319 = vld [vmem:[#allocation2 + $0x8] sm:$0xff]
          %v1320 = vld [vmem:[#allocation2 + $0x10] sm:$0xff]
          %v1321 = vld [vmem:[#allocation2 + $0x18] sm:$0xff]
          %v1322 = vld [vmem:[#allocation2 + $0x20] sm:$0xff]
          %v1323 = vld [vmem:[#allocation2 + $0x28] sm:$0xff]
          %v1324 = vld [vmem:[#allocation2 + $0x30] sm:$0xff]
          %v1325 = vld [vmem:[#allocation2 + $0x38] sm:$0xff]
          %v1326 = vmul.f32 %v1269, %v1240
          %v1327 = vmul.f32 %v1270, %v1243
          %v1328 = vmul.f32 %v1271, %v1246
          %v1329 = vmul.f32 %v1272, %v1249
          %v1330 = vmul.f32 %v1273, %v1252
          %v1331 = vmul.f32 %v1274, %v1255
          %v1332 = vmul.f32 %v1275, %v1258
          %v1333 = vmul.f32 %v1276, %v1261
          %1334 = vadd.xlane.f32.xlu0 %v1326
          %v1335 = vpop.xlane.xlu0 %1334
          %1336 = vadd.xlane.f32.xlu0 %v1327
          %v1337 = vpop.xlane.xlu0 %1336
          %1338 = vadd.xlane.f32.xlu0 %v1328
          %v1339 = vpop.xlane.xlu0 %1338
          %1340 = vadd.xlane.f32.xlu0 %v1329
          %v1341 = vpop.xlane.xlu0 %1340
          %1342 = vadd.xlane.f32.xlu0 %v1330
          %v1343 = vpop.xlane.xlu0 %1342
          %1344 = vadd.xlane.f32.xlu0 %v1331
          %v1345 = vpop.xlane.xlu0 %1344
          %1346 = vadd.xlane.f32.xlu0 %v1332
          %v1347 = vpop.xlane.xlu0 %1346
          %1348 = vadd.xlane.f32.xlu0 %v1333
          %v1349 = vpop.xlane.xlu0 %1348
          %v1350 = vadd.f32 %v1318, %v1335
          %v1351 = vadd.f32 %v1319, %v1337
          %v1352 = vadd.f32 %v1320, %v1339
          %v1353 = vadd.f32 %v1321, %v1341
          %v1354 = vadd.f32 %v1322, %v1343
          %v1355 = vadd.f32 %v1323, %v1345
          %v1356 = vadd.f32 %v1324, %v1347
          %v1357 = vadd.f32 %v1325, %v1349
          %vm1358 = vcmask 15368
          %1359 = vst.msk [vmem:[#allocation2] sm:$0xff] %vm1358, %v1350
          %1360 = vst.msk [vmem:[#allocation2 + $0x8] sm:$0xff] %vm1358, %v1351
          %1361 = vst.msk [vmem:[#allocation2 + $0x10] sm:$0xff] %vm1358, %v1352
          %1362 = vst.msk [vmem:[#allocation2 + $0x18] sm:$0xff] %vm1358, %v1353
          %1363 = vst.msk [vmem:[#allocation2 + $0x20] sm:$0xff] %vm1358, %v1354
          %1364 = vst.msk [vmem:[#allocation2 + $0x28] sm:$0xff] %vm1358, %v1355
          %1365 = vst.msk [vmem:[#allocation2 + $0x30] sm:$0xff] %vm1358, %v1356
          %1366 = vst.msk [vmem:[#allocation2 + $0x38] sm:$0xff] %vm1358, %v1357
        $region72: #{listnet_forward.2} parent=67 // pred_fallthru
          _
        %p1367 = scmp.ne.s32.totalorder %s23, 0
        // Predicated region
        $region73: #{listnet_forward.2} parent=67 // pred_check
          %p1368 = pneg %p1367
        $region74: #{listnet_forward.2} parent=67 // pred_check_branch
          %1370 = sbr.rel (%p1368) target = $region76
        $region75: #{listnet_forward.2} parent=67 // pred_region
          %v1371 = vld [vmem:[#allocation2] sm:$0xff]
          %v1372 = vld [vmem:[#allocation2 + $0x8] sm:$0xff]
          %v1373 = vld [vmem:[#allocation2 + $0x10] sm:$0xff]
          %v1374 = vld [vmem:[#allocation2 + $0x18] sm:$0xff]
          %v1375 = vld [vmem:[#allocation2 + $0x20] sm:$0xff]
          %v1376 = vld [vmem:[#allocation2 + $0x28] sm:$0xff]
          %v1377 = vld [vmem:[#allocation2 + $0x30] sm:$0xff]
          %v1378 = vld [vmem:[#allocation2 + $0x38] sm:$0xff]
          %1379 = vadd.xlane.f32.xlu0 %v1240
          %v1380 = vpop.xlane.xlu0 %1379
          %1381 = vadd.xlane.f32.xlu0 %v1243
          %v1382 = vpop.xlane.xlu0 %1381
          %1383 = vadd.xlane.f32.xlu0 %v1246
          %v1384 = vpop.xlane.xlu0 %1383
          %1385 = vadd.xlane.f32.xlu0 %v1249
          %v1386 = vpop.xlane.xlu0 %1385
          %1387 = vadd.xlane.f32.xlu0 %v1252
          %v1388 = vpop.xlane.xlu0 %1387
          %1389 = vadd.xlane.f32.xlu0 %v1255
          %v1390 = vpop.xlane.xlu0 %1389
          %1391 = vadd.xlane.f32.xlu0 %v1258
          %v1392 = vpop.xlane.xlu0 %1391
          %1393 = vadd.xlane.f32.xlu0 %v1261
          %v1394 = vpop.xlane.xlu0 %1393
          %v1395 = vadd.f32 %v1371, %v1380
          %v1396 = vadd.f32 %v1372, %v1382
          %v1397 = vadd.f32 %v1373, %v1384
          %v1398 = vadd.f32 %v1374, %v1386
          %v1399 = vadd.f32 %v1375, %v1388
          %v1400 = vadd.f32 %v1376, %v1390
          %v1401 = vadd.f32 %v1377, %v1392
          %v1402 = vadd.f32 %v1378, %v1394
          %vm1403 = vcmask 7168
          %1404 = vst.msk [vmem:[#allocation2] sm:$0xff] %vm1403, %v1395
          %1405 = vst.msk [vmem:[#allocation2 + $0x8] sm:$0xff] %vm1403, %v1396
          %1406 = vst.msk [vmem:[#allocation2 + $0x10] sm:$0xff] %vm1403, %v1397
          %1407 = vst.msk [vmem:[#allocation2 + $0x18] sm:$0xff] %vm1403, %v1398
          %1408 = vst.msk [vmem:[#allocation2 + $0x20] sm:$0xff] %vm1403, %v1399
          %1409 = vst.msk [vmem:[#allocation2 + $0x28] sm:$0xff] %vm1403, %v1400
          %1410 = vst.msk [vmem:[#allocation2 + $0x30] sm:$0xff] %vm1403, %v1401
          %1411 = vst.msk [vmem:[#allocation2 + $0x38] sm:$0xff] %vm1403, %v1402
          %v1412 = vld [vmem:[#allocation2] sm:$0xff]
          %v1413 = vld [vmem:[#allocation2 + $0x8] sm:$0xff]
          %v1414 = vld [vmem:[#allocation2 + $0x10] sm:$0xff]
          %v1415 = vld [vmem:[#allocation2 + $0x18] sm:$0xff]
          %v1416 = vld [vmem:[#allocation2 + $0x20] sm:$0xff]
          %v1417 = vld [vmem:[#allocation2 + $0x28] sm:$0xff]
          %v1418 = vld [vmem:[#allocation2 + $0x30] sm:$0xff]
          %v1419 = vld [vmem:[#allocation2 + $0x38] sm:$0xff]
          %v1420 = vmul.f32 %v1240, %v1240
          %v1421 = vmul.f32 %v1243, %v1243
          %v1422 = vmul.f32 %v1246, %v1246
          %v1423 = vmul.f32 %v1249, %v1249
          %v1424 = vmul.f32 %v1252, %v1252
          %v1425 = vmul.f32 %v1255, %v1255
          %v1426 = vmul.f32 %v1258, %v1258
          %v1427 = vmul.f32 %v1261, %v1261
          %1428 = vadd.xlane.f32.xlu0 %v1420
          %v1429 = vpop.xlane.xlu0 %1428
          %1430 = vadd.xlane.f32.xlu0 %v1421
          %v1431 = vpop.xlane.xlu0 %1430
          %1432 = vadd.xlane.f32.xlu0 %v1422
          %v1433 = vpop.xlane.xlu0 %1432
          %1434 = vadd.xlane.f32.xlu0 %v1423
          %v1435 = vpop.xlane.xlu0 %1434
          %1436 = vadd.xlane.f32.xlu0 %v1424
          %v1437 = vpop.xlane.xlu0 %1436
          %1438 = vadd.xlane.f32.xlu0 %v1425
          %v1439 = vpop.xlane.xlu0 %1438
          %1440 = vadd.xlane.f32.xlu0 %v1426
          %v1441 = vpop.xlane.xlu0 %1440
          %1442 = vadd.xlane.f32.xlu0 %v1427
          %v1443 = vpop.xlane.xlu0 %1442
          %v1444 = vadd.f32 %v1412, %v1429
          %v1445 = vadd.f32 %v1413, %v1431
          %v1446 = vadd.f32 %v1414, %v1433
          %v1447 = vadd.f32 %v1415, %v1435
          %v1448 = vadd.f32 %v1416, %v1437
          %v1449 = vadd.f32 %v1417, %v1439
          %v1450 = vadd.f32 %v1418, %v1441
          %v1451 = vadd.f32 %v1419, %v1443
          %vm1452 = vcmask 15368
          %1453 = vst.msk [vmem:[#allocation2] sm:$0xff] %vm1452, %v1444
          %1454 = vst.msk [vmem:[#allocation2 + $0x8] sm:$0xff] %vm1452, %v1445
          %1455 = vst.msk [vmem:[#allocation2 + $0x10] sm:$0xff] %vm1452, %v1446
          %1456 = vst.msk [vmem:[#allocation2 + $0x18] sm:$0xff] %vm1452, %v1447
          %1457 = vst.msk [vmem:[#allocation2 + $0x20] sm:$0xff] %vm1452, %v1448
          %1458 = vst.msk [vmem:[#allocation2 + $0x28] sm:$0xff] %vm1452, %v1449
          %1459 = vst.msk [vmem:[#allocation2 + $0x30] sm:$0xff] %vm1452, %v1450
          %1460 = vst.msk [vmem:[#allocation2 + $0x38] sm:$0xff] %vm1452, %v1451
        $region76: #{listnet_forward.2} parent=67 // pred_fallthru
          _
      $region68: #{listnet_forward.2} parent=47 // pred_fallthru
        _
      %p1461 = scmp.ge.s32.totalorder %s22, 1
      // Predicated region
      $region77: #{listnet_forward.2} parent=47 // pred_check
        %p1462 = pneg %p1461
      $region78: #{listnet_forward.2} parent=47 // pred_check_branch
        %1464 = sbr.rel (%p1462) target = $region80
      $region79: #{listnet_forward.2} parent=47 // pred_region
        %v1465 = vld [vmem:[#allocation2] sm:$0xff]
        %v1466 = vld [vmem:[#allocation2 + $0x8] sm:$0xff]
        %v1467 = vld [vmem:[#allocation2 + $0x10] sm:$0xff]
        %v1468 = vld [vmem:[#allocation2 + $0x18] sm:$0xff]
        %v1469 = vld [vmem:[#allocation2 + $0x20] sm:$0xff]
        %v1470 = vld [vmem:[#allocation2 + $0x28] sm:$0xff]
        %v1471 = vld [vmem:[#allocation2 + $0x30] sm:$0xff]
        %v1472 = vld [vmem:[#allocation2 + $0x38] sm:$0xff]
        %1474 = vset.pattern.permute.xlu0 2
        %1475 = vperm.xlu0 %1474, %v1465
        %v1476 = vpop.permute.xlu0 %1475
        %1479 = vset.pattern.permute.xlu0 2
        %1480 = vperm.xlu0 %1479, %v1466
        %v1481 = vpop.permute.xlu0 %1480
        %1484 = vset.pattern.permute.xlu0 2
        %1485 = vperm.xlu0 %1484, %v1467
        %v1486 = vpop.permute.xlu0 %1485
        %1489 = vset.pattern.permute.xlu0 2
        %1490 = vperm.xlu0 %1489, %v1468
        %v1491 = vpop.permute.xlu0 %1490
        %1494 = vset.pattern.permute.xlu0 2
        %1495 = vperm.xlu0 %1494, %v1469
        %v1496 = vpop.permute.xlu0 %1495
        %1499 = vset.pattern.permute.xlu0 2
        %1500 = vperm.xlu0 %1499, %v1470
        %v1501 = vpop.permute.xlu0 %1500
        %1504 = vset.pattern.permute.xlu0 2
        %1505 = vperm.xlu0 %1504, %v1471
        %v1506 = vpop.permute.xlu0 %1505
        %1509 = vset.pattern.permute.xlu0 2
        %1510 = vperm.xlu0 %1509, %v1472
        %v1511 = vpop.permute.xlu0 %1510
        %v1513 = vmul.f32 %v1240, %v1476
        %v1514 = vmul.f32 %v1243, %v1481
        %v1515 = vmul.f32 %v1246, %v1486
        %v1516 = vmul.f32 %v1249, %v1491
        %v1517 = vmul.f32 %v1252, %v1496
        %v1518 = vmul.f32 %v1255, %v1501
        %v1519 = vmul.f32 %v1258, %v1506
        %v1520 = vmul.f32 %v1261, %v1511
        %1521 = vset.pattern.permute.xlu0 3
        %1522 = vperm.xlu0 %1521, %v1465
        %v1523 = vpop.permute.xlu0 %1522
        %1525 = vset.pattern.permute.xlu0 3
        %1526 = vperm.xlu0 %1525, %v1466
        %v1527 = vpop.permute.xlu0 %1526
        %1529 = vset.pattern.permute.xlu0 3
        %1530 = vperm.xlu0 %1529, %v1467
        %v1531 = vpop.permute.xlu0 %1530
        %1533 = vset.pattern.permute.xlu0 3
        %1534 = vperm.xlu0 %1533, %v1468
        %v1535 = vpop.permute.xlu0 %1534
        %1537 = vset.pattern.permute.xlu0 3
        %1538 = vperm.xlu0 %1537, %v1469
        %v1539 = vpop.permute.xlu0 %1538
        %1541 = vset.pattern.permute.xlu0 3
        %1542 = vperm.xlu0 %1541, %v1470
        %v1543 = vpop.permute.xlu0 %1542
        %1545 = vset.pattern.permute.xlu0 3
        %1546 = vperm.xlu0 %1545, %v1471
        %v1547 = vpop.permute.xlu0 %1546
        %1549 = vset.pattern.permute.xlu0 3
        %1550 = vperm.xlu0 %1549, %v1472
        %v1551 = vpop.permute.xlu0 %1550
        %v1553 = vadd.f32 %v1513, %v1523
        %v1554 = vadd.f32 %v1514, %v1527
        %v1555 = vadd.f32 %v1515, %v1531
        %v1556 = vadd.f32 %v1516, %v1535
        %v1557 = vadd.f32 %v1517, %v1539
        %v1558 = vadd.f32 %v1518, %v1543
        %v1559 = vadd.f32 %v1519, %v1547
        %v1560 = vadd.f32 %v1520, %v1551
        %v1561 = vmax.f32 %v1553, 0.0
        %v1562 = vmax.f32 %v1554, 0.0
        %v1563 = vmax.f32 %v1555, 0.0
        %v1564 = vmax.f32 %v1556, 0.0
        %v1565 = vmax.f32 %v1557, 0.0
        %v1566 = vmax.f32 %v1558, 0.0
        %v1567 = vmax.f32 %v1559, 0.0
        %v1568 = vmax.f32 %v1560, 0.0
        %v1569 = vld [vmem:[%s3] sm:$0xff]
        %v1570 = vld [vmem:[%s3 + $0x8] sm:$0xff]
        %v1571 = vld [vmem:[%s3 + $0x10] sm:$0xff]
        %v1572 = vld [vmem:[%s3 + $0x18] sm:$0xff]
        %vm1573 = vcmask 523264
        %v1575 = vsel %vm1573, %v1569, 0
        %v1578 = vsel %vm1573, %v1570, 0
        %v1581 = vsel %vm1573, %v1571, 0
        %v1584 = vsel %vm1573, %v1572, 0
        %1586 = vmatpush.msra.mxu0 0.0
        %1587 = vmatpush.msra.mxu0 0.0
        %1588 = vmatpush.msra.mxu0 0.0
        %1589 = vmatpush.msra.mxu0 0.0
        %1590 = vmatpush.msra.mxu0 0.0
        %1591 = vmatpush.msra.mxu0 0.0
        %1592 = vmatpush.msra.mxu0 0.0
        %1593 = vmatpush.msra.mxu0 0.0
        %1594 = vmatpush.msra.mxu0 %v1568
        %1595 = vmatpush.msra.mxu0 %v1567
        %1596 = vmatpush.msra.mxu0 %v1566
        %1597 = vmatpush.msra.mxu0 %v1565
        %1598 = vmatpush.msra.mxu0 %v1564
        %1599 = vmatpush.msra.mxu0 %v1563
        %1600 = vmatpush.msra.mxu0 %v1562
        %1601 = vmatpush.msra.mxu0 %v1561
        %1602 = vmatmul.f32.gmra.mxu0 %v1575
        %v1603 = vpop.f32.mrf.mxu0
        %v1604 = vadd.f32 0.0, %v1603
        %1605 = vmatmul.f32.gmra.mxu0 %v1578
        %v1606 = vpop.f32.mrf.mxu0
        %v1607 = vadd.f32 0.0, %v1606
        %1608 = vmatmul.f32.gmra.mxu0 %v1581
        %v1609 = vpop.f32.mrf.mxu0
        %v1610 = vadd.f32 0.0, %v1609
        %1611 = vmatmul.f32.gmra.mxu0 %v1584
        %v1612 = vpop.f32.mrf.mxu0
        %v1613 = vadd.f32 0.0, %v1612
        %1614 = vdwg.mxu0
        // Predicated region
        $region81: #{listnet_forward.2} parent=79 // pred_check
          %p1615 = pneg %p295
        $region82: #{listnet_forward.2} parent=79 // pred_check_branch
          %1617 = sbr.rel (%p1615) target = $region84
        $region83: #{listnet_forward.2} parent=79 // pred_region
          // Predicated region
          $region85: #{listnet_forward.2} parent=83 // pred_check
            %p1618 = pneg %p274
          $region86: #{listnet_forward.2} parent=83 // pred_check_branch
            %1620 = sbr.rel (%p1618) target = $region88
          $region87: #{listnet_forward.2} parent=83 // pred_region
            %v1621 = vmul.f32 %v1604, %v953
            %v1622 = vmul.f32 %v1607, %v953
            %v1623 = vmul.f32 %v1610, %v953
            %v1624 = vmul.f32 %v1613, %v953
            %v1625 = vld [vmem:[#allocation3] sm:$0xff]
            %v1626 = vld [vmem:[#allocation3 + $0x8] sm:$0xff]
            %v1627 = vld [vmem:[#allocation3 + $0x10] sm:$0xff]
            %v1628 = vld [vmem:[#allocation3 + $0x18] sm:$0xff]
            %1629 = vadd.xlane.f32.xlu0 %v1621
            %v1630 = vpop.xlane.xlu0 %1629
            %1631 = vadd.xlane.f32.xlu0 %v1622
            %v1632 = vpop.xlane.xlu0 %1631
            %1633 = vadd.xlane.f32.xlu0 %v1623
            %v1634 = vpop.xlane.xlu0 %1633
            %1635 = vadd.xlane.f32.xlu0 %v1624
            %v1636 = vpop.xlane.xlu0 %1635
            %v1637 = vadd.f32 %v1625, %v1630
            %v1638 = vadd.f32 %v1626, %v1632
            %v1639 = vadd.f32 %v1627, %v1634
            %v1640 = vadd.f32 %v1628, %v1636
            %vm1641 = vcmask 7168
            %1642 = vst.msk [vmem:[#allocation3] sm:$0xff] %vm1641, %v1637
            %1643 = vst.msk [vmem:[#allocation3 + $0x8] sm:$0xff] %vm1641, %v1638
            %1644 = vst.msk [vmem:[#allocation3 + $0x10] sm:$0xff] %vm1641, %v1639
            %1645 = vst.msk [vmem:[#allocation3 + $0x18] sm:$0xff] %vm1641, %v1640
            %v1646 = vld [vmem:[#allocation3] sm:$0xff]
            %v1647 = vld [vmem:[#allocation3 + $0x8] sm:$0xff]
            %v1648 = vld [vmem:[#allocation3 + $0x10] sm:$0xff]
            %v1649 = vld [vmem:[#allocation3 + $0x18] sm:$0xff]
            %v1650 = vmul.f32 %v1621, %v1604
            %v1651 = vmul.f32 %v1622, %v1607
            %v1652 = vmul.f32 %v1623, %v1610
            %v1653 = vmul.f32 %v1624, %v1613
            %1654 = vadd.xlane.f32.xlu0 %v1650
            %v1655 = vpop.xlane.xlu0 %1654
            %1656 = vadd.xlane.f32.xlu0 %v1651
            %v1657 = vpop.xlane.xlu0 %1656
            %1658 = vadd.xlane.f32.xlu0 %v1652
            %v1659 = vpop.xlane.xlu0 %1658
            %1660 = vadd.xlane.f32.xlu0 %v1653
            %v1661 = vpop.xlane.xlu0 %1660
            %v1662 = vadd.f32 %v1646, %v1655
            %v1663 = vadd.f32 %v1647, %v1657
            %v1664 = vadd.f32 %v1648, %v1659
            %v1665 = vadd.f32 %v1649, %v1661
            %vm1666 = vcmask 15368
            %1667 = vst.msk [vmem:[#allocation3] sm:$0xff] %vm1666, %v1662
            %1668 = vst.msk [vmem:[#allocation3 + $0x8] sm:$0xff] %vm1666, %v1663
            %1669 = vst.msk [vmem:[#allocation3 + $0x10] sm:$0xff] %vm1666, %v1664
            %1670 = vst.msk [vmem:[#allocation3 + $0x18] sm:$0xff] %vm1666, %v1665
          $region88: #{listnet_forward.2} parent=83 // pred_fallthru
            _
          %p1671 = scmp.ne.s32.totalorder %s23, 0
          // Predicated region
          $region89: #{listnet_forward.2} parent=83 // pred_check
            %p1672 = pneg %p1671
          $region90: #{listnet_forward.2} parent=83 // pred_check_branch
            %1674 = sbr.rel (%p1672) target = $region92
          $region91: #{listnet_forward.2} parent=83 // pred_region
            %v1675 = vld [vmem:[#allocation3] sm:$0xff]
            %v1676 = vld [vmem:[#allocation3 + $0x8] sm:$0xff]
            %v1677 = vld [vmem:[#allocation3 + $0x10] sm:$0xff]
            %v1678 = vld [vmem:[#allocation3 + $0x18] sm:$0xff]
            %1679 = vadd.xlane.f32.xlu0 %v1604
            %v1680 = vpop.xlane.xlu0 %1679
            %1681 = vadd.xlane.f32.xlu0 %v1607
            %v1682 = vpop.xlane.xlu0 %1681
            %1683 = vadd.xlane.f32.xlu0 %v1610
            %v1684 = vpop.xlane.xlu0 %1683
            %1685 = vadd.xlane.f32.xlu0 %v1613
            %v1686 = vpop.xlane.xlu0 %1685
            %v1687 = vadd.f32 %v1675, %v1680
            %v1688 = vadd.f32 %v1676, %v1682
            %v1689 = vadd.f32 %v1677, %v1684
            %v1690 = vadd.f32 %v1678, %v1686
            %vm1691 = vcmask 7168
            %1692 = vst.msk [vmem:[#allocation3] sm:$0xff] %vm1691, %v1687
            %1693 = vst.msk [vmem:[#allocation3 + $0x8] sm:$0xff] %vm1691, %v1688
            %1694 = vst.msk [vmem:[#allocation3 + $0x10] sm:$0xff] %vm1691, %v1689
            %1695 = vst.msk [vmem:[#allocation3 + $0x18] sm:$0xff] %vm1691, %v1690
            %v1696 = vld [vmem:[#allocation3] sm:$0xff]
            %v1697 = vld [vmem:[#allocation3 + $0x8] sm:$0xff]
            %v1698 = vld [vmem:[#allocation3 + $0x10] sm:$0xff]
            %v1699 = vld [vmem:[#allocation3 + $0x18] sm:$0xff]
            %v1700 = vmul.f32 %v1604, %v1604
            %v1701 = vmul.f32 %v1607, %v1607
            %v1702 = vmul.f32 %v1610, %v1610
            %v1703 = vmul.f32 %v1613, %v1613
            %1704 = vadd.xlane.f32.xlu0 %v1700
            %v1705 = vpop.xlane.xlu0 %1704
            %1706 = vadd.xlane.f32.xlu0 %v1701
            %v1707 = vpop.xlane.xlu0 %1706
            %1708 = vadd.xlane.f32.xlu0 %v1702
            %v1709 = vpop.xlane.xlu0 %1708
            %1710 = vadd.xlane.f32.xlu0 %v1703
            %v1711 = vpop.xlane.xlu0 %1710
            %v1712 = vadd.f32 %v1696, %v1705
            %v1713 = vadd.f32 %v1697, %v1707
            %v1714 = vadd.f32 %v1698, %v1709
            %v1715 = vadd.f32 %v1699, %v1711
            %vm1716 = vcmask 15368
            %1717 = vst.msk [vmem:[#allocation3] sm:$0xff] %vm1716, %v1712
            %1718 = vst.msk [vmem:[#allocation3 + $0x8] sm:$0xff] %vm1716, %v1713
            %1719 = vst.msk [vmem:[#allocation3 + $0x10] sm:$0xff] %vm1716, %v1714
            %1720 = vst.msk [vmem:[#allocation3 + $0x18] sm:$0xff] %vm1716, %v1715
          $region92: #{listnet_forward.2} parent=83 // pred_fallthru
            _
        $region84: #{listnet_forward.2} parent=79 // pred_fallthru
          _
        %p1721 = scmp.ge.s32.totalorder %s22, 2
        // Predicated region
        $region93: #{listnet_forward.2} parent=79 // pred_check
          %p1722 = pneg %p1721
        $region94: #{listnet_forward.2} parent=79 // pred_check_branch
          %1724 = sbr.rel (%p1722) target = $region96
        $region95: #{listnet_forward.2} parent=79 // pred_region
          %v1725 = vld [vmem:[%s6] sm:$0xff]
          %v1726 = vld [vmem:[%s6 + $0x8] sm:$0xff]
          %v1727 = vld [vmem:[%s6 + $0x10] sm:$0xff]
          %v1728 = vld [vmem:[%s6 + $0x18] sm:$0xff]
          %1730 = vset.pattern.permute.xlu0 1
          %1731 = vperm.xlu0 %1730, %v1725
          %v1732 = vpop.permute.xlu0 %1731
          %1735 = vset.pattern.permute.xlu0 1
          %1736 = vperm.xlu0 %1735, %v1726
          %v1737 = vpop.permute.xlu0 %1736
          %1740 = vset.pattern.permute.xlu0 1
          %1741 = vperm.xlu0 %1740, %v1727
          %v1742 = vpop.permute.xlu0 %1741
          %1745 = vset.pattern.permute.xlu0 1
          %1746 = vperm.xlu0 %1745, %v1728
          %v1747 = vpop.permute.xlu0 %1746
          %v1749 = vadd.f32 %v1228, %v1732
          %v1750 = vadd.f32 %v1231, %v1737
          %v1751 = vadd.f32 %v1234, %v1742
          %v1752 = vadd.f32 %v1237, %v1747
          %v1753 = vld [vmem:[#allocation3] sm:$0xff]
          %v1754 = vld [vmem:[#allocation3 + $0x8] sm:$0xff]
          %v1755 = vld [vmem:[#allocation3 + $0x10] sm:$0xff]
          %v1756 = vld [vmem:[#allocation3 + $0x18] sm:$0xff]
          %1758 = vset.pattern.permute.xlu0 2
          %1759 = vperm.xlu0 %1758, %v1753
          %v1760 = vpop.permute.xlu0 %1759
          %1763 = vset.pattern.permute.xlu0 2
          %1764 = vperm.xlu0 %1763, %v1754
          %v1765 = vpop.permute.xlu0 %1764
          %1768 = vset.pattern.permute.xlu0 2
          %1769 = vperm.xlu0 %1768, %v1755
          %v1770 = vpop.permute.xlu0 %1769
          %1773 = vset.pattern.permute.xlu0 2
          %1774 = vperm.xlu0 %1773, %v1756
          %v1775 = vpop.permute.xlu0 %1774
          %v1777 = vmul.f32 %v1604, %v1760
          %v1778 = vmul.f32 %v1607, %v1765
          %v1779 = vmul.f32 %v1610, %v1770
          %v1780 = vmul.f32 %v1613, %v1775
          %v1781 = vadd.f32 %v1749, %v1777
          %v1782 = vadd.f32 %v1750, %v1778
          %v1783 = vadd.f32 %v1751, %v1779
          %v1784 = vadd.f32 %v1752, %v1780
          %1785 = vset.pattern.permute.xlu0 3
          %1786 = vperm.xlu0 %1785, %v1753
          %v1787 = vpop.permute.xlu0 %1786
          %1789 = vset.pattern.permute.xlu0 3
          %1790 = vperm.xlu0 %1789, %v1754
          %v1791 = vpop.permute.xlu0 %1790
          %1793 = vset.pattern.permute.xlu0 3
          %1794 = vperm.xlu0 %1793, %v1755
          %v1795 = vpop.permute.xlu0 %1794
          %1797 = vset.pattern.permute.xlu0 3
          %1798 = vperm.xlu0 %1797, %v1756
          %v1799 = vpop.permute.xlu0 %1798
          %v1801 = vadd.f32 %v1781, %v1787
          %v1802 = vadd.f32 %v1782, %v1791
          %v1803 = vadd.f32 %v1783, %v1795
          %v1804 = vadd.f32 %v1784, %v1799
          %v1805 = vmax.f32 %v1801, 0.0
          %v1806 = vmax.f32 %v1802, 0.0
          %v1807 = vmax.f32 %v1803, 0.0
          %v1808 = vmax.f32 %v1804, 0.0
          %v1809 = vld [vmem:[%s4] sm:$0xff]
          %v1810 = vld [vmem:[%s4 + $0x8] sm:$0xff]
          %v1811 = vld [vmem:[%s4 + $0x10] sm:$0xff]
          %vm1812 = vcmask 261120
          %v1814 = vsel %vm1812, %v1809, 0
          %v1817 = vsel %vm1812, %v1810, 0
          %v1820 = vsel %vm1812, %v1811, 0
          %1822 = vmatpush.msra.mxu0 0.0
          %1823 = vmatpush.msra.mxu0 0.0
          %1824 = vmatpush.msra.mxu0 0.0
          %1825 = vmatpush.msra.mxu0 0.0
          %1826 = vmatpush.msra.mxu0 0.0
          %1827 = vmatpush.msra.mxu0 0.0
          %1828 = vmatpush.msra.mxu0 0.0
          %1829 = vmatpush.msra.mxu0 0.0
          %1830 = vmatpush.msra.mxu0 0.0
          %1831 = vmatpush.msra.mxu0 0.0
          %1832 = vmatpush.msra.mxu0 0.0
          %1833 = vmatpush.msra.mxu0 0.0
          %1834 = vmatpush.msra.mxu0 %v1808
          %1835 = vmatpush.msra.mxu0 %v1807
          %1836 = vmatpush.msra.mxu0 %v1806
          %1837 = vmatpush.msra.mxu0 %v1805
          %1838 = vmatmul.f32.gmra.mxu0 %v1814
          %v1839 = vpop.f32.mrf.mxu0
          %1840 = vmatmul.f32.gmra.mxu0 %v1817
          %v1841 = vpop.f32.mrf.mxu0
          %v1842 = vadd.f32 0.0, %v1841
          %1843 = vmatmul.f32.gmra.mxu0 %v1820
          %v1844 = vpop.f32.mrf.mxu0
          %v1845 = vadd.f32 0.0, %v1844
          %1846 = vdwg.mxu0
          // Predicated region
          $region97: #{listnet_forward.2} parent=95 // pred_check
            %p1847 = pneg %p662
          $region98: #{listnet_forward.2} parent=95 // pred_check_branch
            %1849 = sbr.rel (%p1847) target = $region100
          $region99: #{listnet_forward.2} parent=95 // pred_region
            // Predicated region
            $region101: #{listnet_forward.2} parent=99 // pred_check
              %p1850 = pneg %p274
            $region102: #{listnet_forward.2} parent=99 // pred_check_branch
              %1852 = sbr.rel (%p1850) target = $region104
            $region103: #{listnet_forward.2} parent=99 // pred_region
              %v1853 = vmul.f32 %v1842, %v953
              %v1854 = vmul.f32 %v1845, %v953
              %v1855 = vld [vmem:[#allocation4] sm:$0xff]
              %v1856 = vld [vmem:[#allocation4 + $0x8] sm:$0xff]
              %1857 = vadd.xlane.f32.xlu0 %v1853
              %v1858 = vpop.xlane.xlu0 %1857
              %1859 = vadd.xlane.f32.xlu0 %v1854
              %v1860 = vpop.xlane.xlu0 %1859
              %v1861 = vadd.f32 %v1855, %v1858
              %v1862 = vadd.f32 %v1856, %v1860
              %vm1863 = vcmask 7168
              %1864 = vst.msk [vmem:[#allocation4] sm:$0xff] %vm1863, %v1861
              %1865 = vst.msk [vmem:[#allocation4 + $0x8] sm:$0xff] %vm1863, %v1862
              %v1866 = vld [vmem:[#allocation4] sm:$0xff]
              %v1867 = vld [vmem:[#allocation4 + $0x8] sm:$0xff]
              %v1868 = vmul.f32 %v1853, %v1842
              %v1869 = vmul.f32 %v1854, %v1845
              %1870 = vadd.xlane.f32.xlu0 %v1868
              %v1871 = vpop.xlane.xlu0 %1870
              %1872 = vadd.xlane.f32.xlu0 %v1869
              %v1873 = vpop.xlane.xlu0 %1872
              %v1874 = vadd.f32 %v1866, %v1871
              %v1875 = vadd.f32 %v1867, %v1873
              %vm1876 = vcmask 15368
              %1877 = vst.msk [vmem:[#allocation4] sm:$0xff] %vm1876, %v1874
              %1878 = vst.msk [vmem:[#allocation4 + $0x8] sm:$0xff] %vm1876, %v1875
            $region104: #{listnet_forward.2} parent=99 // pred_fallthru
              _
            %p1879 = scmp.ne.s32.totalorder %s23, 0
            // Predicated region
            $region105: #{listnet_forward.2} parent=99 // pred_check
              %p1880 = pneg %p1879
            $region106: #{listnet_forward.2} parent=99 // pred_check_branch
              %1882 = sbr.rel (%p1880) target = $region108
            $region107: #{listnet_forward.2} parent=99 // pred_region
              %v1883 = vld [vmem:[#allocation4] sm:$0xff]
              %v1884 = vld [vmem:[#allocation4 + $0x8] sm:$0xff]
              %1885 = vadd.xlane.f32.xlu0 %v1842
              %v1886 = vpop.xlane.xlu0 %1885
              %1887 = vadd.xlane.f32.xlu0 %v1845
              %v1888 = vpop.xlane.xlu0 %1887
              %v1889 = vadd.f32 %v1883, %v1886
              %v1890 = vadd.f32 %v1884, %v1888
              %vm1891 = vcmask 7168
              %1892 = vst.msk [vmem:[#allocation4] sm:$0xff] %vm1891, %v1889
              %1893 = vst.msk [vmem:[#allocation4 + $0x8] sm:$0xff] %vm1891, %v1890
              %v1894 = vld [vmem:[#allocation4] sm:$0xff]
              %v1895 = vld [vmem:[#allocation4 + $0x8] sm:$0xff]
              %v1896 = vmul.f32 %v1842, %v1842
              %v1897 = vmul.f32 %v1845, %v1845
              %1898 = vadd.xlane.f32.xlu0 %v1896
              %v1899 = vpop.xlane.xlu0 %1898
              %1900 = vadd.xlane.f32.xlu0 %v1897
              %v1901 = vpop.xlane.xlu0 %1900
              %v1902 = vadd.f32 %v1894, %v1899
              %v1903 = vadd.f32 %v1895, %v1901
              %vm1904 = vcmask 15368
              %1905 = vst.msk [vmem:[#allocation4] sm:$0xff] %vm1904, %v1902
              %1906 = vst.msk [vmem:[#allocation4 + $0x8] sm:$0xff] %vm1904, %v1903
            $region108: #{listnet_forward.2} parent=99 // pred_fallthru
              _
          $region100: #{listnet_forward.2} parent=95 // pred_fallthru
            _
          // Predicated region
          $region109: #{listnet_forward.2} parent=95 // pred_check
            %p1907 = pneg %p849
          $region110: #{listnet_forward.2} parent=95 // pred_check_branch
            %1909 = sbr.rel (%p1907) target = $region112
          $region111: #{listnet_forward.2} parent=95 // pred_region
            %v1910 = vld [vmem:[#allocation4] sm:$0xff]
            %v1911 = vld [vmem:[#allocation4 + $0x8] sm:$0xff]
            %1913 = vset.pattern.permute.xlu0 2
            %1914 = vperm.xlu0 %1913, %v1910
            %v1915 = vpop.permute.xlu0 %1914
            %1918 = vset.pattern.permute.xlu0 2
            %1919 = vperm.xlu0 %1918, %v1911
            %v1920 = vpop.permute.xlu0 %1919
            %v1922 = vmul.f32 %v1842, %v1915
            %v1923 = vmul.f32 %v1845, %v1920
            %1924 = vset.pattern.permute.xlu0 3
            %1925 = vperm.xlu0 %1924, %v1910
            %v1926 = vpop.permute.xlu0 %1925
            %1928 = vset.pattern.permute.xlu0 3
            %1929 = vperm.xlu0 %1928, %v1911
            %v1930 = vpop.permute.xlu0 %1929
            %v1932 = vadd.f32 %v1922, %v1926
            %v1933 = vadd.f32 %v1923, %v1930
            %v1934 = vmax.f32 %v1932, 0.0
            %v1935 = vmax.f32 %v1933, 0.0
            %v1936 = vld [vmem:[%s5] sm:$0xff]
            %v1938 = vsel %vm1068, %v1936, 0
            %1940 = vmatpush.msra.mxu0 0.0
            %1941 = vmatpush.msra.mxu0 0.0
            %1942 = vmatpush.msra.mxu0 0.0
            %1943 = vmatpush.msra.mxu0 0.0
            %1944 = vmatpush.msra.mxu0 0.0
            %1945 = vmatpush.msra.mxu0 0.0
            %1946 = vmatpush.msra.mxu0 0.0
            %1947 = vmatpush.msra.mxu0 0.0
            %1948 = vmatpush.msra.mxu0 0.0
            %1949 = vmatpush.msra.mxu0 0.0
            %1950 = vmatpush.msra.mxu0 0.0
            %1951 = vmatpush.msra.mxu0 0.0
            %1952 = vmatpush.msra.mxu0 0.0
            %1953 = vmatpush.msra.mxu0 0.0
            %1954 = vmatpush.msra.mxu0 %v1935
            %1955 = vmatpush.msra.mxu0 %v1934
            %1956 = vmatmul.f32.gmra.mxu0 %v1938
            %v1957 = vpop.f32.mrf.mxu0
            %v1958 = vadd.f32 0.0, %v1957
            %1959 = vdwg.mxu0
            // Predicated region
            $region113: #{listnet_forward.2} parent=111 // pred_check
              %p1960 = pneg %p274
            $region114: #{listnet_forward.2} parent=111 // pred_check_branch
              %1962 = sbr.rel (%p1960) target = $region116
            $region115: #{listnet_forward.2} parent=111 // pred_region
              %v1963 = vmul.f32 %v1958, %v953
              %v1964 = vld [vmem:[#allocation5] sm:$0xff]
              %1965 = vadd.xlane.f32.xlu0 %v1963
              %v1966 = vpop.xlane.xlu0 %1965
              %v1967 = vadd.f32 %v1964, %v1966
              %vm1968 = vcmask 7168
              %1969 = vst.msk [vmem:[#allocation5] sm:$0xff] %vm1968, %v1967
              %v1970 = vld [vmem:[#allocation5] sm:$0xff]
              %v1971 = vmul.f32 %v1963, %v1958
              %1972 = vadd.xlane.f32.xlu0 %v1971
              %v1973 = vpop.xlane.xlu0 %1972
              %v1974 = vadd.f32 %v1970, %v1973
              %vm1975 = vcmask 15368
              %1976 = vst.msk [vmem:[#allocation5] sm:$0xff] %vm1975, %v1974
            $region116: #{listnet_forward.2} parent=111 // pred_fallthru
              _
            %p1977 = scmp.ne.s32.totalorder %s23, 0
            // Predicated region
            $region117: #{listnet_forward.2} parent=111 // pred_check
              %p1978 = pneg %p1977
            $region118: #{listnet_forward.2} parent=111 // pred_check_branch
              %1980 = sbr.rel (%p1978) target = $region120
            $region119: #{listnet_forward.2} parent=111 // pred_region
              %v1981 = vld [vmem:[#allocation5] sm:$0xff]
              %1982 = vadd.xlane.f32.xlu0 %v1958
              %v1983 = vpop.xlane.xlu0 %1982
              %v1984 = vadd.f32 %v1981, %v1983
              %vm1985 = vcmask 7168
              %1986 = vst.msk [vmem:[#allocation5] sm:$0xff] %vm1985, %v1984
              %v1987 = vld [vmem:[#allocation5] sm:$0xff]
              %v1988 = vmul.f32 %v1958, %v1958
              %1989 = vadd.xlane.f32.xlu0 %v1988
              %v1990 = vpop.xlane.xlu0 %1989
              %v1991 = vadd.f32 %v1987, %v1990
              %vm1992 = vcmask 15368
              %1993 = vst.msk [vmem:[#allocation5] sm:$0xff] %vm1992, %v1991
            $region120: #{listnet_forward.2} parent=111 // pred_fallthru
              _
          $region112: #{listnet_forward.2} parent=95 // pred_fallthru
            _
        $region96: #{listnet_forward.2} parent=79 // pred_fallthru
          _
      $region80: #{listnet_forward.2} parent=47 // pred_fallthru
        _
      // Predicated region
      $region121: #{listnet_forward.2} parent=47 // pred_check
        _
      $region122: #{listnet_forward.2} parent=47 // pred_check_branch
        %1995 = sbr.rel (%p850) target = $region124
      $region123: #{listnet_forward.2} parent=47 // pred_region
        %v1996 = vld [vmem:[%s6] sm:$0xff]
        %v1997 = vld [vmem:[#allocation5] sm:$0xff]
        %v1998 = vmul.f32 %v1997, 0.0625
        %v1999 = vmul.f32 %v1998, %v1998
        %2001 = vrot.lane.b32.xlu0 %v1999, 1
        %v2002 = vpop.permute.xlu0 %2001
        %v2004 = vsub.f32 %v1998, %v2002
        %v2005 = vmax.f32 %v2004, 0.0
        %v2006 = vadd.f32 %v2005, 1e-05
        %v2007 = vrsqrt.pop %v2006
        %v2008 = vmul.f32 %v2007, %v2006
        %v2009 = vmul.f32 %v2008, %v2007
        %v2010 = vmul.f32 0.5, %v2009
        %v2011 = vsub.f32 1.5, %v2010
        %v2012 = vmul.f32 %v2007, %v2011
        %vm2013 = vweird.f32 %v2006
        %vm2014 = vweird.f32 %v2007
        %vm2015 = vmor %vm2013, %vm2014
        %v2016 = vsel %vm2015, %v2007, %v2012
        %2018 = vrot.lane.b32.xlu0 %v2016, 6
        %v2019 = vpop.permute.xlu0 %2018
        %v2021 = vmul.f32 %v1996, %v2019
        %2023 = vrot.lane.b32.xlu0 %v2021, 123
        %v2024 = vpop.permute.xlu0 %2023
        %vm2026 = vcmask 23568
        %2027 = vst.msk [vmem:[#allocation5] sm:$0xff] %vm2026, %v2024
        %2028 = vrot.lane.b32.xlu0 %v2021, 121
        %v2029 = vpop.permute.xlu0 %2028
        %v2031 = vmul.f32 %v1998, %v2029
        %2033 = vrot.lane.b32.xlu0 %v2031, 11
        %v2034 = vpop.permute.xlu0 %2033
        %v2036 = vsub.f32 %v1996, %v2034
        %2038 = vrot.lane.b32.xlu0 %v2036, 120
        %v2039 = vpop.permute.xlu0 %2038
        %vm2041 = vcmask 31768
        %2042 = vst.msk [vmem:[#allocation5] sm:$0xff] %vm2041, %v2039
        %vm2043 = vcmask 64512
        %2044 = vst.msk [vmem:[%s7] sm:$0xff] %vm2043, 0.0
        %2045 = vst.msk [vmem:[%s7 + $0x8] sm:$0xff] %vm2043, 0.0
        %2046 = vst.msk [vmem:[%s7 + $0x10] sm:$0xff] %vm2043, 0.0
        %2047 = vst.msk [vmem:[%s7 + $0x18] sm:$0xff] %vm2043, 0.0
        %2048 = vst.msk [vmem:[%s7 + $0x20] sm:$0xff] %vm2043, 0.0
        %2049 = vst.msk [vmem:[%s7 + $0x28] sm:$0xff] %vm2043, 0.0
        %2050 = vst.msk [vmem:[%s7 + $0x30] sm:$0xff] %vm2043, 0.0
        %2051 = vst.msk [vmem:[%s7 + $0x38] sm:$0xff] %vm2043, 0.0
        %2052 = vst.msk [vmem:[%s7 + $0x40] sm:$0xff] %vm2043, 0.0
        %2053 = vst.msk [vmem:[%s7 + $0x48] sm:$0xff] %vm2043, 0.0
        %2054 = vst.msk [vmem:[%s7 + $0x50] sm:$0xff] %vm2043, 0.0
        %2055 = vst.msk [vmem:[%s7 + $0x58] sm:$0xff] %vm2043, 0.0
        %2056 = vst.msk [vmem:[%s7 + $0x60] sm:$0xff] %vm2043, 0.0
        %2057 = vst.msk [vmem:[%s7 + $0x68] sm:$0xff] %vm2043, 0.0
        %2058 = vst.msk [vmem:[%s7 + $0x70] sm:$0xff] %vm2043, 0.0
        %2059 = vst.msk [vmem:[%s7 + $0x78] sm:$0xff] %vm2043, 0.0
        %v2060 = vld [vmem:[#allocation2] sm:$0xff]
        %v2061 = vld [vmem:[#allocation2 + $0x8] sm:$0xff]
        %v2062 = vld [vmem:[#allocation2 + $0x10] sm:$0xff]
        %v2063 = vld [vmem:[#allocation2 + $0x18] sm:$0xff]
        %v2064 = vld [vmem:[#allocation2 + $0x20] sm:$0xff]
        %v2065 = vld [vmem:[#allocation2 + $0x28] sm:$0xff]
        %v2066 = vld [vmem:[#allocation2 + $0x30] sm:$0xff]
        %v2067 = vld [vmem:[#allocation2 + $0x38] sm:$0xff]
        %2076 = vrot.lane.b32.xlu0 %v2060, 126
        %v2077 = vpop.permute.xlu0 %2076
        %2078 = vrot.lane.b32.xlu0 %v2061, 126
        %v2079 = vpop.permute.xlu0 %2078
        %2080 = vrot.lane.b32.xlu0 %v2062, 126
        %v2081 = vpop.permute.xlu0 %2080
        %2082 = vrot.lane.b32.xlu0 %v2063, 126
        %v2083 = vpop.permute.xlu0 %2082
        %2084 = vrot.lane.b32.xlu0 %v2064, 126
        %v2085 = vpop.permute.xlu0 %2084
        %2086 = vrot.lane.b32.xlu0 %v2065, 126
        %v2087 = vpop.permute.xlu0 %2086
        %2088 = vrot.lane.b32.xlu0 %v2066, 126
        %v2089 = vpop.permute.xlu0 %2088
        %2090 = vrot.lane.b32.xlu0 %v2067, 126
        %v2091 = vpop.permute.xlu0 %2090
        %vm2100 = vcmask 7168
        %2101 = vst.msk [vmem:[%s7] sm:$0xff] %vm2100, %v2077
        %2102 = vst.msk [vmem:[%s7 + $0x8] sm:$0xff] %vm2100, %v2079
        %2103 = vst.msk [vmem:[%s7 + $0x10] sm:$0xff] %vm2100, %v2081
        %2104 = vst.msk [vmem:[%s7 + $0x18] sm:$0xff] %vm2100, %v2083
        %2105 = vst.msk [vmem:[%s7 + $0x20] sm:$0xff] %vm2100, %v2085
        %2106 = vst.msk [vmem:[%s7 + $0x28] sm:$0xff] %vm2100, %v2087
        %2107 = vst.msk [vmem:[%s7 + $0x30] sm:$0xff] %vm2100, %v2089
        %2108 = vst.msk [vmem:[%s7 + $0x38] sm:$0xff] %vm2100, %v2091
        %v2109 = vld [vmem:[#allocation2] sm:$0xff]
        %v2110 = vld [vmem:[#allocation2 + $0x8] sm:$0xff]
        %v2111 = vld [vmem:[#allocation2 + $0x10] sm:$0xff]
        %v2112 = vld [vmem:[#allocation2 + $0x18] sm:$0xff]
        %v2113 = vld [vmem:[#allocation2 + $0x20] sm:$0xff]
        %v2114 = vld [vmem:[#allocation2 + $0x28] sm:$0xff]
        %v2115 = vld [vmem:[#allocation2 + $0x30] sm:$0xff]
        %v2116 = vld [vmem:[#allocation2 + $0x38] sm:$0xff]
        %2125 = vrot.lane.b32.xlu0 %v2109, 1
        %v2126 = vpop.permute.xlu0 %2125
        %2127 = vrot.lane.b32.xlu0 %v2110, 1
        %v2128 = vpop.permute.xlu0 %2127
        %2129 = vrot.lane.b32.xlu0 %v2111, 1
        %v2130 = vpop.permute.xlu0 %2129
        %2131 = vrot.lane.b32.xlu0 %v2112, 1
        %v2132 = vpop.permute.xlu0 %2131
        %2133 = vrot.lane.b32.xlu0 %v2113, 1
        %v2134 = vpop.permute.xlu0 %2133
        %2135 = vrot.lane.b32.xlu0 %v2114, 1
        %v2136 = vpop.permute.xlu0 %2135
        %2137 = vrot.lane.b32.xlu0 %v2115, 1
        %v2138 = vpop.permute.xlu0 %2137
        %2139 = vrot.lane.b32.xlu0 %v2116, 1
        %v2140 = vpop.permute.xlu0 %2139
        %vm2149 = vcmask 39968
        %2150 = vst.msk [vmem:[%s7] sm:$0xff] %vm2149, %v2126
        %2151 = vst.msk [vmem:[%s7 + $0x8] sm:$0xff] %vm2149, %v2128
        %2152 = vst.msk [vmem:[%s7 + $0x10] sm:$0xff] %vm2149, %v2130
        %2153 = vst.msk [vmem:[%s7 + $0x18] sm:$0xff] %vm2149, %v2132
        %2154 = vst.msk [vmem:[%s7 + $0x20] sm:$0xff] %vm2149, %v2134
        %2155 = vst.msk [vmem:[%s7 + $0x28] sm:$0xff] %vm2149, %v2136
        %2156 = vst.msk [vmem:[%s7 + $0x30] sm:$0xff] %vm2149, %v2138
        %2157 = vst.msk [vmem:[%s7 + $0x38] sm:$0xff] %vm2149, %v2140
        %v2158 = vld [vmem:[#allocation3] sm:$0xff]
        %v2159 = vld [vmem:[#allocation3 + $0x8] sm:$0xff]
        %v2160 = vld [vmem:[#allocation3 + $0x10] sm:$0xff]
        %v2161 = vld [vmem:[#allocation3 + $0x18] sm:$0xff]
        %2166 = vrot.lane.b32.xlu0 %v2158, 127
        %v2167 = vpop.permute.xlu0 %2166
        %2168 = vrot.lane.b32.xlu0 %v2159, 127
        %v2169 = vpop.permute.xlu0 %2168
        %2170 = vrot.lane.b32.xlu0 %v2160, 127
        %v2171 = vpop.permute.xlu0 %2170
        %2172 = vrot.lane.b32.xlu0 %v2161, 127
        %v2173 = vpop.permute.xlu0 %2172
        %vm2178 = vcmask 15368
        %2179 = vst.msk [vmem:[%s7] sm:$0xff] %vm2178, %v2167
        %2180 = vst.msk [vmem:[%s7 + $0x8] sm:$0xff] %vm2178, %v2169
        %2181 = vst.msk [vmem:[%s7 + $0x10] sm:$0xff] %vm2178, %v2171
        %2182 = vst.msk [vmem:[%s7 + $0x18] sm:$0xff] %vm2178, %v2173
        %v2183 = vld [vmem:[#allocation3] sm:$0xff]
        %v2184 = vld [vmem:[#allocation3 + $0x8] sm:$0xff]
        %v2185 = vld [vmem:[#allocation3 + $0x10] sm:$0xff]
        %v2186 = vld [vmem:[#allocation3 + $0x18] sm:$0xff]
        %2191 = vrot.lane.b32.xlu0 %v2183, 2
        %v2192 = vpop.permute.xlu0 %2191
        %2193 = vrot.lane.b32.xlu0 %v2184, 2
        %v2194 = vpop.permute.xlu0 %2193
        %2195 = vrot.lane.b32.xlu0 %v2185, 2
        %v2196 = vpop.permute.xlu0 %2195
        %2197 = vrot.lane.b32.xlu0 %v2186, 2
        %v2198 = vpop.permute.xlu0 %2197
        %vm2203 = vcmask 48168
        %2204 = vst.msk [vmem:[%s7] sm:$0xff] %vm2203, %v2192
        %2205 = vst.msk [vmem:[%s7 + $0x8] sm:$0xff] %vm2203, %v2194
        %2206 = vst.msk [vmem:[%s7 + $0x10] sm:$0xff] %vm2203, %v2196
        %2207 = vst.msk [vmem:[%s7 + $0x18] sm:$0xff] %vm2203, %v2198
        %v2208 = vld [vmem:[#allocation4] sm:$0xff]
        %v2209 = vld [vmem:[#allocation4 + $0x8] sm:$0xff]
        %2210 = vst.msk [vmem:[%s7] sm:$0xff] %vm2026, %v2208
        %2211 = vst.msk [vmem:[%s7 + $0x8] sm:$0xff] %vm2026, %v2209
        %v2212 = vld [vmem:[#allocation4] sm:$0xff]
        %v2213 = vld [vmem:[#allocation4 + $0x8] sm:$0xff]
        %2216 = vrot.lane.b32.xlu0 %v2212, 3
        %v2217 = vpop.permute.xlu0 %2216
        %2218 = vrot.lane.b32.xlu0 %v2213, 3
        %v2219 = vpop.permute.xlu0 %2218
        %vm2222 = vcmask 56368
        %2223 = vst.msk [vmem:[%s7] sm:$0xff] %vm2222, %v2217
        %2224 = vst.msk [vmem:[%s7 + $0x8] sm:$0xff] %vm2222, %v2219
        %v2225 = vld [vmem:[#allocation5] sm:$0xff]
        %2227 = vrot.lane.b32.xlu0 %v2225, 1
        %v2228 = vpop.permute.xlu0 %2227
        %2230 = vst.msk [vmem:[%s7] sm:$0xff] %vm2041, %v2228
        %v2231 = vld [vmem:[#allocation5] sm:$0xff]
        %2233 = vrot.lane.b32.xlu0 %v2231, 4
        %v2234 = vpop.permute.xlu0 %2233
        %vm2236 = vcmask 64568
        %2237 = vst.msk [vmem:[%s7] sm:$0xff] %vm2236, %v2234
      $region124: #{listnet_forward.2} parent=47 // pred_fallthru
        _
      // Predicated region
      $region125: #{listnet_forward.2} parent=47 // pred_check
        %p2238 = pneg %p195
      $region126: #{listnet_forward.2} parent=47 // pred_check_branch
        %2240 = sbr.rel (%p2238) target = $region128
      $region127: #{listnet_forward.2} parent=47 // pred_region
        _
      $region128: #{listnet_forward.2} parent=47 // pred_fallthru
        _
      // Predicated region
      $region129: #{listnet_forward.2} parent=47 // pred_check
        %p2241 = pneg %p195
      $region130: #{listnet_forward.2} parent=47 // pred_check_branch
        %2243 = sbr.rel (%p2241) target = $region132
      $region131: #{listnet_forward.2} parent=47 // pred_region
        _
      $region132: #{listnet_forward.2} parent=47 // pred_fallthru
        _
    $region48: #{listnet_forward.2} parent=5 // pred_fallthru
      _
    %p2244 = scmp.le.s32.totalorder 2, %s13
    // Predicated region
    $region133: #{listnet_forward.2} parent=5 // pred_check
      %p2245 = pneg %p2244
    $region134: #{listnet_forward.2} parent=5 // pred_check_branch
      %2247 = sbr.rel (%p2245) target = $region136
    $region135: #{listnet_forward.2} parent=5 // pred_region
      %s2248 = ssub.s32 %s13, 2
    $region136: #{listnet_forward.2} parent=5 // pred_fallthru
      _
  $region6: #{listnet_forward.2} parent=0 // loop_footer
    %s17 = sadd.s32 1, %s13
  $region7: #{listnet_forward.2} parent=0 // loop_footer_branch
    %12 = sbr.rel target = $region3
  $region8: #{listnet_forward.2} parent=0 // loop_exit
    _

</llo_original>
